<compile_context>
chip_gen: v7x
topology: tpu7x:2x2x1
jax: 0.10.0
libtpu: 0.0.40
codegen_flags: <defaults>
</compile_context>

<pallas_src>
import functools

import jax
import jax.numpy as jnp
from jax.experimental import pallas as pl
from jax.experimental.pallas import tpu as pltpu

NUM_CLASSES = 10
HIDDEN = 500
OUT = 2

IN_PAD = 128      # 10  -> 128 (lane width)
HID_PAD = 512     # 500 -> 512
OUT_PAD = 128     # 2   -> 128 (lane-dense output block)

TB_MAX = 1024     # batch tile upper bound (VMEM peak ~8 MiB at tb=1024)


def _round_up(n, m):
    return ((n + m - 1) // m) * m


def _cdiv(a, b):
    return (a + b - 1) // b


def _batch_tiling(b):
    """num_tiles/tb/bp policy:
       - enough tiles that no tile exceeds TB_MAX,
       - >=2 tiles for b>=16 so v7x megacore splits the batch grid,
       - tb a multiple of 16 (native bf16 sublane tiling)."""
    num_tiles = max(_cdiv(b, TB_MAX), 2 if b >= 16 else 1)
    tb = _round_up(max(_cdiv(b, num_tiles), 1), 16)
    bp = num_tiles * tb
    return num_tiles, tb, bp


# ----------------------------------------------------------------------------
# Pallas kernel: full 6-layer MLP for one batch tile.  Weights/biases are
# resident in VMEM (constant index_map); only x / out tiles stream per step.
# ----------------------------------------------------------------------------
def attack_mlp_kernel(x_ref,
                      w1_ref, w2_ref, w3_ref, w4_ref, w5_ref, w6_ref,
                      b_ref, o_ref):
    # bf16 matmul operands, f32 accumulation; bias-add / ReLU in f32.
    h = x_ref[...]                                     # (tb, IN_PAD) bf16

    h = jnp.dot(h, w1_ref[...], preferred_element_type=jnp.float32)
    h = jnp.maximum(h + b_ref[0:1, :], 0.0).astype(jnp.bfloat16)

    h = jnp.dot(h, w2_ref[...], preferred_element_type=jnp.float32)
    h = jnp.maximum(h + b_ref[1:2, :], 0.0).astype(jnp.bfloat16)

    h = jnp.dot(h, w3_ref[...], preferred_element_type=jnp.float32)
    h = jnp.maximum(h + b_ref[2:3, :], 0.0).astype(jnp.bfloat16)

    h = jnp.dot(h, w4_ref[...], preferred_element_type=jnp.float32)
    h = jnp.maximum(h + b_ref[3:4, :], 0.0).astype(jnp.bfloat16)

    h = jnp.dot(h, w5_ref[...], preferred_element_type=jnp.float32)
    h = jnp.maximum(h + b_ref[4:5, :], 0.0).astype(jnp.bfloat16)

    h = jnp.dot(h, w6_ref[...], preferred_element_type=jnp.float32)
    o_ref[...] = (h + b_ref[5:6, :OUT_PAD]).astype(jnp.bfloat16)


# ----------------------------------------------------------------------------
# Deterministic parameter construction (orthogonal weights, zero bias),
# mirroring nn.init.orthogonal_ / nn.init.constant_(bias, 0).
# ----------------------------------------------------------------------------
def _orthogonal(key, rows, cols):
    """Orthogonal matrix of shape (rows, cols), a la torch.nn.init.orthogonal_."""
    n, m = max(rows, cols), min(rows, cols)
    a = jax.random.normal(key, (n, m), dtype=jnp.float32)
    q, r = jnp.linalg.qr(a)
    d = jnp.diagonal(r)
    q = q * jnp.where(d >= 0, 1.0, -1.0)[None, :]      # robust sign (no zeroing)
    if rows < cols:
        q = q.T
    return q[:rows, :cols]


def init_params(key):
    """Returns (weights, biases):
       weights: tuple of 6 bf16 arrays, layer l is (in_pad_l, out_pad_l)
       biases:  one (8, HID_PAD) f32 array, row l is layer l's bias (zero)."""
    dims = [(NUM_CLASSES, HIDDEN), (HIDDEN, HIDDEN), (HIDDEN, HIDDEN),
            (HIDDEN, HIDDEN), (HIDDEN, HIDDEN), (HIDDEN, OUT)]
    pads = [(IN_PAD, HID_PAD), (HID_PAD, HID_PAD), (HID_PAD, HID_PAD),
            (HID_PAD, HID_PAD), (HID_PAD, HID_PAD), (HID_PAD, OUT_PAD)]
    keys = jax.random.split(key, len(dims))
    weights = []
    for k, (din, dout), (pin, pout) in zip(keys, dims, pads):
        # PyTorch Linear weight is (out, in); orthogonal_ applies to that shape.
        # Store the transpose (in, out) so the kernel computes x @ W.
        w_t = _orthogonal(k, dout, din)                       # (out, in)
        w = jnp.zeros((pin, pout), jnp.float32).at[:din, :dout].set(w_t.T)
        weights.append(w.astype(jnp.bfloat16))
    biases = jnp.zeros((8, HID_PAD), jnp.float32)             # bias init = 0
    return tuple(weights), biases


# ----------------------------------------------------------------------------
# Wrapper: pad+cast, call the batch-tiled kernel, slice, optional softmax.
# ----------------------------------------------------------------------------
@functools.partial(jax.jit, static_argnames=("smax",))
def attack_net_forward(x, weights, biases, smax=False):
    b = x.shape[0]
    x2 = x.reshape(b, -1)                                     # x.view(x.size(0), -1)

    num_tiles, tb, bp = _batch_tiling(b)
    # Pad + cast to bf16 in one glue op (halves the per-tile x DMA).
    xp = (jnp.zeros((bp, IN_PAD), jnp.bfloat16)
          .at[:b, :x2.shape[1]].set(x2.astype(jnp.bfloat16)))

    w_specs = [pl.BlockSpec(w.shape, lambda i: (0, 0)) for w in weights]

    flops = 2 * bp * (IN_PAD * HID_PAD + 4 * HID_PAD * HID_PAD
                      + HID_PAD * OUT_PAD)
    bytes_accessed = (sum(int(w.size) * 2 for w in weights)    # bf16 weights
                      + int(biases.size) * 4
                      + bp * IN_PAD * 2 + bp * OUT_PAD * 2)    # bf16 x / out

    out_pad = pl.pallas_call(
        attack_mlp_kernel,
        out_shape=jax.ShapeDtypeStruct((bp, OUT_PAD), jnp.bfloat16),
        grid_spec=pltpu.PrefetchScalarGridSpec(
            num_scalar_prefetch=0,
            grid=(num_tiles,),
            in_specs=([pl.BlockSpec((tb, IN_PAD), lambda i: (i, 0))]
                      + w_specs
                      + [pl.BlockSpec(biases.shape, lambda i: (0, 0))]),
            out_specs=pl.BlockSpec((tb, OUT_PAD), lambda i: (i, 0)),
        ),
        compiler_params=pltpu.CompilerParams(
            dimension_semantics=("parallel",)),
        cost_estimate=pl.CostEstimate(
            flops=flops, transcendentals=0, bytes_accessed=bytes_accessed),
    )(xp, *weights, biases)

    out = out_pad[:b, :OUT].astype(jnp.float32)
    if smax:
        out = jax.nn.softmax(out, axis=1)                      # tiny; kept in f32 JAX glue
    return out


# Pure-JAX reference (emulates the kernel's bf16 operand / bf16 output rounding,
# with f32 accumulation) for a tight correctness check.
def attack_net_ref(x, weights, biases, smax=False):
    h = x.reshape(x.shape[0], -1).astype(jnp.float32)
    h = jnp.pad(h, ((0, 0), (0, IN_PAD - h.shape[1])))
    for i, w in enumerate(weights):
        hq = h.astype(jnp.bfloat16).astype(jnp.float32)
        wf = w.astype(jnp.float32)
        h = hq @ wf + biases[i, :w.shape[1]]
        if i < len(weights) - 1:
            h = jnp.maximum(h, 0.0)
    out = h[:, :OUT].astype(jnp.bfloat16).astype(jnp.float32)  # kernel stores bf16
    if smax:
        out = jax.nn.softmax(out, axis=1)
    return out


if __name__ == "__main__":
    key = jax.random.PRNGKey(0)
    k_param, k_x, k_xb = jax.random.split(key, 3)

    weights, biases = init_params(k_param)

    # Batch of 2 "posterior" vectors over num_classes=10 (as in the attack model).
    x = jax.random.uniform(k_x, (2, NUM_CLASSES), dtype=jnp.float32)
    out = jax.block_until_ready(attack_net_forward(x, weights, biases, smax=False))
    ref = attack_net_ref(x, weights, biases, smax=False)
    assert out.shape == (2, 2), out.shape
    assert jnp.allclose(out, ref, atol=1e-2, rtol=1e-2), (out, ref)

    # smax=True path (softmax done in plain f32 JAX glue)
    probs = jax.block_until_ready(attack_net_forward(x, weights, biases, smax=True))
    assert jnp.allclose(jnp.sum(probs, axis=1), 1.0, atol=1e-5)

    # Larger batch exercises the multi-tile grid (num_tiles=2, tb=160, bp=320).
    xb = jax.random.uniform(k_xb, (300, NUM_CLASSES), dtype=jnp.float32)
    outb = jax.block_until_ready(attack_net_forward(xb, weights, biases, smax=False))
    refb = attack_net_ref(xb, weights, biases, smax=False)
    assert outb.shape == (300, 2), outb.shape
    assert jnp.allclose(outb, refb, atol=1e-2, rtol=1e-2)

    print("KERNEL_OK")
</pallas_src>

<mosaic_0001>
module attributes {stable_mosaic.version = 11 : i64} {
  func.func @attack_mlp_kernel(%arg0: i32, %arg1: memref<16x128xbf16, #tpu.memory_space<vmem>>, %arg2: memref<128x512xbf16, #tpu.memory_space<vmem>>, %arg3: memref<512x512xbf16, #tpu.memory_space<vmem>>, %arg4: memref<512x512xbf16, #tpu.memory_space<vmem>>, %arg5: memref<512x512xbf16, #tpu.memory_space<vmem>>, %arg6: memref<512x512xbf16, #tpu.memory_space<vmem>>, %arg7: memref<512x128xbf16, #tpu.memory_space<vmem>>, %arg8: memref<8x512xf32, #tpu.memory_space<vmem>>, %arg9: memref<16x128xbf16, #tpu.memory_space<vmem>>) attributes {dimension_semantics = [#tpu.dimension_semantics<parallel>], iteration_bounds = array<i64: 1>, scalar_prefetch = 0 : i64, scratch_operands = 0 : i64, tpu.core_type = #tpu.core_type<tc>, window_params = [{transform_indices = @transform_0, window_bounds = array<i64: 16, 128>}, {pipeline_mode = #tpu.pipeline_mode<synchronous>, transform_indices = @transform_1, window_bounds = array<i64: 128, 512>}, {pipeline_mode = #tpu.pipeline_mode<synchronous>, transform_indices = @transform_2, window_bounds = array<i64: 512, 512>}, {pipeline_mode = #tpu.pipeline_mode<synchronous>, transform_indices = @transform_3, window_bounds = array<i64: 512, 512>}, {pipeline_mode = #tpu.pipeline_mode<synchronous>, transform_indices = @transform_4, window_bounds = array<i64: 512, 512>}, {pipeline_mode = #tpu.pipeline_mode<synchronous>, transform_indices = @transform_5, window_bounds = array<i64: 512, 512>}, {pipeline_mode = #tpu.pipeline_mode<synchronous>, transform_indices = @transform_6, window_bounds = array<i64: 512, 128>}, {pipeline_mode = #tpu.pipeline_mode<synchronous>, transform_indices = @transform_7, window_bounds = array<i64: 8, 512>}, {transform_indices = @transform_8, window_bounds = array<i64: 16, 128>}]} {
    %c0 = arith.constant 0 : index
    %c0_0 = arith.constant 0 : index
    %0 = vector.load %arg1[%c0, %c0_0] : memref<16x128xbf16, #tpu.memory_space<vmem>>, vector<16x128xbf16>
    %c0_1 = arith.constant 0 : index
    %c0_2 = arith.constant 0 : index
    %1 = vector.load %arg2[%c0_1, %c0_2] : memref<128x512xbf16, #tpu.memory_space<vmem>>, vector<128x512xbf16>
    %cst = arith.constant dense<0.000000e+00> : vector<16x512xf32>
    %2 = tpu.matmul %0, %1, %cst {dimension_numbers = #tpu.dot_dimension_numbers<[1], [0], [0], [1], [0, 0, 1, 1], [], []>} : vector<16x128xbf16>, vector<128x512xbf16>, vector<16x512xf32> -> vector<16x512xf32>
    %c0_3 = arith.constant 0 : index
    %c0_4 = arith.constant 0 : index
    %3 = vector.load %arg8[%c0_3, %c0_4] : memref<8x512xf32, #tpu.memory_space<vmem>>, vector<1x512xf32>
    %4 = vector.broadcast %3 : vector<1x512xf32> to vector<16x512xf32>
    %5 = arith.addf %2, %4 : vector<16x512xf32>
    %cst_5 = arith.constant 0.000000e+00 : f32
    %6 = vector.broadcast %cst_5 : f32 to vector<16x512xf32>
    %7 = arith.maximumf %5, %6 : vector<16x512xf32>
    %8 = arith.truncf %7 : vector<16x512xf32> to vector<16x512xbf16>
    %c0_6 = arith.constant 0 : index
    %c0_7 = arith.constant 0 : index
    %9 = vector.load %arg3[%c0_6, %c0_7] : memref<512x512xbf16, #tpu.memory_space<vmem>>, vector<512x512xbf16>
    %cst_8 = arith.constant dense<0.000000e+00> : vector<16x512xf32>
    %10 = tpu.matmul %8, %9, %cst_8 {dimension_numbers = #tpu.dot_dimension_numbers<[1], [0], [0], [1], [0, 0, 1, 1], [], []>} : vector<16x512xbf16>, vector<512x512xbf16>, vector<16x512xf32> -> vector<16x512xf32>
    %c1 = arith.constant 1 : index
    %c0_9 = arith.constant 0 : index
    %11 = vector.load %arg8[%c1, %c0_9] : memref<8x512xf32, #tpu.memory_space<vmem>>, vector<1x512xf32>
    %12 = vector.broadcast %11 : vector<1x512xf32> to vector<16x512xf32>
    %13 = arith.addf %10, %12 : vector<16x512xf32>
    %cst_10 = arith.constant 0.000000e+00 : f32
    %14 = vector.broadcast %cst_10 : f32 to vector<16x512xf32>
    %15 = arith.maximumf %13, %14 : vector<16x512xf32>
    %16 = arith.truncf %15 : vector<16x512xf32> to vector<16x512xbf16>
    %c0_11 = arith.constant 0 : index
    %c0_12 = arith.constant 0 : index
    %17 = vector.load %arg4[%c0_11, %c0_12] : memref<512x512xbf16, #tpu.memory_space<vmem>>, vector<512x512xbf16>
    %cst_13 = arith.constant dense<0.000000e+00> : vector<16x512xf32>
    %18 = tpu.matmul %16, %17, %cst_13 {dimension_numbers = #tpu.dot_dimension_numbers<[1], [0], [0], [1], [0, 0, 1, 1], [], []>} : vector<16x512xbf16>, vector<512x512xbf16>, vector<16x512xf32> -> vector<16x512xf32>
    %c2 = arith.constant 2 : index
    %c0_14 = arith.constant 0 : index
    %19 = vector.load %arg8[%c2, %c0_14] : memref<8x512xf32, #tpu.memory_space<vmem>>, vector<1x512xf32>
    %20 = vector.broadcast %19 : vector<1x512xf32> to vector<16x512xf32>
    %21 = arith.addf %18, %20 : vector<16x512xf32>
    %cst_15 = arith.constant 0.000000e+00 : f32
    %22 = vector.broadcast %cst_15 : f32 to vector<16x512xf32>
    %23 = arith.maximumf %21, %22 : vector<16x512xf32>
    %24 = arith.truncf %23 : vector<16x512xf32> to vector<16x512xbf16>
    %c0_16 = arith.constant 0 : index
    %c0_17 = arith.constant 0 : index
    %25 = vector.load %arg5[%c0_16, %c0_17] : memref<512x512xbf16, #tpu.memory_space<vmem>>, vector<512x512xbf16>
    %cst_18 = arith.constant dense<0.000000e+00> : vector<16x512xf32>
    %26 = tpu.matmul %24, %25, %cst_18 {dimension_numbers = #tpu.dot_dimension_numbers<[1], [0], [0], [1], [0, 0, 1, 1], [], []>} : vector<16x512xbf16>, vector<512x512xbf16>, vector<16x512xf32> -> vector<16x512xf32>
    %c3 = arith.constant 3 : index
    %c0_19 = arith.constant 0 : index
    %27 = vector.load %arg8[%c3, %c0_19] : memref<8x512xf32, #tpu.memory_space<vmem>>, vector<1x512xf32>
    %28 = vector.broadcast %27 : vector<1x512xf32> to vector<16x512xf32>
    %29 = arith.addf %26, %28 : vector<16x512xf32>
    %cst_20 = arith.constant 0.000000e+00 : f32
    %30 = vector.broadcast %cst_20 : f32 to vector<16x512xf32>
    %31 = arith.maximumf %29, %30 : vector<16x512xf32>
    %32 = arith.truncf %31 : vector<16x512xf32> to vector<16x512xbf16>
    %c0_21 = arith.constant 0 : index
    %c0_22 = arith.constant 0 : index
    %33 = vector.load %arg6[%c0_21, %c0_22] : memref<512x512xbf16, #tpu.memory_space<vmem>>, vector<512x512xbf16>
    %cst_23 = arith.constant dense<0.000000e+00> : vector<16x512xf32>
    %34 = tpu.matmul %32, %33, %cst_23 {dimension_numbers = #tpu.dot_dimension_numbers<[1], [0], [0], [1], [0, 0, 1, 1], [], []>} : vector<16x512xbf16>, vector<512x512xbf16>, vector<16x512xf32> -> vector<16x512xf32>
    %c4 = arith.constant 4 : index
    %c0_24 = arith.constant 0 : index
    %35 = vector.load %arg8[%c4, %c0_24] : memref<8x512xf32, #tpu.memory_space<vmem>>, vector<1x512xf32>
    %36 = vector.broadcast %35 : vector<1x512xf32> to vector<16x512xf32>
    %37 = arith.addf %34, %36 : vector<16x512xf32>
    %cst_25 = arith.constant 0.000000e+00 : f32
    %38 = vector.broadcast %cst_25 : f32 to vector<16x512xf32>
    %39 = arith.maximumf %37, %38 : vector<16x512xf32>
    %40 = arith.truncf %39 : vector<16x512xf32> to vector<16x512xbf16>
    %c0_26 = arith.constant 0 : index
    %c0_27 = arith.constant 0 : index
    %41 = vector.load %arg7[%c0_26, %c0_27] : memref<512x128xbf16, #tpu.memory_space<vmem>>, vector<512x128xbf16>
    %cst_28 = arith.constant dense<0.000000e+00> : vector<16x128xf32>
    %42 = tpu.matmul %40, %41, %cst_28 {dimension_numbers = #tpu.dot_dimension_numbers<[1], [0], [0], [1], [0, 0, 1, 1], [], []>} : vector<16x512xbf16>, vector<512x128xbf16>, vector<16x128xf32> -> vector<16x128xf32>
    %c5 = arith.constant 5 : index
    %c0_29 = arith.constant 0 : index
    %43 = vector.load %arg8[%c5, %c0_29] : memref<8x512xf32, #tpu.memory_space<vmem>>, vector<1x128xf32>
    %44 = vector.broadcast %43 : vector<1x128xf32> to vector<16x128xf32>
    %45 = arith.addf %42, %44 : vector<16x128xf32>
    %46 = arith.truncf %45 : vector<16x128xf32> to vector<16x128xbf16>
    %c0_30 = arith.constant 0 : index
    %c0_31 = arith.constant 0 : index
    %47 = vector.load %arg9[%c0_30, %c0_31] : memref<16x128xbf16, #tpu.memory_space<vmem>>, vector<16x128xbf16>
    tpu.vector_store %arg9[%c0_30, %c0_31], %46 {strides = array<i32>} : memref<16x128xbf16, #tpu.memory_space<vmem>>, vector<16x128xbf16>,
    return
  }
  func.func @transform_0(%arg0: i32) -> (i32, i32) {
    %c0_i32 = arith.constant 0 : i32
    %c0_i32_0 = arith.constant 0 : i32
    return %arg0, %c0_i32 : i32, i32
  }
  func.func @transform_1(%arg0: i32) -> (i32, i32) {
    %c0_i32 = arith.constant 0 : i32
    %c0_i32_0 = arith.constant 0 : i32
    %c0_i32_1 = arith.constant 0 : i32
    return %c0_i32, %c0_i32_0 : i32, i32
  }
  func.func @transform_2(%arg0: i32) -> (i32, i32) {
    %c0_i32 = arith.constant 0 : i32
    %c0_i32_0 = arith.constant 0 : i32
    %c0_i32_1 = arith.constant 0 : i32
    return %c0_i32, %c0_i32_0 : i32, i32
  }
  func.func @transform_3(%arg0: i32) -> (i32, i32) {
    %c0_i32 = arith.constant 0 : i32
    %c0_i32_0 = arith.constant 0 : i32
    %c0_i32_1 = arith.constant 0 : i32
    return %c0_i32, %c0_i32_0 : i32, i32
  }
  func.func @transform_4(%arg0: i32) -> (i32, i32) {
    %c0_i32 = arith.constant 0 : i32
    %c0_i32_0 = arith.constant 0 : i32
    %c0_i32_1 = arith.constant 0 : i32
    return %c0_i32, %c0_i32_0 : i32, i32
  }
  func.func @transform_5(%arg0: i32) -> (i32, i32) {
    %c0_i32 = arith.constant 0 : i32
    %c0_i32_0 = arith.constant 0 : i32
    %c0_i32_1 = arith.constant 0 : i32
    return %c0_i32, %c0_i32_0 : i32, i32
  }
  func.func @transform_6(%arg0: i32) -> (i32, i32) {
    %c0_i32 = arith.constant 0 : i32
    %c0_i32_0 = arith.constant 0 : i32
    %c0_i32_1 = arith.constant 0 : i32
    return %c0_i32, %c0_i32_0 : i32, i32
  }
  func.func @transform_7(%arg0: i32) -> (i32, i32) {
    %c0_i32 = arith.constant 0 : i32
    %c0_i32_0 = arith.constant 0 : i32
    %c0_i32_1 = arith.constant 0 : i32
    return %c0_i32, %c0_i32_0 : i32, i32
  }
  func.func @transform_8(%arg0: i32) -> (i32, i32) {
    %c0_i32 = arith.constant 0 : i32
    %c0_i32_0 = arith.constant 0 : i32
    return %arg0, %c0_i32 : i32, i32
  }
}

</mosaic_0001>

<llo_original>
// kernel: attack_net_forward.1
$region0: #{attack_net_forward.1}
  #allocation0 [shape = 'u32[]', space=smem, size = 0x4, offset = 0x4, fixed_abs, tag = 'smem constant byte address 0x4 - core index']
  #allocation1 [shape = 'u32[144,128]{1,0:T(1,128)}', space=vmem, size = 0x12000, scoped, tag = 'internal scratch']
  %s0 = inlined_call_operand.vmem [shape: bf16[16,128], index: 0, kind: input, shape index: {}]
  %s1 = inlined_call_operand.hbm [shape: bf16[128,512], index: 1, kind: input, shape index: {}]
  %s2 = inlined_call_operand.hbm [shape: bf16[512,512], index: 2, kind: input, shape index: {}]
  %s3 = inlined_call_operand.hbm [shape: bf16[512,512], index: 3, kind: input, shape index: {}]
  %s4 = inlined_call_operand.hbm [shape: bf16[512,512], index: 4, kind: input, shape index: {}]
  %s5 = inlined_call_operand.hbm [shape: bf16[512,512], index: 5, kind: input, shape index: {}]
  %s6 = inlined_call_operand.hbm [shape: bf16[512,128], index: 6, kind: input, shape index: {}]
  %s7 = inlined_call_operand.vmem [shape: f32[8,512], index: 7, kind: input, shape index: {}]
  %s8 = inlined_call_operand.vmem [shape: bf16[16,128], index: 8, kind: output, shape index: {}]
  %s9 = sld [smem:[#allocation0]]
  $region66: #{attack_net_forward.1} parent=0
    _
  %s11 = ssub.s32 1, %s9
  %s12 = scalar_select 0, %s11, %s9
  $region1: #{attack_net_forward.1} parent=0
    #allocation2 [shape = 'u8[131072]{0}', space=vmem, size = 0x20000, scoped, tag = 'input window, operand 1, single buffered']
    #allocation3 [shape = 's32[1]{0}', space=sflag, size = 0x4, scoped, tag = 'scoped memory for attack_net_forward.1']
    #allocation4 [shape = 'u8[524288]{0}', space=vmem, size = 0x80000, scoped, tag = 'input window, operand 2, single buffered']
    #allocation5 [shape = 's32[1]{0}', space=sflag, size = 0x4, scoped, tag = 'scoped memory for attack_net_forward.1']
    #allocation6 [shape = 'u8[524288]{0}', space=vmem, size = 0x80000, scoped, tag = 'input window, operand 3, single buffered']
    #allocation7 [shape = 'u8[524288]{0}', space=vmem, size = 0x80000, scoped, tag = 'input window, operand 4, single buffered']
    #allocation8 [shape = 's32[1]{0}', space=sflag, size = 0x4, scoped, tag = 'scoped memory for attack_net_forward.1']
    #allocation9 [shape = 'u8[524288]{0}', space=vmem, size = 0x80000, scoped, tag = 'input window, operand 5, single buffered']
    #allocation10 [shape = 'u8[131072]{0}', space=vmem, size = 0x20000, scoped, tag = 'input window, operand 6, single buffered']
    #allocation11 [shape = 's32[1]{0}', space=sflag, size = 0x4, scoped, tag = 'scoped memory for attack_net_forward.1']
    %13 = vsyncpa [#allocation3], 0
    %14 = vsyncpa [#allocation5], 0
    %15 = vsyncpa [#allocation8], 0
    %16 = vsyncpa [#allocation11], 0
    // Predicated region
    $region2: #{attack_net_forward.1} parent=1 // pred_check
      _
    $region3: #{attack_net_forward.1} parent=1 // pred_check_branch
      %18 = sbr.rel (0) target = $region5
    $region4: #{attack_net_forward.1} parent=1 // pred_region
      _
    $region5: #{attack_net_forward.1} parent=1 // pred_fallthru
      _
    // Predicated region
    $region6: #{attack_net_forward.1} parent=1 // pred_check
      _
    $region7: #{attack_net_forward.1} parent=1 // pred_check_branch
      %20 = sbr.rel (0) target = $region9
    $region8: #{attack_net_forward.1} parent=1 // pred_region
      %s22 = ssub.s32 4096, 4096
      %23 = vsyncadd [#allocation3], %s22
      %s24 = sshll.u32 [#allocation2], 4
      %s25 = int_to_ptr.vmem [resolvable:$true] %s24
      %30 = dma.hbm_to_vmem [thread:$0]  %s1, 4096, %s25, [#allocation3], 256, 256, 16
    $region9: #{attack_net_forward.1} parent=1 // pred_fallthru
      _
    // Predicated region
    $region10: #{attack_net_forward.1} parent=1 // pred_check
      _
    $region11: #{attack_net_forward.1} parent=1 // pred_check_branch
      %32 = sbr.rel (0) target = $region13
    $region12: #{attack_net_forward.1} parent=1 // pred_region
      %s34 = ssub.s32 16384, 16384
      %35 = vsyncadd [#allocation5], %s34
      %s36 = sshll.u32 [#allocation4], 4
      %s37 = int_to_ptr.vmem [resolvable:$true] %s36
      %42 = dma.hbm_to_vmem [thread:$0]  %s2, 16384, %s37, [#allocation5], 256, 256, 16
    $region13: #{attack_net_forward.1} parent=1 // pred_fallthru
      _
    // Predicated region
    $region14: #{attack_net_forward.1} parent=1 // pred_check
      _
    $region15: #{attack_net_forward.1} parent=1 // pred_check_branch
      %44 = sbr.rel (0) target = $region17
    $region16: #{attack_net_forward.1} parent=1 // pred_region
      %s46 = ssub.s32 16384, 16384
      %47 = vsyncadd [#allocation5], %s46
      %s48 = sshll.u32 [#allocation6], 4
      %s49 = int_to_ptr.vmem [resolvable:$true] %s48
      %54 = dma.hbm_to_vmem [thread:$0]  %s3, 16384, %s49, [#allocation5], 256, 256, 16
    $region17: #{attack_net_forward.1} parent=1 // pred_fallthru
      _
    // Predicated region
    $region18: #{attack_net_forward.1} parent=1 // pred_check
      _
    $region19: #{attack_net_forward.1} parent=1 // pred_check_branch
      %56 = sbr.rel (0) target = $region21
    $region20: #{attack_net_forward.1} parent=1 // pred_region
      %s58 = ssub.s32 16384, 16384
      %59 = vsyncadd [#allocation8], %s58
      %s60 = sshll.u32 [#allocation7], 4
      %s61 = int_to_ptr.vmem [resolvable:$true] %s60
      %66 = dma.hbm_to_vmem [thread:$0]  %s4, 16384, %s61, [#allocation8], 256, 256, 16
    $region21: #{attack_net_forward.1} parent=1 // pred_fallthru
      _
    // Predicated region
    $region22: #{attack_net_forward.1} parent=1 // pred_check
      _
    $region23: #{attack_net_forward.1} parent=1 // pred_check_branch
      %68 = sbr.rel (0) target = $region25
    $region24: #{attack_net_forward.1} parent=1 // pred_region
      %s70 = ssub.s32 16384, 16384
      %71 = vsyncadd [#allocation8], %s70
      %s72 = sshll.u32 [#allocation9], 4
      %s73 = int_to_ptr.vmem [resolvable:$true] %s72
      %78 = dma.hbm_to_vmem [thread:$0]  %s5, 16384, %s73, [#allocation8], 256, 256, 16
    $region25: #{attack_net_forward.1} parent=1 // pred_fallthru
      _
    // Predicated region
    $region26: #{attack_net_forward.1} parent=1 // pred_check
      _
    $region27: #{attack_net_forward.1} parent=1 // pred_check_branch
      %80 = sbr.rel (0) target = $region29
    $region28: #{attack_net_forward.1} parent=1 // pred_region
      %s82 = ssub.s32 4096, 4096
      %83 = vsyncadd [#allocation11], %s82
      %s84 = sshll.u32 [#allocation10], 4
      %s85 = int_to_ptr.vmem [resolvable:$true] %s84
      %90 = dma.hbm_to_vmem [thread:$0]  %s6, 4096, %s85, [#allocation11], 64, 64, 4
    $region29: #{attack_net_forward.1} parent=1 // pred_fallthru
      _
    // Predicated region
    $region30: #{attack_net_forward.1} parent=1 // pred_check
      _
    $region31: #{attack_net_forward.1} parent=1 // pred_check_branch
      %92 = sbr.rel (0) target = $region33
    $region32: #{attack_net_forward.1} parent=1 // pred_region
      _
    $region33: #{attack_net_forward.1} parent=1 // pred_fallthru
      _
    // Predicated region
    $region34: #{attack_net_forward.1} parent=1 // pred_check
      _
    $region35: #{attack_net_forward.1} parent=1 // pred_check_branch
      %94 = sbr.rel (0) target = $region37
    $region36: #{attack_net_forward.1} parent=1 // pred_region
      %95 = dma.done [#allocation3], 4096
    $region37: #{attack_net_forward.1} parent=1 // pred_fallthru
      _
    // Predicated region
    $region38: #{attack_net_forward.1} parent=1 // pred_check
      _
    $region39: #{attack_net_forward.1} parent=1 // pred_check_branch
      %97 = sbr.rel (0) target = $region41
    $region40: #{attack_net_forward.1} parent=1 // pred_region
      %98 = dma.done [#allocation5], 16384
    $region41: #{attack_net_forward.1} parent=1 // pred_fallthru
      _
    // Predicated region
    $region42: #{attack_net_forward.1} parent=1 // pred_check
      _
    $region43: #{attack_net_forward.1} parent=1 // pred_check_branch
      %100 = sbr.rel (0) target = $region45
    $region44: #{attack_net_forward.1} parent=1 // pred_region
      %101 = dma.done [#allocation5], 16384
    $region45: #{attack_net_forward.1} parent=1 // pred_fallthru
      _
    // Predicated region
    $region46: #{attack_net_forward.1} parent=1 // pred_check
      _
    $region47: #{attack_net_forward.1} parent=1 // pred_check_branch
      %103 = sbr.rel (0) target = $region49
    $region48: #{attack_net_forward.1} parent=1 // pred_region
      %104 = dma.done [#allocation8], 16384
    $region49: #{attack_net_forward.1} parent=1 // pred_fallthru
      _
    // Predicated region
    $region50: #{attack_net_forward.1} parent=1 // pred_check
      _
    $region51: #{attack_net_forward.1} parent=1 // pred_check_branch
      %106 = sbr.rel (0) target = $region53
    $region52: #{attack_net_forward.1} parent=1 // pred_region
      %107 = dma.done [#allocation8], 16384
    $region53: #{attack_net_forward.1} parent=1 // pred_fallthru
      _
    // Predicated region
    $region54: #{attack_net_forward.1} parent=1 // pred_check
      _
    $region55: #{attack_net_forward.1} parent=1 // pred_check_branch
      %109 = sbr.rel (0) target = $region57
    $region56: #{attack_net_forward.1} parent=1 // pred_region
      %110 = dma.done [#allocation11], 4096
    $region57: #{attack_net_forward.1} parent=1 // pred_fallthru
      _
    %v112 = vld [vmem:[%s0] sm:$0xf]
    %v113 = vld [vmem:[%s0 + $0x4] sm:$0xf]
    %v114 = vld [vmem:[#allocation2] sm:$0xff]
    %v115 = vld [vmem:[#allocation2 + $0x8] sm:$0xff]
    %v116 = vld [vmem:[#allocation2 + $0x10] sm:$0xff]
    %v117 = vld [vmem:[#allocation2 + $0x18] sm:$0xff]
    %v118 = vld [vmem:[#allocation2 + $0x20] sm:$0xff]
    %v119 = vld [vmem:[#allocation2 + $0x28] sm:$0xff]
    %v120 = vld [vmem:[#allocation2 + $0x30] sm:$0xff]
    %v121 = vld [vmem:[#allocation2 + $0x38] sm:$0xff]
    %v122 = vld [vmem:[#allocation2 + $0x40] sm:$0xff]
    %v123 = vld [vmem:[#allocation2 + $0x48] sm:$0xff]
    %v124 = vld [vmem:[#allocation2 + $0x50] sm:$0xff]
    %v125 = vld [vmem:[#allocation2 + $0x58] sm:$0xff]
    %v126 = vld [vmem:[#allocation2 + $0x60] sm:$0xff]
    %v127 = vld [vmem:[#allocation2 + $0x68] sm:$0xff]
    %v128 = vld [vmem:[#allocation2 + $0x70] sm:$0xff]
    %v129 = vld [vmem:[#allocation2 + $0x78] sm:$0xff]
    %v130 = vld [vmem:[#allocation2 + $0x80] sm:$0xff]
    %v131 = vld [vmem:[#allocation2 + $0x88] sm:$0xff]
    %v132 = vld [vmem:[#allocation2 + $0x90] sm:$0xff]
    %v133 = vld [vmem:[#allocation2 + $0x98] sm:$0xff]
    %v134 = vld [vmem:[#allocation2 + $0xa0] sm:$0xff]
    %v135 = vld [vmem:[#allocation2 + $0xa8] sm:$0xff]
    %v136 = vld [vmem:[#allocation2 + $0xb0] sm:$0xff]
    %v137 = vld [vmem:[#allocation2 + $0xb8] sm:$0xff]
    %v138 = vld [vmem:[#allocation2 + $0xc0] sm:$0xff]
    %v139 = vld [vmem:[#allocation2 + $0xc8] sm:$0xff]
    %v140 = vld [vmem:[#allocation2 + $0xd0] sm:$0xff]
    %v141 = vld [vmem:[#allocation2 + $0xd8] sm:$0xff]
    %v142 = vld [vmem:[#allocation2 + $0xe0] sm:$0xff]
    %v143 = vld [vmem:[#allocation2 + $0xe8] sm:$0xff]
    %v144 = vld [vmem:[#allocation2 + $0xf0] sm:$0xff]
    %v145 = vld [vmem:[#allocation2 + $0xf8] sm:$0xff]
    %v146 = vld [vmem:[%s7] ss:$8 sm:$0xf]
    %v148 = vlaneseq
    %v149 = vshrl.u32 %v148, 7
    %v150 = vsub.s32 0, %v149
    %v151 = vrot.slane %v146, %v150
    %v152 = vlaneseq
    %v153 = vshrl.u32 %v152, 7
    %v154 = vsub.s32 1, %v153
    %v155 = vrot.slane %v146, %v154
    %v156 = vlaneseq
    %v157 = vshrl.u32 %v156, 7
    %v158 = vsub.s32 2, %v157
    %v159 = vrot.slane %v146, %v158
    %v160 = vlaneseq
    %v161 = vshrl.u32 %v160, 7
    %v162 = vsub.s32 3, %v161
    %v163 = vrot.slane %v146, %v162
    %v170 = vunpack.c.l.b16 %v112
    %v171 = vunpack.c.l.b16 %v113
    %v172 = vpack.c.b16 %v171, %v170
    %v206 = vunpack.c.l.b16 %v114
    %v207 = vunpack.c.h.b16 %v114
    %v208 = vunpack.c.l.b16 %v115
    %v209 = vunpack.c.h.b16 %v115
    %v210 = vunpack.c.l.b16 %v116
    %v211 = vunpack.c.h.b16 %v116
    %v212 = vunpack.c.l.b16 %v117
    %v213 = vunpack.c.h.b16 %v117
    %v214 = vunpack.c.l.b16 %v118
    %v215 = vunpack.c.h.b16 %v118
    %v216 = vunpack.c.l.b16 %v119
    %v217 = vunpack.c.h.b16 %v119
    %v218 = vunpack.c.l.b16 %v120
    %v219 = vunpack.c.h.b16 %v120
    %v220 = vunpack.c.l.b16 %v121
    %v221 = vunpack.c.h.b16 %v121
    %v222 = vunpack.c.l.b16 %v122
    %v223 = vunpack.c.h.b16 %v122
    %v224 = vunpack.c.l.b16 %v123
    %v225 = vunpack.c.h.b16 %v123
    %v226 = vunpack.c.l.b16 %v124
    %v227 = vunpack.c.h.b16 %v124
    %v228 = vunpack.c.l.b16 %v125
    %v229 = vunpack.c.h.b16 %v125
    %v230 = vunpack.c.l.b16 %v126
    %v231 = vunpack.c.h.b16 %v126
    %v232 = vunpack.c.l.b16 %v127
    %v233 = vunpack.c.h.b16 %v127
    %v234 = vunpack.c.l.b16 %v128
    %v235 = vunpack.c.h.b16 %v128
    %v236 = vunpack.c.l.b16 %v129
    %v237 = vunpack.c.h.b16 %v129
    %v238 = vunpack.c.l.b16 %v130
    %v239 = vunpack.c.h.b16 %v130
    %v240 = vunpack.c.l.b16 %v131
    %v241 = vunpack.c.h.b16 %v131
    %v242 = vunpack.c.l.b16 %v132
    %v243 = vunpack.c.h.b16 %v132
    %v244 = vunpack.c.l.b16 %v133
    %v245 = vunpack.c.h.b16 %v133
    %v246 = vunpack.c.l.b16 %v134
    %v247 = vunpack.c.h.b16 %v134
    %v248 = vunpack.c.l.b16 %v135
    %v249 = vunpack.c.h.b16 %v135
    %v250 = vunpack.c.l.b16 %v136
    %v251 = vunpack.c.h.b16 %v136
    %v252 = vunpack.c.l.b16 %v137
    %v253 = vunpack.c.h.b16 %v137
    %v254 = vunpack.c.l.b16 %v138
    %v255 = vunpack.c.h.b16 %v138
    %v256 = vunpack.c.l.b16 %v139
    %v257 = vunpack.c.h.b16 %v139
    %v258 = vunpack.c.l.b16 %v140
    %v259 = vunpack.c.h.b16 %v140
    %v260 = vunpack.c.l.b16 %v141
    %v261 = vunpack.c.h.b16 %v141
    %v262 = vunpack.c.l.b16 %v142
    %v263 = vunpack.c.h.b16 %v142
    %v264 = vunpack.c.l.b16 %v143
    %v265 = vunpack.c.h.b16 %v143
    %v266 = vunpack.c.l.b16 %v144
    %v267 = vunpack.c.h.b16 %v144
    %v268 = vunpack.c.l.b16 %v145
    %v269 = vunpack.c.h.b16 %v145
    %v270 = vpack.c.b16 %v210, %v206
    %v271 = vpack.c.b16 %v211, %v207
    %v272 = vpack.c.b16 %v212, %v208
    %v273 = vpack.c.b16 %v213, %v209
    %v274 = vpack.c.b16 %v218, %v214
    %v275 = vpack.c.b16 %v219, %v215
    %v276 = vpack.c.b16 %v220, %v216
    %v277 = vpack.c.b16 %v221, %v217
    %v278 = vpack.c.b16 %v226, %v222
    %v279 = vpack.c.b16 %v227, %v223
    %v280 = vpack.c.b16 %v228, %v224
    %v281 = vpack.c.b16 %v229, %v225
    %v282 = vpack.c.b16 %v234, %v230
    %v283 = vpack.c.b16 %v235, %v231
    %v284 = vpack.c.b16 %v236, %v232
    %v285 = vpack.c.b16 %v237, %v233
    %v286 = vpack.c.b16 %v242, %v238
    %v287 = vpack.c.b16 %v243, %v239
    %v288 = vpack.c.b16 %v244, %v240
    %v289 = vpack.c.b16 %v245, %v241
    %v290 = vpack.c.b16 %v250, %v246
    %v291 = vpack.c.b16 %v251, %v247
    %v292 = vpack.c.b16 %v252, %v248
    %v293 = vpack.c.b16 %v253, %v249
    %v294 = vpack.c.b16 %v258, %v254
    %v295 = vpack.c.b16 %v259, %v255
    %v296 = vpack.c.b16 %v260, %v256
    %v297 = vpack.c.b16 %v261, %v257
    %v298 = vpack.c.b16 %v266, %v262
    %v299 = vpack.c.b16 %v267, %v263
    %v300 = vpack.c.b16 %v268, %v264
    %v301 = vpack.c.b16 %v269, %v265
    %334 = vmatprep.subr.bf16.mxu0 %v271
    %335 = vmatpush1.bf16.msra.mxu0 %v270
    %336 = vmatprep.subr.bf16.mxu0 %v275
    %337 = vmatpush1.bf16.msra.mxu0 %v274
    %338 = vmatprep.subr.bf16.mxu0 %v279
    %339 = vmatpush1.bf16.msra.mxu0 %v278
    %340 = vmatprep.subr.bf16.mxu0 %v283
    %341 = vmatpush1.bf16.msra.mxu0 %v282
    %342 = vmatprep.subr.bf16.mxu0 %v287
    %343 = vmatpush1.bf16.msra.mxu0 %v286
    %344 = vmatprep.subr.bf16.mxu0 %v291
    %345 = vmatpush1.bf16.msra.mxu0 %v290
    %346 = vmatprep.subr.bf16.mxu0 %v295
    %347 = vmatpush1.bf16.msra.mxu0 %v294
    %348 = vmatprep.subr.bf16.mxu0 %v299
    %349 = vmatpush1.bf16.msra.mxu0 %v298
    %350 = vmatprep.subr.bf16.mxu0 0
    %351 = vmatpush1.bf16.msra.mxu0 0
    %352 = vmatprep.subr.bf16.mxu0 0
    %353 = vmatpush1.bf16.msra.mxu0 0
    %354 = vmatprep.subr.bf16.mxu0 0
    %355 = vmatpush1.bf16.msra.mxu0 0
    %356 = vmatprep.subr.bf16.mxu0 0
    %357 = vmatpush1.bf16.msra.mxu0 0
    %358 = vmatprep.subr.bf16.mxu0 0
    %359 = vmatpush1.bf16.msra.mxu0 0
    %360 = vmatprep.subr.bf16.mxu0 0
    %361 = vmatpush1.bf16.msra.mxu0 0
    %362 = vmatprep.subr.bf16.mxu0 0
    %363 = vmatpush1.bf16.msra.mxu0 0
    %364 = vmatprep.subr.bf16.mxu0 0
    %365 = vmatpush1.bf16.msra.mxu0 0
    %366 = vmatprep.mubr.bf16.mxu0 0
    %367 = vmatmul.mubr.bf16.gmra.mrb[0].mxu0 %v172
    %v368 = vpop.f32.mrb[0].mxu0
    %v369 = vadd.f32 %v151, %v368
    %v370 = vpop.f32.mrb[0].mxu0
    %v371 = vadd.f32 %v155, %v370
    %v372 = vpop.f32.mrb[0].mxu0
    %v373 = vadd.f32 %v151, %v372
    %v374 = vpop.f32.mrb[0].mxu0
    %v375 = vadd.f32 %v155, %v374
    %376 = vdwg.mxu0
    %377 = vmatprep.subr.bf16.mxu0 %v273
    %378 = vmatpush1.bf16.msra.mxu0 %v272
    %379 = vmatprep.subr.bf16.mxu0 %v277
    %380 = vmatpush1.bf16.msra.mxu0 %v276
    %381 = vmatprep.subr.bf16.mxu0 %v281
    %382 = vmatpush1.bf16.msra.mxu0 %v280
    %383 = vmatprep.subr.bf16.mxu0 %v285
    %384 = vmatpush1.bf16.msra.mxu0 %v284
    %385 = vmatprep.subr.bf16.mxu0 %v289
    %386 = vmatpush1.bf16.msra.mxu0 %v288
    %387 = vmatprep.subr.bf16.mxu0 %v293
    %388 = vmatpush1.bf16.msra.mxu0 %v292
    %389 = vmatprep.subr.bf16.mxu0 %v297
    %390 = vmatpush1.bf16.msra.mxu0 %v296
    %391 = vmatprep.subr.bf16.mxu0 %v301
    %392 = vmatpush1.bf16.msra.mxu0 %v300
    %393 = vmatprep.subr.bf16.mxu0 0
    %394 = vmatpush1.bf16.msra.mxu0 0
    %395 = vmatprep.subr.bf16.mxu0 0
    %396 = vmatpush1.bf16.msra.mxu0 0
    %397 = vmatprep.subr.bf16.mxu0 0
    %398 = vmatpush1.bf16.msra.mxu0 0
    %399 = vmatprep.subr.bf16.mxu0 0
    %400 = vmatpush1.bf16.msra.mxu0 0
    %401 = vmatprep.subr.bf16.mxu0 0
    %402 = vmatpush1.bf16.msra.mxu0 0
    %403 = vmatprep.subr.bf16.mxu0 0
    %404 = vmatpush1.bf16.msra.mxu0 0
    %405 = vmatprep.subr.bf16.mxu0 0
    %406 = vmatpush1.bf16.msra.mxu0 0
    %407 = vmatprep.subr.bf16.mxu0 0
    %408 = vmatpush1.bf16.msra.mxu0 0
    %409 = vmatprep.mubr.bf16.mxu0 0
    %410 = vmatmul.mubr.bf16.gmra.mrb[0].mxu0 %v172
    %v411 = vpop.f32.mrb[0].mxu0
    %v412 = vadd.f32 %v159, %v411
    %v413 = vpop.f32.mrb[0].mxu0
    %v414 = vadd.f32 %v163, %v413
    %v415 = vpop.f32.mrb[0].mxu0
    %v416 = vadd.f32 %v159, %v415
    %v417 = vpop.f32.mrb[0].mxu0
    %v418 = vadd.f32 %v163, %v417
    %419 = vdwg.mxu0
    %v420 = vmax.f32 %v369, 0.0
    %v421 = vmax.f32 %v371, 0.0
    %v422 = vmax.f32 %v412, 0.0
    %v423 = vmax.f32 %v414, 0.0
    %v424 = vmax.f32 %v373, 0.0
    %v425 = vmax.f32 %v375, 0.0
    %v426 = vmax.f32 %v416, 0.0
    %v427 = vmax.f32 %v418, 0.0
    %v428 = vpack.c.bf16 %v424, %v420
    %v429 = vpack.c.bf16 %v425, %v421
    %v430 = vpack.c.bf16 %v426, %v422
    %v431 = vpack.c.bf16 %v427, %v423
    %v432 = vld [vmem:[#allocation4] sm:$0xff]
    %v433 = vld [vmem:[#allocation4 + $0x8] sm:$0xff]
    %v434 = vld [vmem:[#allocation4 + $0x10] sm:$0xff]
    %v435 = vld [vmem:[#allocation4 + $0x18] sm:$0xff]
    %v436 = vld [vmem:[#allocation4 + $0x20] sm:$0xff]
    %v437 = vld [vmem:[#allocation4 + $0x28] sm:$0xff]
    %v438 = vld [vmem:[#allocation4 + $0x30] sm:$0xff]
    %v439 = vld [vmem:[#allocation4 + $0x38] sm:$0xff]
    %v440 = vld [vmem:[#allocation4 + $0x40] sm:$0xff]
    %v441 = vld [vmem:[#allocation4 + $0x48] sm:$0xff]
    %v442 = vld [vmem:[#allocation4 + $0x50] sm:$0xff]
    %v443 = vld [vmem:[#allocation4 + $0x58] sm:$0xff]
    %v444 = vld [vmem:[#allocation4 + $0x60] sm:$0xff]
    %v445 = vld [vmem:[#allocation4 + $0x68] sm:$0xff]
    %v446 = vld [vmem:[#allocation4 + $0x70] sm:$0xff]
    %v447 = vld [vmem:[#allocation4 + $0x78] sm:$0xff]
    %v448 = vld [vmem:[#allocation4 + $0x80] sm:$0xff]
    %v449 = vld [vmem:[#allocation4 + $0x88] sm:$0xff]
    %v450 = vld [vmem:[#allocation4 + $0x90] sm:$0xff]
    %v451 = vld [vmem:[#allocation4 + $0x98] sm:$0xff]
    %v452 = vld [vmem:[#allocation4 + $0xa0] sm:$0xff]
    %v453 = vld [vmem:[#allocation4 + $0xa8] sm:$0xff]
    %v454 = vld [vmem:[#allocation4 + $0xb0] sm:$0xff]
    %v455 = vld [vmem:[#allocation4 + $0xb8] sm:$0xff]
    %v456 = vld [vmem:[#allocation4 + $0xc0] sm:$0xff]
    %v457 = vld [vmem:[#allocation4 + $0xc8] sm:$0xff]
    %v458 = vld [vmem:[#allocation4 + $0xd0] sm:$0xff]
    %v459 = vld [vmem:[#allocation4 + $0xd8] sm:$0xff]
    %v460 = vld [vmem:[#allocation4 + $0xe0] sm:$0xff]
    %v461 = vld [vmem:[#allocation4 + $0xe8] sm:$0xff]
    %v462 = vld [vmem:[#allocation4 + $0xf0] sm:$0xff]
    %v463 = vld [vmem:[#allocation4 + $0xf8] sm:$0xff]
    %v464 = vld [vmem:[#allocation4 + $0x100] sm:$0xff]
    %v465 = vld [vmem:[#allocation4 + $0x108] sm:$0xff]
    %v466 = vld [vmem:[#allocation4 + $0x110] sm:$0xff]
    %v467 = vld [vmem:[#allocation4 + $0x118] sm:$0xff]
    %v468 = vld [vmem:[#allocation4 + $0x120] sm:$0xff]
    %v469 = vld [vmem:[#allocation4 + $0x128] sm:$0xff]
    %v470 = vld [vmem:[#allocation4 + $0x130] sm:$0xff]
    %v471 = vld [vmem:[#allocation4 + $0x138] sm:$0xff]
    %v472 = vld [vmem:[#allocation4 + $0x140] sm:$0xff]
    %v473 = vld [vmem:[#allocation4 + $0x148] sm:$0xff]
    %v474 = vld [vmem:[#allocation4 + $0x150] sm:$0xff]
    %v475 = vld [vmem:[#allocation4 + $0x158] sm:$0xff]
    %v476 = vld [vmem:[#allocation4 + $0x160] sm:$0xff]
    %v477 = vld [vmem:[#allocation4 + $0x168] sm:$0xff]
    %v478 = vld [vmem:[#allocation4 + $0x170] sm:$0xff]
    %v479 = vld [vmem:[#allocation4 + $0x178] sm:$0xff]
    %v480 = vld [vmem:[#allocation4 + $0x180] sm:$0xff]
    %v481 = vld [vmem:[#allocation4 + $0x188] sm:$0xff]
    %v482 = vld [vmem:[#allocation4 + $0x190] sm:$0xff]
    %v483 = vld [vmem:[#allocation4 + $0x198] sm:$0xff]
    %v484 = vld [vmem:[#allocation4 + $0x1a0] sm:$0xff]
    %v485 = vld [vmem:[#allocation4 + $0x1a8] sm:$0xff]
    %v486 = vld [vmem:[#allocation4 + $0x1b0] sm:$0xff]
    %v487 = vld [vmem:[#allocation4 + $0x1b8] sm:$0xff]
    %v488 = vld [vmem:[#allocation4 + $0x1c0] sm:$0xff]
    %v489 = vld [vmem:[#allocation4 + $0x1c8] sm:$0xff]
    %v490 = vld [vmem:[#allocation4 + $0x1d0] sm:$0xff]
    %v491 = vld [vmem:[#allocation4 + $0x1d8] sm:$0xff]
    %v492 = vld [vmem:[#allocation4 + $0x1e0] sm:$0xff]
    %v493 = vld [vmem:[#allocation4 + $0x1e8] sm:$0xff]
    %v494 = vld [vmem:[#allocation4 + $0x1f0] sm:$0xff]
    %v495 = vld [vmem:[#allocation4 + $0x1f8] sm:$0xff]
    %v496 = vld [vmem:[#allocation4 + $0x200] sm:$0xff]
    %v497 = vld [vmem:[#allocation4 + $0x208] sm:$0xff]
    %v498 = vld [vmem:[#allocation4 + $0x210] sm:$0xff]
    %v499 = vld [vmem:[#allocation4 + $0x218] sm:$0xff]
    %v500 = vld [vmem:[#allocation4 + $0x220] sm:$0xff]
    %v501 = vld [vmem:[#allocation4 + $0x228] sm:$0xff]
    %v502 = vld [vmem:[#allocation4 + $0x230] sm:$0xff]
    %v503 = vld [vmem:[#allocation4 + $0x238] sm:$0xff]
    %v504 = vld [vmem:[#allocation4 + $0x240] sm:$0xff]
    %v505 = vld [vmem:[#allocation4 + $0x248] sm:$0xff]
    %v506 = vld [vmem:[#allocation4 + $0x250] sm:$0xff]
    %v507 = vld [vmem:[#allocation4 + $0x258] sm:$0xff]
    %v508 = vld [vmem:[#allocation4 + $0x260] sm:$0xff]
    %v509 = vld [vmem:[#allocation4 + $0x268] sm:$0xff]
    %v510 = vld [vmem:[#allocation4 + $0x270] sm:$0xff]
    %v511 = vld [vmem:[#allocation4 + $0x278] sm:$0xff]
    %v512 = vld [vmem:[#allocation4 + $0x280] sm:$0xff]
    %v513 = vld [vmem:[#allocation4 + $0x288] sm:$0xff]
    %v514 = vld [vmem:[#allocation4 + $0x290] sm:$0xff]
    %v515 = vld [vmem:[#allocation4 + $0x298] sm:$0xff]
    %v516 = vld [vmem:[#allocation4 + $0x2a0] sm:$0xff]
    %v517 = vld [vmem:[#allocation4 + $0x2a8] sm:$0xff]
    %v518 = vld [vmem:[#allocation4 + $0x2b0] sm:$0xff]
    %v519 = vld [vmem:[#allocation4 + $0x2b8] sm:$0xff]
    %v520 = vld [vmem:[#allocation4 + $0x2c0] sm:$0xff]
    %v521 = vld [vmem:[#allocation4 + $0x2c8] sm:$0xff]
    %v522 = vld [vmem:[#allocation4 + $0x2d0] sm:$0xff]
    %v523 = vld [vmem:[#allocation4 + $0x2d8] sm:$0xff]
    %v524 = vld [vmem:[#allocation4 + $0x2e0] sm:$0xff]
    %v525 = vld [vmem:[#allocation4 + $0x2e8] sm:$0xff]
    %v526 = vld [vmem:[#allocation4 + $0x2f0] sm:$0xff]
    %v527 = vld [vmem:[#allocation4 + $0x2f8] sm:$0xff]
    %v528 = vld [vmem:[#allocation4 + $0x300] sm:$0xff]
    %v529 = vld [vmem:[#allocation4 + $0x308] sm:$0xff]
    %v530 = vld [vmem:[#allocation4 + $0x310] sm:$0xff]
    %v531 = vld [vmem:[#allocation4 + $0x318] sm:$0xff]
    %v532 = vld [vmem:[#allocation4 + $0x320] sm:$0xff]
    %v533 = vld [vmem:[#allocation4 + $0x328] sm:$0xff]
    %v534 = vld [vmem:[#allocation4 + $0x330] sm:$0xff]
    %v535 = vld [vmem:[#allocation4 + $0x338] sm:$0xff]
    %v536 = vld [vmem:[#allocation4 + $0x340] sm:$0xff]
    %v537 = vld [vmem:[#allocation4 + $0x348] sm:$0xff]
    %v538 = vld [vmem:[#allocation4 + $0x350] sm:$0xff]
    %v539 = vld [vmem:[#allocation4 + $0x358] sm:$0xff]
    %v540 = vld [vmem:[#allocation4 + $0x360] sm:$0xff]
    %v541 = vld [vmem:[#allocation4 + $0x368] sm:$0xff]
    %v542 = vld [vmem:[#allocation4 + $0x370] sm:$0xff]
    %v543 = vld [vmem:[#allocation4 + $0x378] sm:$0xff]
    %v544 = vld [vmem:[#allocation4 + $0x380] sm:$0xff]
    %v545 = vld [vmem:[#allocation4 + $0x388] sm:$0xff]
    %v546 = vld [vmem:[#allocation4 + $0x390] sm:$0xff]
    %v547 = vld [vmem:[#allocation4 + $0x398] sm:$0xff]
    %v548 = vld [vmem:[#allocation4 + $0x3a0] sm:$0xff]
    %v549 = vld [vmem:[#allocation4 + $0x3a8] sm:$0xff]
    %v550 = vld [vmem:[#allocation4 + $0x3b0] sm:$0xff]
    %v551 = vld [vmem:[#allocation4 + $0x3b8] sm:$0xff]
    %v552 = vld [vmem:[#allocation4 + $0x3c0] sm:$0xff]
    %v553 = vld [vmem:[#allocation4 + $0x3c8] sm:$0xff]
    %v554 = vld [vmem:[#allocation4 + $0x3d0] sm:$0xff]
    %v555 = vld [vmem:[#allocation4 + $0x3d8] sm:$0xff]
    %v556 = vld [vmem:[#allocation4 + $0x3e0] sm:$0xff]
    %v557 = vld [vmem:[#allocation4 + $0x3e8] sm:$0xff]
    %v558 = vld [vmem:[#allocation4 + $0x3f0] sm:$0xff]
    %v559 = vld [vmem:[#allocation4 + $0x3f8] sm:$0xff]
    %s560 = scalar_lea.vmem %s7, 1
    %v561 = vld [vmem:[%s560] ss:$8 sm:$0xf]
    %v563 = vlaneseq
    %v564 = vshrl.u32 %v563, 7
    %v565 = vsub.s32 0, %v564
    %v566 = vrot.slane %v561, %v565
    %v567 = vlaneseq
    %v568 = vshrl.u32 %v567, 7
    %v569 = vsub.s32 1, %v568
    %v570 = vrot.slane %v561, %v569
    %v571 = vlaneseq
    %v572 = vshrl.u32 %v571, 7
    %v573 = vsub.s32 2, %v572
    %v574 = vrot.slane %v561, %v573
    %v575 = vlaneseq
    %v576 = vshrl.u32 %v575, 7
    %v577 = vsub.s32 3, %v576
    %v578 = vrot.slane %v561, %v577
    %v711 = vunpack.c.l.b16 %v432
    %v712 = vunpack.c.h.b16 %v432
    %v713 = vunpack.c.l.b16 %v433
    %v714 = vunpack.c.h.b16 %v433
    %v715 = vunpack.c.l.b16 %v434
    %v716 = vunpack.c.h.b16 %v434
    %v717 = vunpack.c.l.b16 %v435
    %v718 = vunpack.c.h.b16 %v435
    %v719 = vunpack.c.l.b16 %v436
    %v720 = vunpack.c.h.b16 %v436
    %v721 = vunpack.c.l.b16 %v437
    %v722 = vunpack.c.h.b16 %v437
    %v723 = vunpack.c.l.b16 %v438
    %v724 = vunpack.c.h.b16 %v438
    %v725 = vunpack.c.l.b16 %v439
    %v726 = vunpack.c.h.b16 %v439
    %v727 = vunpack.c.l.b16 %v440
    %v728 = vunpack.c.h.b16 %v440
    %v729 = vunpack.c.l.b16 %v441
    %v730 = vunpack.c.h.b16 %v441
    %v731 = vunpack.c.l.b16 %v442
    %v732 = vunpack.c.h.b16 %v442
    %v733 = vunpack.c.l.b16 %v443
    %v734 = vunpack.c.h.b16 %v443
    %v735 = vunpack.c.l.b16 %v444
    %v736 = vunpack.c.h.b16 %v444
    %v737 = vunpack.c.l.b16 %v445
    %v738 = vunpack.c.h.b16 %v445
    %v739 = vunpack.c.l.b16 %v446
    %v740 = vunpack.c.h.b16 %v446
    %v741 = vunpack.c.l.b16 %v447
    %v742 = vunpack.c.h.b16 %v447
    %v743 = vunpack.c.l.b16 %v448
    %v744 = vunpack.c.h.b16 %v448
    %v745 = vunpack.c.l.b16 %v449
    %v746 = vunpack.c.h.b16 %v449
    %v747 = vunpack.c.l.b16 %v450
    %v748 = vunpack.c.h.b16 %v450
    %v749 = vunpack.c.l.b16 %v451
    %v750 = vunpack.c.h.b16 %v451
    %v751 = vunpack.c.l.b16 %v452
    %v752 = vunpack.c.h.b16 %v452
    %v753 = vunpack.c.l.b16 %v453
    %v754 = vunpack.c.h.b16 %v453
    %v755 = vunpack.c.l.b16 %v454
    %v756 = vunpack.c.h.b16 %v454
    %v757 = vunpack.c.l.b16 %v455
    %v758 = vunpack.c.h.b16 %v455
    %v759 = vunpack.c.l.b16 %v456
    %v760 = vunpack.c.h.b16 %v456
    %v761 = vunpack.c.l.b16 %v457
    %v762 = vunpack.c.h.b16 %v457
    %v763 = vunpack.c.l.b16 %v458
    %v764 = vunpack.c.h.b16 %v458
    %v765 = vunpack.c.l.b16 %v459
    %v766 = vunpack.c.h.b16 %v459
    %v767 = vunpack.c.l.b16 %v460
    %v768 = vunpack.c.h.b16 %v460
    %v769 = vunpack.c.l.b16 %v461
    %v770 = vunpack.c.h.b16 %v461
    %v771 = vunpack.c.l.b16 %v462
    %v772 = vunpack.c.h.b16 %v462
    %v773 = vunpack.c.l.b16 %v463
    %v774 = vunpack.c.h.b16 %v463
    %v775 = vunpack.c.l.b16 %v464
    %v776 = vunpack.c.h.b16 %v464
    %v777 = vunpack.c.l.b16 %v465
    %v778 = vunpack.c.h.b16 %v465
    %v779 = vunpack.c.l.b16 %v466
    %v780 = vunpack.c.h.b16 %v466
    %v781 = vunpack.c.l.b16 %v467
    %v782 = vunpack.c.h.b16 %v467
    %v783 = vunpack.c.l.b16 %v468
    %v784 = vunpack.c.h.b16 %v468
    %v785 = vunpack.c.l.b16 %v469
    %v786 = vunpack.c.h.b16 %v469
    %v787 = vunpack.c.l.b16 %v470
    %v788 = vunpack.c.h.b16 %v470
    %v789 = vunpack.c.l.b16 %v471
    %v790 = vunpack.c.h.b16 %v471
    %v791 = vunpack.c.l.b16 %v472
    %v792 = vunpack.c.h.b16 %v472
    %v793 = vunpack.c.l.b16 %v473
    %v794 = vunpack.c.h.b16 %v473
    %v795 = vunpack.c.l.b16 %v474
    %v796 = vunpack.c.h.b16 %v474
    %v797 = vunpack.c.l.b16 %v475
    %v798 = vunpack.c.h.b16 %v475
    %v799 = vunpack.c.l.b16 %v476
    %v800 = vunpack.c.h.b16 %v476
    %v801 = vunpack.c.l.b16 %v477
    %v802 = vunpack.c.h.b16 %v477
    %v803 = vunpack.c.l.b16 %v478
    %v804 = vunpack.c.h.b16 %v478
    %v805 = vunpack.c.l.b16 %v479
    %v806 = vunpack.c.h.b16 %v479
    %v807 = vunpack.c.l.b16 %v480
    %v808 = vunpack.c.h.b16 %v480
    %v809 = vunpack.c.l.b16 %v481
    %v810 = vunpack.c.h.b16 %v481
    %v811 = vunpack.c.l.b16 %v482
    %v812 = vunpack.c.h.b16 %v482
    %v813 = vunpack.c.l.b16 %v483
    %v814 = vunpack.c.h.b16 %v483
    %v815 = vunpack.c.l.b16 %v484
    %v816 = vunpack.c.h.b16 %v484
    %v817 = vunpack.c.l.b16 %v485
    %v818 = vunpack.c.h.b16 %v485
    %v819 = vunpack.c.l.b16 %v486
    %v820 = vunpack.c.h.b16 %v486
    %v821 = vunpack.c.l.b16 %v487
    %v822 = vunpack.c.h.b16 %v487
    %v823 = vunpack.c.l.b16 %v488
    %v824 = vunpack.c.h.b16 %v488
    %v825 = vunpack.c.l.b16 %v489
    %v826 = vunpack.c.h.b16 %v489
    %v827 = vunpack.c.l.b16 %v490
    %v828 = vunpack.c.h.b16 %v490
    %v829 = vunpack.c.l.b16 %v491
    %v830 = vunpack.c.h.b16 %v491
    %v831 = vunpack.c.l.b16 %v492
    %v832 = vunpack.c.h.b16 %v492
    %v833 = vunpack.c.l.b16 %v493
    %v834 = vunpack.c.h.b16 %v493
    %v835 = vunpack.c.l.b16 %v494
    %v836 = vunpack.c.h.b16 %v494
    %v837 = vunpack.c.l.b16 %v495
    %v838 = vunpack.c.h.b16 %v495
    %v839 = vunpack.c.l.b16 %v496
    %v840 = vunpack.c.h.b16 %v496
    %v841 = vunpack.c.l.b16 %v497
    %v842 = vunpack.c.h.b16 %v497
    %v843 = vunpack.c.l.b16 %v498
    %v844 = vunpack.c.h.b16 %v498
    %v845 = vunpack.c.l.b16 %v499
    %v846 = vunpack.c.h.b16 %v499
    %v847 = vunpack.c.l.b16 %v500
    %v848 = vunpack.c.h.b16 %v500
    %v849 = vunpack.c.l.b16 %v501
    %v850 = vunpack.c.h.b16 %v501
    %v851 = vunpack.c.l.b16 %v502
    %v852 = vunpack.c.h.b16 %v502
    %v853 = vunpack.c.l.b16 %v503
    %v854 = vunpack.c.h.b16 %v503
    %v855 = vunpack.c.l.b16 %v504
    %v856 = vunpack.c.h.b16 %v504
    %v857 = vunpack.c.l.b16 %v505
    %v858 = vunpack.c.h.b16 %v505
    %v859 = vunpack.c.l.b16 %v506
    %v860 = vunpack.c.h.b16 %v506
    %v861 = vunpack.c.l.b16 %v507
    %v862 = vunpack.c.h.b16 %v507
    %v863 = vunpack.c.l.b16 %v508
    %v864 = vunpack.c.h.b16 %v508
    %v865 = vunpack.c.l.b16 %v509
    %v866 = vunpack.c.h.b16 %v509
    %v867 = vunpack.c.l.b16 %v510
    %v868 = vunpack.c.h.b16 %v510
    %v869 = vunpack.c.l.b16 %v511
    %v870 = vunpack.c.h.b16 %v511
    %v871 = vunpack.c.l.b16 %v512
    %v872 = vunpack.c.h.b16 %v512
    %v873 = vunpack.c.l.b16 %v513
    %v874 = vunpack.c.h.b16 %v513
    %v875 = vunpack.c.l.b16 %v514
    %v876 = vunpack.c.h.b16 %v514
    %v877 = vunpack.c.l.b16 %v515
    %v878 = vunpack.c.h.b16 %v515
    %v879 = vunpack.c.l.b16 %v516
    %v880 = vunpack.c.h.b16 %v516
    %v881 = vunpack.c.l.b16 %v517
    %v882 = vunpack.c.h.b16 %v517
    %v883 = vunpack.c.l.b16 %v518
    %v884 = vunpack.c.h.b16 %v518
    %v885 = vunpack.c.l.b16 %v519
    %v886 = vunpack.c.h.b16 %v519
    %v887 = vunpack.c.l.b16 %v520
    %v888 = vunpack.c.h.b16 %v520
    %v889 = vunpack.c.l.b16 %v521
    %v890 = vunpack.c.h.b16 %v521
    %v891 = vunpack.c.l.b16 %v522
    %v892 = vunpack.c.h.b16 %v522
    %v893 = vunpack.c.l.b16 %v523
    %v894 = vunpack.c.h.b16 %v523
    %v895 = vunpack.c.l.b16 %v524
    %v896 = vunpack.c.h.b16 %v524
    %v897 = vunpack.c.l.b16 %v525
    %v898 = vunpack.c.h.b16 %v525
    %v899 = vunpack.c.l.b16 %v526
    %v900 = vunpack.c.h.b16 %v526
    %v901 = vunpack.c.l.b16 %v527
    %v902 = vunpack.c.h.b16 %v527
    %v903 = vunpack.c.l.b16 %v528
    %v904 = vunpack.c.h.b16 %v528
    %v905 = vunpack.c.l.b16 %v529
    %v906 = vunpack.c.h.b16 %v529
    %v907 = vunpack.c.l.b16 %v530
    %v908 = vunpack.c.h.b16 %v530
    %v909 = vunpack.c.l.b16 %v531
    %v910 = vunpack.c.h.b16 %v531
    %v911 = vunpack.c.l.b16 %v532
    %v912 = vunpack.c.h.b16 %v532
    %v913 = vunpack.c.l.b16 %v533
    %v914 = vunpack.c.h.b16 %v533
    %v915 = vunpack.c.l.b16 %v534
    %v916 = vunpack.c.h.b16 %v534
    %v917 = vunpack.c.l.b16 %v535
    %v918 = vunpack.c.h.b16 %v535
    %v919 = vunpack.c.l.b16 %v536
    %v920 = vunpack.c.h.b16 %v536
    %v921 = vunpack.c.l.b16 %v537
    %v922 = vunpack.c.h.b16 %v537
    %v923 = vunpack.c.l.b16 %v538
    %v924 = vunpack.c.h.b16 %v538
    %v925 = vunpack.c.l.b16 %v539
    %v926 = vunpack.c.h.b16 %v539
    %v927 = vunpack.c.l.b16 %v540
    %v928 = vunpack.c.h.b16 %v540
    %v929 = vunpack.c.l.b16 %v541
    %v930 = vunpack.c.h.b16 %v541
    %v931 = vunpack.c.l.b16 %v542
    %v932 = vunpack.c.h.b16 %v542
    %v933 = vunpack.c.l.b16 %v543
    %v934 = vunpack.c.h.b16 %v543
    %v935 = vunpack.c.l.b16 %v544
    %v936 = vunpack.c.h.b16 %v544
    %v937 = vunpack.c.l.b16 %v545
    %v938 = vunpack.c.h.b16 %v545
    %v939 = vunpack.c.l.b16 %v546
    %v940 = vunpack.c.h.b16 %v546
    %v941 = vunpack.c.l.b16 %v547
    %v942 = vunpack.c.h.b16 %v547
    %v943 = vunpack.c.l.b16 %v548
    %v944 = vunpack.c.h.b16 %v548
    %v945 = vunpack.c.l.b16 %v549
    %v946 = vunpack.c.h.b16 %v549
    %v947 = vunpack.c.l.b16 %v550
    %v948 = vunpack.c.h.b16 %v550
    %v949 = vunpack.c.l.b16 %v551
    %v950 = vunpack.c.h.b16 %v551
    %v951 = vunpack.c.l.b16 %v552
    %v952 = vunpack.c.h.b16 %v552
    %v953 = vunpack.c.l.b16 %v553
    %v954 = vunpack.c.h.b16 %v553
    %v955 = vunpack.c.l.b16 %v554
    %v956 = vunpack.c.h.b16 %v554
    %v957 = vunpack.c.l.b16 %v555
    %v958 = vunpack.c.h.b16 %v555
    %v959 = vunpack.c.l.b16 %v556
    %v960 = vunpack.c.h.b16 %v556
    %v961 = vunpack.c.l.b16 %v557
    %v962 = vunpack.c.h.b16 %v557
    %v963 = vunpack.c.l.b16 %v558
    %v964 = vunpack.c.h.b16 %v558
    %v965 = vunpack.c.l.b16 %v559
    %v966 = vunpack.c.h.b16 %v559
    %v967 = vpack.c.b16 %v715, %v711
    %v968 = vpack.c.b16 %v716, %v712
    %v969 = vpack.c.b16 %v717, %v713
    %v970 = vpack.c.b16 %v718, %v714
    %v971 = vpack.c.b16 %v723, %v719
    %v972 = vpack.c.b16 %v724, %v720
    %v973 = vpack.c.b16 %v725, %v721
    %v974 = vpack.c.b16 %v726, %v722
    %v975 = vpack.c.b16 %v731, %v727
    %v976 = vpack.c.b16 %v732, %v728
    %v977 = vpack.c.b16 %v733, %v729
    %v978 = vpack.c.b16 %v734, %v730
    %v979 = vpack.c.b16 %v739, %v735
    %v980 = vpack.c.b16 %v740, %v736
    %v981 = vpack.c.b16 %v741, %v737
    %v982 = vpack.c.b16 %v742, %v738
    %v983 = vpack.c.b16 %v747, %v743
    %v984 = vpack.c.b16 %v748, %v744
    %v985 = vpack.c.b16 %v749, %v745
    %v986 = vpack.c.b16 %v750, %v746
    %v987 = vpack.c.b16 %v755, %v751
    %v988 = vpack.c.b16 %v756, %v752
    %v989 = vpack.c.b16 %v757, %v753
    %v990 = vpack.c.b16 %v758, %v754
    %v991 = vpack.c.b16 %v763, %v759
    %v992 = vpack.c.b16 %v764, %v760
    %v993 = vpack.c.b16 %v765, %v761
    %v994 = vpack.c.b16 %v766, %v762
    %v995 = vpack.c.b16 %v771, %v767
    %v996 = vpack.c.b16 %v772, %v768
    %v997 = vpack.c.b16 %v773, %v769
    %v998 = vpack.c.b16 %v774, %v770
    %v999 = vpack.c.b16 %v779, %v775
    %v1000 = vpack.c.b16 %v780, %v776
    %v1001 = vpack.c.b16 %v781, %v777
    %v1002 = vpack.c.b16 %v782, %v778
    %v1003 = vpack.c.b16 %v787, %v783
    %v1004 = vpack.c.b16 %v788, %v784
    %v1005 = vpack.c.b16 %v789, %v785
    %v1006 = vpack.c.b16 %v790, %v786
    %v1007 = vpack.c.b16 %v795, %v791
    %v1008 = vpack.c.b16 %v796, %v792
    %v1009 = vpack.c.b16 %v797, %v793
    %v1010 = vpack.c.b16 %v798, %v794
    %v1011 = vpack.c.b16 %v803, %v799
    %v1012 = vpack.c.b16 %v804, %v800
    %v1013 = vpack.c.b16 %v805, %v801
    %v1014 = vpack.c.b16 %v806, %v802
    %v1015 = vpack.c.b16 %v811, %v807
    %v1016 = vpack.c.b16 %v812, %v808
    %v1017 = vpack.c.b16 %v813, %v809
    %v1018 = vpack.c.b16 %v814, %v810
    %v1019 = vpack.c.b16 %v819, %v815
    %v1020 = vpack.c.b16 %v820, %v816
    %v1021 = vpack.c.b16 %v821, %v817
    %v1022 = vpack.c.b16 %v822, %v818
    %v1023 = vpack.c.b16 %v827, %v823
    %v1024 = vpack.c.b16 %v828, %v824
    %v1025 = vpack.c.b16 %v829, %v825
    %v1026 = vpack.c.b16 %v830, %v826
    %v1027 = vpack.c.b16 %v835, %v831
    %v1028 = vpack.c.b16 %v836, %v832
    %v1029 = vpack.c.b16 %v837, %v833
    %v1030 = vpack.c.b16 %v838, %v834
    %v1031 = vpack.c.b16 %v843, %v839
    %v1032 = vpack.c.b16 %v844, %v840
    %v1033 = vpack.c.b16 %v845, %v841
    %v1034 = vpack.c.b16 %v846, %v842
    %v1035 = vpack.c.b16 %v851, %v847
    %v1036 = vpack.c.b16 %v852, %v848
    %v1037 = vpack.c.b16 %v853, %v849
    %v1038 = vpack.c.b16 %v854, %v850
    %v1039 = vpack.c.b16 %v859, %v855
    %v1040 = vpack.c.b16 %v860, %v856
    %v1041 = vpack.c.b16 %v861, %v857
    %v1042 = vpack.c.b16 %v862, %v858
    %v1043 = vpack.c.b16 %v867, %v863
    %v1044 = vpack.c.b16 %v868, %v864
    %v1045 = vpack.c.b16 %v869, %v865
    %v1046 = vpack.c.b16 %v870, %v866
    %v1047 = vpack.c.b16 %v875, %v871
    %v1048 = vpack.c.b16 %v876, %v872
    %v1049 = vpack.c.b16 %v877, %v873
    %v1050 = vpack.c.b16 %v878, %v874
    %v1051 = vpack.c.b16 %v883, %v879
    %v1052 = vpack.c.b16 %v884, %v880
    %v1053 = vpack.c.b16 %v885, %v881
    %v1054 = vpack.c.b16 %v886, %v882
    %v1055 = vpack.c.b16 %v891, %v887
    %v1056 = vpack.c.b16 %v892, %v888
    %v1057 = vpack.c.b16 %v893, %v889
    %v1058 = vpack.c.b16 %v894, %v890
    %v1059 = vpack.c.b16 %v899, %v895
    %v1060 = vpack.c.b16 %v900, %v896
    %v1061 = vpack.c.b16 %v901, %v897
    %v1062 = vpack.c.b16 %v902, %v898
    %v1063 = vpack.c.b16 %v907, %v903
    %v1064 = vpack.c.b16 %v908, %v904
    %v1065 = vpack.c.b16 %v909, %v905
    %v1066 = vpack.c.b16 %v910, %v906
    %v1067 = vpack.c.b16 %v915, %v911
    %v1068 = vpack.c.b16 %v916, %v912
    %v1069 = vpack.c.b16 %v917, %v913
    %v1070 = vpack.c.b16 %v918, %v914
    %v1071 = vpack.c.b16 %v923, %v919
    %v1072 = vpack.c.b16 %v924, %v920
    %v1073 = vpack.c.b16 %v925, %v921
    %v1074 = vpack.c.b16 %v926, %v922
    %v1075 = vpack.c.b16 %v931, %v927
    %v1076 = vpack.c.b16 %v932, %v928
    %v1077 = vpack.c.b16 %v933, %v929
    %v1078 = vpack.c.b16 %v934, %v930
    %v1079 = vpack.c.b16 %v939, %v935
    %v1080 = vpack.c.b16 %v940, %v936
    %v1081 = vpack.c.b16 %v941, %v937
    %v1082 = vpack.c.b16 %v942, %v938
    %v1083 = vpack.c.b16 %v947, %v943
    %v1084 = vpack.c.b16 %v948, %v944
    %v1085 = vpack.c.b16 %v949, %v945
    %v1086 = vpack.c.b16 %v950, %v946
    %v1087 = vpack.c.b16 %v955, %v951
    %v1088 = vpack.c.b16 %v956, %v952
    %v1089 = vpack.c.b16 %v957, %v953
    %v1090 = vpack.c.b16 %v958, %v954
    %v1091 = vpack.c.b16 %v963, %v959
    %v1092 = vpack.c.b16 %v964, %v960
    %v1093 = vpack.c.b16 %v965, %v961
    %v1094 = vpack.c.b16 %v966, %v962
    %1223 = vmatprep.subr.bf16.mxu0 %v968
    %1224 = vmatpush1.bf16.msra.mxu0 %v967
    %1225 = vmatprep.subr.bf16.mxu0 %v972
    %1226 = vmatpush1.bf16.msra.mxu0 %v971
    %1227 = vmatprep.subr.bf16.mxu0 %v976
    %1228 = vmatpush1.bf16.msra.mxu0 %v975
    %1229 = vmatprep.subr.bf16.mxu0 %v980
    %1230 = vmatpush1.bf16.msra.mxu0 %v979
    %1231 = vmatprep.subr.bf16.mxu0 %v984
    %1232 = vmatpush1.bf16.msra.mxu0 %v983
    %1233 = vmatprep.subr.bf16.mxu0 %v988
    %1234 = vmatpush1.bf16.msra.mxu0 %v987
    %1235 = vmatprep.subr.bf16.mxu0 %v992
    %1236 = vmatpush1.bf16.msra.mxu0 %v991
    %1237 = vmatprep.subr.bf16.mxu0 %v996
    %1238 = vmatpush1.bf16.msra.mxu0 %v995
    %1239 = vmatprep.subr.bf16.mxu0 %v1000
    %1240 = vmatpush1.bf16.msra.mxu0 %v999
    %1241 = vmatprep.subr.bf16.mxu0 %v1004
    %1242 = vmatpush1.bf16.msra.mxu0 %v1003
    %1243 = vmatprep.subr.bf16.mxu0 %v1008
    %1244 = vmatpush1.bf16.msra.mxu0 %v1007
    %1245 = vmatprep.subr.bf16.mxu0 %v1012
    %1246 = vmatpush1.bf16.msra.mxu0 %v1011
    %1247 = vmatprep.subr.bf16.mxu0 %v1016
    %1248 = vmatpush1.bf16.msra.mxu0 %v1015
    %1249 = vmatprep.subr.bf16.mxu0 %v1020
    %1250 = vmatpush1.bf16.msra.mxu0 %v1019
    %1251 = vmatprep.subr.bf16.mxu0 %v1024
    %1252 = vmatpush1.bf16.msra.mxu0 %v1023
    %1253 = vmatprep.subr.bf16.mxu0 %v1028
    %1254 = vmatpush1.bf16.msra.mxu0 %v1027
    %1255 = vmatprep.mubr.bf16.mxu0 %v429
    %1256 = vmatmul.mubr.bf16.gmra.mrb[0].mxu0 %v428
    %v1257 = vpop.f32.mrb[0].mxu0
    %v1258 = vadd.f32 %v566, %v1257
    %v1259 = vpop.f32.mrb[0].mxu0
    %v1260 = vadd.f32 %v570, %v1259
    %v1261 = vpop.f32.mrb[0].mxu0
    %v1262 = vadd.f32 %v566, %v1261
    %v1263 = vpop.f32.mrb[0].mxu0
    %v1264 = vadd.f32 %v570, %v1263
    %1265 = vdwg.mxu0
    %1266 = vmatprep.subr.bf16.mxu0 %v1032
    %1267 = vmatpush1.bf16.msra.mxu0 %v1031
    %1268 = vmatprep.subr.bf16.mxu0 %v1036
    %1269 = vmatpush1.bf16.msra.mxu0 %v1035
    %1270 = vmatprep.subr.bf16.mxu0 %v1040
    %1271 = vmatpush1.bf16.msra.mxu0 %v1039
    %1272 = vmatprep.subr.bf16.mxu0 %v1044
    %1273 = vmatpush1.bf16.msra.mxu0 %v1043
    %1274 = vmatprep.subr.bf16.mxu0 %v1048
    %1275 = vmatpush1.bf16.msra.mxu0 %v1047
    %1276 = vmatprep.subr.bf16.mxu0 %v1052
    %1277 = vmatpush1.bf16.msra.mxu0 %v1051
    %1278 = vmatprep.subr.bf16.mxu0 %v1056
    %1279 = vmatpush1.bf16.msra.mxu0 %v1055
    %1280 = vmatprep.subr.bf16.mxu0 %v1060
    %1281 = vmatpush1.bf16.msra.mxu0 %v1059
    %1282 = vmatprep.subr.bf16.mxu0 %v1064
    %1283 = vmatpush1.bf16.msra.mxu0 %v1063
    %1284 = vmatprep.subr.bf16.mxu0 %v1068
    %1285 = vmatpush1.bf16.msra.mxu0 %v1067
    %1286 = vmatprep.subr.bf16.mxu0 %v1072
    %1287 = vmatpush1.bf16.msra.mxu0 %v1071
    %1288 = vmatprep.subr.bf16.mxu0 %v1076
    %1289 = vmatpush1.bf16.msra.mxu0 %v1075
    %1290 = vmatprep.subr.bf16.mxu0 %v1080
    %1291 = vmatpush1.bf16.msra.mxu0 %v1079
    %1292 = vmatprep.subr.bf16.mxu0 %v1084
    %1293 = vmatpush1.bf16.msra.mxu0 %v1083
    %1294 = vmatprep.subr.bf16.mxu0 %v1088
    %1295 = vmatpush1.bf16.msra.mxu0 %v1087
    %1296 = vmatprep.subr.bf16.mxu0 %v1092
    %1297 = vmatpush1.bf16.msra.mxu0 %v1091
    %1298 = vmatprep.mubr.bf16.mxu0 %v431
    %1299 = vmatmul.mubr.bf16.gmra.mrb[0].mxu0 %v430
    %v1300 = vpop.f32.mrb[0].mxu0
    %v1301 = vadd.f32 %v1258, %v1300
    %v1302 = vpop.f32.mrb[0].mxu0
    %v1303 = vadd.f32 %v1260, %v1302
    %v1304 = vpop.f32.mrb[0].mxu0
    %v1305 = vadd.f32 %v1262, %v1304
    %v1306 = vpop.f32.mrb[0].mxu0
    %v1307 = vadd.f32 %v1264, %v1306
    %1308 = vdwg.mxu0
    %1309 = vmatprep.subr.bf16.mxu0 %v970
    %1310 = vmatpush1.bf16.msra.mxu0 %v969
    %1311 = vmatprep.subr.bf16.mxu0 %v974
    %1312 = vmatpush1.bf16.msra.mxu0 %v973
    %1313 = vmatprep.subr.bf16.mxu0 %v978
    %1314 = vmatpush1.bf16.msra.mxu0 %v977
    %1315 = vmatprep.subr.bf16.mxu0 %v982
    %1316 = vmatpush1.bf16.msra.mxu0 %v981
    %1317 = vmatprep.subr.bf16.mxu0 %v986
    %1318 = vmatpush1.bf16.msra.mxu0 %v985
    %1319 = vmatprep.subr.bf16.mxu0 %v990
    %1320 = vmatpush1.bf16.msra.mxu0 %v989
    %1321 = vmatprep.subr.bf16.mxu0 %v994
    %1322 = vmatpush1.bf16.msra.mxu0 %v993
    %1323 = vmatprep.subr.bf16.mxu0 %v998
    %1324 = vmatpush1.bf16.msra.mxu0 %v997
    %1325 = vmatprep.subr.bf16.mxu0 %v1002
    %1326 = vmatpush1.bf16.msra.mxu0 %v1001
    %1327 = vmatprep.subr.bf16.mxu0 %v1006
    %1328 = vmatpush1.bf16.msra.mxu0 %v1005
    %1329 = vmatprep.subr.bf16.mxu0 %v1010
    %1330 = vmatpush1.bf16.msra.mxu0 %v1009
    %1331 = vmatprep.subr.bf16.mxu0 %v1014
    %1332 = vmatpush1.bf16.msra.mxu0 %v1013
    %1333 = vmatprep.subr.bf16.mxu0 %v1018
    %1334 = vmatpush1.bf16.msra.mxu0 %v1017
    %1335 = vmatprep.subr.bf16.mxu0 %v1022
    %1336 = vmatpush1.bf16.msra.mxu0 %v1021
    %1337 = vmatprep.subr.bf16.mxu0 %v1026
    %1338 = vmatpush1.bf16.msra.mxu0 %v1025
    %1339 = vmatprep.subr.bf16.mxu0 %v1030
    %1340 = vmatpush1.bf16.msra.mxu0 %v1029
    %1341 = vmatprep.mubr.bf16.mxu0 %v429
    %1342 = vmatmul.mubr.bf16.gmra.mrb[0].mxu0 %v428
    %v1343 = vpop.f32.mrb[0].mxu0
    %v1344 = vadd.f32 %v574, %v1343
    %v1345 = vpop.f32.mrb[0].mxu0
    %v1346 = vadd.f32 %v578, %v1345
    %v1347 = vpop.f32.mrb[0].mxu0
    %v1348 = vadd.f32 %v574, %v1347
    %v1349 = vpop.f32.mrb[0].mxu0
    %v1350 = vadd.f32 %v578, %v1349
    %1351 = vdwg.mxu0
    %1352 = vmatprep.subr.bf16.mxu0 %v1034
    %1353 = vmatpush1.bf16.msra.mxu0 %v1033
    %1354 = vmatprep.subr.bf16.mxu0 %v1038
    %1355 = vmatpush1.bf16.msra.mxu0 %v1037
    %1356 = vmatprep.subr.bf16.mxu0 %v1042
    %1357 = vmatpush1.bf16.msra.mxu0 %v1041
    %1358 = vmatprep.subr.bf16.mxu0 %v1046
    %1359 = vmatpush1.bf16.msra.mxu0 %v1045
    %1360 = vmatprep.subr.bf16.mxu0 %v1050
    %1361 = vmatpush1.bf16.msra.mxu0 %v1049
    %1362 = vmatprep.subr.bf16.mxu0 %v1054
    %1363 = vmatpush1.bf16.msra.mxu0 %v1053
    %1364 = vmatprep.subr.bf16.mxu0 %v1058
    %1365 = vmatpush1.bf16.msra.mxu0 %v1057
    %1366 = vmatprep.subr.bf16.mxu0 %v1062
    %1367 = vmatpush1.bf16.msra.mxu0 %v1061
    %1368 = vmatprep.subr.bf16.mxu0 %v1066
    %1369 = vmatpush1.bf16.msra.mxu0 %v1065
    %1370 = vmatprep.subr.bf16.mxu0 %v1070
    %1371 = vmatpush1.bf16.msra.mxu0 %v1069
    %1372 = vmatprep.subr.bf16.mxu0 %v1074
    %1373 = vmatpush1.bf16.msra.mxu0 %v1073
    %1374 = vmatprep.subr.bf16.mxu0 %v1078
    %1375 = vmatpush1.bf16.msra.mxu0 %v1077
    %1376 = vmatprep.subr.bf16.mxu0 %v1082
    %1377 = vmatpush1.bf16.msra.mxu0 %v1081
    %1378 = vmatprep.subr.bf16.mxu0 %v1086
    %1379 = vmatpush1.bf16.msra.mxu0 %v1085
    %1380 = vmatprep.subr.bf16.mxu0 %v1090
    %1381 = vmatpush1.bf16.msra.mxu0 %v1089
    %1382 = vmatprep.subr.bf16.mxu0 %v1094
    %1383 = vmatpush1.bf16.msra.mxu0 %v1093
    %1384 = vmatprep.mubr.bf16.mxu0 %v431
    %1385 = vmatmul.mubr.bf16.gmra.mrb[0].mxu0 %v430
    %v1386 = vpop.f32.mrb[0].mxu0
    %v1387 = vadd.f32 %v1344, %v1386
    %v1388 = vpop.f32.mrb[0].mxu0
    %v1389 = vadd.f32 %v1346, %v1388
    %v1390 = vpop.f32.mrb[0].mxu0
    %v1391 = vadd.f32 %v1348, %v1390
    %v1392 = vpop.f32.mrb[0].mxu0
    %v1393 = vadd.f32 %v1350, %v1392
    %1394 = vdwg.mxu0
    %v1395 = vmax.f32 %v1301, 0.0
    %v1396 = vmax.f32 %v1303, 0.0
    %v1397 = vmax.f32 %v1387, 0.0
    %v1398 = vmax.f32 %v1389, 0.0
    %v1399 = vmax.f32 %v1305, 0.0
    %v1400 = vmax.f32 %v1307, 0.0
    %v1401 = vmax.f32 %v1391, 0.0
    %v1402 = vmax.f32 %v1393, 0.0
    %v1403 = vpack.c.bf16 %v1399, %v1395
    %v1404 = vpack.c.bf16 %v1400, %v1396
    %v1405 = vpack.c.bf16 %v1401, %v1397
    %v1406 = vpack.c.bf16 %v1402, %v1398
    %v1407 = vld [vmem:[#allocation6] sm:$0xff]
    %v1408 = vld [vmem:[#allocation6 + $0x8] sm:$0xff]
    %v1409 = vld [vmem:[#allocation6 + $0x10] sm:$0xff]
    %v1410 = vld [vmem:[#allocation6 + $0x18] sm:$0xff]
    %v1411 = vld [vmem:[#allocation6 + $0x20] sm:$0xff]
    %v1412 = vld [vmem:[#allocation6 + $0x28] sm:$0xff]
    %v1413 = vld [vmem:[#allocation6 + $0x30] sm:$0xff]
    %v1414 = vld [vmem:[#allocation6 + $0x38] sm:$0xff]
    %v1415 = vld [vmem:[#allocation6 + $0x40] sm:$0xff]
    %v1416 = vld [vmem:[#allocation6 + $0x48] sm:$0xff]
    %v1417 = vld [vmem:[#allocation6 + $0x50] sm:$0xff]
    %v1418 = vld [vmem:[#allocation6 + $0x58] sm:$0xff]
    %v1419 = vld [vmem:[#allocation6 + $0x60] sm:$0xff]
    %v1420 = vld [vmem:[#allocation6 + $0x68] sm:$0xff]
    %v1421 = vld [vmem:[#allocation6 + $0x70] sm:$0xff]
    %v1422 = vld [vmem:[#allocation6 + $0x78] sm:$0xff]
    %v1423 = vld [vmem:[#allocation6 + $0x80] sm:$0xff]
    %v1424 = vld [vmem:[#allocation6 + $0x88] sm:$0xff]
    %v1425 = vld [vmem:[#allocation6 + $0x90] sm:$0xff]
    %v1426 = vld [vmem:[#allocation6 + $0x98] sm:$0xff]
    %v1427 = vld [vmem:[#allocation6 + $0xa0] sm:$0xff]
    %v1428 = vld [vmem:[#allocation6 + $0xa8] sm:$0xff]
    %v1429 = vld [vmem:[#allocation6 + $0xb0] sm:$0xff]
    %v1430 = vld [vmem:[#allocation6 + $0xb8] sm:$0xff]
    %v1431 = vld [vmem:[#allocation6 + $0xc0] sm:$0xff]
    %v1432 = vld [vmem:[#allocation6 + $0xc8] sm:$0xff]
    %v1433 = vld [vmem:[#allocation6 + $0xd0] sm:$0xff]
    %v1434 = vld [vmem:[#allocation6 + $0xd8] sm:$0xff]
    %v1435 = vld [vmem:[#allocation6 + $0xe0] sm:$0xff]
    %v1436 = vld [vmem:[#allocation6 + $0xe8] sm:$0xff]
    %v1437 = vld [vmem:[#allocation6 + $0xf0] sm:$0xff]
    %v1438 = vld [vmem:[#allocation6 + $0xf8] sm:$0xff]
    %v1439 = vld [vmem:[#allocation6 + $0x100] sm:$0xff]
    %v1440 = vld [vmem:[#allocation6 + $0x108] sm:$0xff]
    %v1441 = vld [vmem:[#allocation6 + $0x110] sm:$0xff]
    %v1442 = vld [vmem:[#allocation6 + $0x118] sm:$0xff]
    %v1443 = vld [vmem:[#allocation6 + $0x120] sm:$0xff]
    %v1444 = vld [vmem:[#allocation6 + $0x128] sm:$0xff]
    %v1445 = vld [vmem:[#allocation6 + $0x130] sm:$0xff]
    %v1446 = vld [vmem:[#allocation6 + $0x138] sm:$0xff]
    %v1447 = vld [vmem:[#allocation6 + $0x140] sm:$0xff]
    %v1448 = vld [vmem:[#allocation6 + $0x148] sm:$0xff]
    %v1449 = vld [vmem:[#allocation6 + $0x150] sm:$0xff]
    %v1450 = vld [vmem:[#allocation6 + $0x158] sm:$0xff]
    %v1451 = vld [vmem:[#allocation6 + $0x160] sm:$0xff]
    %v1452 = vld [vmem:[#allocation6 + $0x168] sm:$0xff]
    %v1453 = vld [vmem:[#allocation6 + $0x170] sm:$0xff]
    %v1454 = vld [vmem:[#allocation6 + $0x178] sm:$0xff]
    %v1455 = vld [vmem:[#allocation6 + $0x180] sm:$0xff]
    %v1456 = vld [vmem:[#allocation6 + $0x188] sm:$0xff]
    %v1457 = vld [vmem:[#allocation6 + $0x190] sm:$0xff]
    %v1458 = vld [vmem:[#allocation6 + $0x198] sm:$0xff]
    %v1459 = vld [vmem:[#allocation6 + $0x1a0] sm:$0xff]
    %v1460 = vld [vmem:[#allocation6 + $0x1a8] sm:$0xff]
    %v1461 = vld [vmem:[#allocation6 + $0x1b0] sm:$0xff]
    %v1462 = vld [vmem:[#allocation6 + $0x1b8] sm:$0xff]
    %v1463 = vld [vmem:[#allocation6 + $0x1c0] sm:$0xff]
    %v1464 = vld [vmem:[#allocation6 + $0x1c8] sm:$0xff]
    %v1465 = vld [vmem:[#allocation6 + $0x1d0] sm:$0xff]
    %v1466 = vld [vmem:[#allocation6 + $0x1d8] sm:$0xff]
    %v1467 = vld [vmem:[#allocation6 + $0x1e0] sm:$0xff]
    %v1468 = vld [vmem:[#allocation6 + $0x1e8] sm:$0xff]
    %v1469 = vld [vmem:[#allocation6 + $0x1f0] sm:$0xff]
    %v1470 = vld [vmem:[#allocation6 + $0x1f8] sm:$0xff]
    %v1471 = vld [vmem:[#allocation6 + $0x200] sm:$0xff]
    %v1472 = vld [vmem:[#allocation6 + $0x208] sm:$0xff]
    %v1473 = vld [vmem:[#allocation6 + $0x210] sm:$0xff]
    %v1474 = vld [vmem:[#allocation6 + $0x218] sm:$0xff]
    %v1475 = vld [vmem:[#allocation6 + $0x220] sm:$0xff]
    %v1476 = vld [vmem:[#allocation6 + $0x228] sm:$0xff]
    %v1477 = vld [vmem:[#allocation6 + $0x230] sm:$0xff]
    %v1478 = vld [vmem:[#allocation6 + $0x238] sm:$0xff]
    %v1479 = vld [vmem:[#allocation6 + $0x240] sm:$0xff]
    %v1480 = vld [vmem:[#allocation6 + $0x248] sm:$0xff]
    %v1481 = vld [vmem:[#allocation6 + $0x250] sm:$0xff]
    %v1482 = vld [vmem:[#allocation6 + $0x258] sm:$0xff]
    %v1483 = vld [vmem:[#allocation6 + $0x260] sm:$0xff]
    %v1484 = vld [vmem:[#allocation6 + $0x268] sm:$0xff]
    %v1485 = vld [vmem:[#allocation6 + $0x270] sm:$0xff]
    %v1486 = vld [vmem:[#allocation6 + $0x278] sm:$0xff]
    %v1487 = vld [vmem:[#allocation6 + $0x280] sm:$0xff]
    %v1488 = vld [vmem:[#allocation6 + $0x288] sm:$0xff]
    %v1489 = vld [vmem:[#allocation6 + $0x290] sm:$0xff]
    %v1490 = vld [vmem:[#allocation6 + $0x298] sm:$0xff]
    %v1491 = vld [vmem:[#allocation6 + $0x2a0] sm:$0xff]
    %v1492 = vld [vmem:[#allocation6 + $0x2a8] sm:$0xff]
    %v1493 = vld [vmem:[#allocation6 + $0x2b0] sm:$0xff]
    %v1494 = vld [vmem:[#allocation6 + $0x2b8] sm:$0xff]
    %v1495 = vld [vmem:[#allocation6 + $0x2c0] sm:$0xff]
    %v1496 = vld [vmem:[#allocation6 + $0x2c8] sm:$0xff]
    %v1497 = vld [vmem:[#allocation6 + $0x2d0] sm:$0xff]
    %v1498 = vld [vmem:[#allocation6 + $0x2d8] sm:$0xff]
    %v1499 = vld [vmem:[#allocation6 + $0x2e0] sm:$0xff]
    %v1500 = vld [vmem:[#allocation6 + $0x2e8] sm:$0xff]
    %v1501 = vld [vmem:[#allocation6 + $0x2f0] sm:$0xff]
    %v1502 = vld [vmem:[#allocation6 + $0x2f8] sm:$0xff]
    %v1503 = vld [vmem:[#allocation6 + $0x300] sm:$0xff]
    %v1504 = vld [vmem:[#allocation6 + $0x308] sm:$0xff]
    %v1505 = vld [vmem:[#allocation6 + $0x310] sm:$0xff]
    %v1506 = vld [vmem:[#allocation6 + $0x318] sm:$0xff]
    %v1507 = vld [vmem:[#allocation6 + $0x320] sm:$0xff]
    %v1508 = vld [vmem:[#allocation6 + $0x328] sm:$0xff]
    %v1509 = vld [vmem:[#allocation6 + $0x330] sm:$0xff]
    %v1510 = vld [vmem:[#allocation6 + $0x338] sm:$0xff]
    %v1511 = vld [vmem:[#allocation6 + $0x340] sm:$0xff]
    %v1512 = vld [vmem:[#allocation6 + $0x348] sm:$0xff]
    %v1513 = vld [vmem:[#allocation6 + $0x350] sm:$0xff]
    %v1514 = vld [vmem:[#allocation6 + $0x358] sm:$0xff]
    %v1515 = vld [vmem:[#allocation6 + $0x360] sm:$0xff]
    %v1516 = vld [vmem:[#allocation6 + $0x368] sm:$0xff]
    %v1517 = vld [vmem:[#allocation6 + $0x370] sm:$0xff]
    %v1518 = vld [vmem:[#allocation6 + $0x378] sm:$0xff]
    %v1519 = vld [vmem:[#allocation6 + $0x380] sm:$0xff]
    %v1520 = vld [vmem:[#allocation6 + $0x388] sm:$0xff]
    %v1521 = vld [vmem:[#allocation6 + $0x390] sm:$0xff]
    %v1522 = vld [vmem:[#allocation6 + $0x398] sm:$0xff]
    %v1523 = vld [vmem:[#allocation6 + $0x3a0] sm:$0xff]
    %v1524 = vld [vmem:[#allocation6 + $0x3a8] sm:$0xff]
    %v1525 = vld [vmem:[#allocation6 + $0x3b0] sm:$0xff]
    %v1526 = vld [vmem:[#allocation6 + $0x3b8] sm:$0xff]
    %v1527 = vld [vmem:[#allocation6 + $0x3c0] sm:$0xff]
    %v1528 = vld [vmem:[#allocation6 + $0x3c8] sm:$0xff]
    %v1529 = vld [vmem:[#allocation6 + $0x3d0] sm:$0xff]
    %v1530 = vld [vmem:[#allocation6 + $0x3d8] sm:$0xff]
    %v1531 = vld [vmem:[#allocation6 + $0x3e0] sm:$0xff]
    %v1532 = vld [vmem:[#allocation6 + $0x3e8] sm:$0xff]
    %v1533 = vld [vmem:[#allocation6 + $0x3f0] sm:$0xff]
    %v1534 = vld [vmem:[#allocation6 + $0x3f8] sm:$0xff]
    %s1535 = scalar_lea.vmem %s7, 2
    %v1536 = vld [vmem:[%s1535] ss:$8 sm:$0xf]
    %v1538 = vlaneseq
    %v1539 = vshrl.u32 %v1538, 7
    %v1540 = vsub.s32 0, %v1539
    %v1541 = vrot.slane %v1536, %v1540
    %v1542 = vlaneseq
    %v1543 = vshrl.u32 %v1542, 7
    %v1544 = vsub.s32 1, %v1543
    %v1545 = vrot.slane %v1536, %v1544
    %v1546 = vlaneseq
    %v1547 = vshrl.u32 %v1546, 7
    %v1548 = vsub.s32 2, %v1547
    %v1549 = vrot.slane %v1536, %v1548
    %v1550 = vlaneseq
    %v1551 = vshrl.u32 %v1550, 7
    %v1552 = vsub.s32 3, %v1551
    %v1553 = vrot.slane %v1536, %v1552
    %v1686 = vunpack.c.l.b16 %v1407
    %v1687 = vunpack.c.h.b16 %v1407
    %v1688 = vunpack.c.l.b16 %v1408
    %v1689 = vunpack.c.h.b16 %v1408
    %v1690 = vunpack.c.l.b16 %v1409
    %v1691 = vunpack.c.h.b16 %v1409
    %v1692 = vunpack.c.l.b16 %v1410
    %v1693 = vunpack.c.h.b16 %v1410
    %v1694 = vunpack.c.l.b16 %v1411
    %v1695 = vunpack.c.h.b16 %v1411
    %v1696 = vunpack.c.l.b16 %v1412
    %v1697 = vunpack.c.h.b16 %v1412
    %v1698 = vunpack.c.l.b16 %v1413
    %v1699 = vunpack.c.h.b16 %v1413
    %v1700 = vunpack.c.l.b16 %v1414
    %v1701 = vunpack.c.h.b16 %v1414
    %v1702 = vunpack.c.l.b16 %v1415
    %v1703 = vunpack.c.h.b16 %v1415
    %v1704 = vunpack.c.l.b16 %v1416
    %v1705 = vunpack.c.h.b16 %v1416
    %v1706 = vunpack.c.l.b16 %v1417
    %v1707 = vunpack.c.h.b16 %v1417
    %v1708 = vunpack.c.l.b16 %v1418
    %v1709 = vunpack.c.h.b16 %v1418
    %v1710 = vunpack.c.l.b16 %v1419
    %v1711 = vunpack.c.h.b16 %v1419
    %v1712 = vunpack.c.l.b16 %v1420
    %v1713 = vunpack.c.h.b16 %v1420
    %v1714 = vunpack.c.l.b16 %v1421
    %v1715 = vunpack.c.h.b16 %v1421
    %v1716 = vunpack.c.l.b16 %v1422
    %v1717 = vunpack.c.h.b16 %v1422
    %v1718 = vunpack.c.l.b16 %v1423
    %v1719 = vunpack.c.h.b16 %v1423
    %v1720 = vunpack.c.l.b16 %v1424
    %v1721 = vunpack.c.h.b16 %v1424
    %v1722 = vunpack.c.l.b16 %v1425
    %v1723 = vunpack.c.h.b16 %v1425
    %v1724 = vunpack.c.l.b16 %v1426
    %v1725 = vunpack.c.h.b16 %v1426
    %v1726 = vunpack.c.l.b16 %v1427
    %v1727 = vunpack.c.h.b16 %v1427
    %v1728 = vunpack.c.l.b16 %v1428
    %v1729 = vunpack.c.h.b16 %v1428
    %v1730 = vunpack.c.l.b16 %v1429
    %v1731 = vunpack.c.h.b16 %v1429
    %v1732 = vunpack.c.l.b16 %v1430
    %v1733 = vunpack.c.h.b16 %v1430
    %v1734 = vunpack.c.l.b16 %v1431
    %v1735 = vunpack.c.h.b16 %v1431
    %v1736 = vunpack.c.l.b16 %v1432
    %v1737 = vunpack.c.h.b16 %v1432
    %v1738 = vunpack.c.l.b16 %v1433
    %v1739 = vunpack.c.h.b16 %v1433
    %v1740 = vunpack.c.l.b16 %v1434
    %v1741 = vunpack.c.h.b16 %v1434
    %v1742 = vunpack.c.l.b16 %v1435
    %v1743 = vunpack.c.h.b16 %v1435
    %v1744 = vunpack.c.l.b16 %v1436
    %v1745 = vunpack.c.h.b16 %v1436
    %v1746 = vunpack.c.l.b16 %v1437
    %v1747 = vunpack.c.h.b16 %v1437
    %v1748 = vunpack.c.l.b16 %v1438
    %v1749 = vunpack.c.h.b16 %v1438
    %v1750 = vunpack.c.l.b16 %v1439
    %v1751 = vunpack.c.h.b16 %v1439
    %v1752 = vunpack.c.l.b16 %v1440
    %v1753 = vunpack.c.h.b16 %v1440
    %v1754 = vunpack.c.l.b16 %v1441
    %v1755 = vunpack.c.h.b16 %v1441
    %v1756 = vunpack.c.l.b16 %v1442
    %v1757 = vunpack.c.h.b16 %v1442
    %v1758 = vunpack.c.l.b16 %v1443
    %v1759 = vunpack.c.h.b16 %v1443
    %v1760 = vunpack.c.l.b16 %v1444
    %v1761 = vunpack.c.h.b16 %v1444
    %v1762 = vunpack.c.l.b16 %v1445
    %v1763 = vunpack.c.h.b16 %v1445
    %v1764 = vunpack.c.l.b16 %v1446
    %v1765 = vunpack.c.h.b16 %v1446
    %v1766 = vunpack.c.l.b16 %v1447
    %v1767 = vunpack.c.h.b16 %v1447
    %v1768 = vunpack.c.l.b16 %v1448
    %v1769 = vunpack.c.h.b16 %v1448
    %v1770 = vunpack.c.l.b16 %v1449
    %v1771 = vunpack.c.h.b16 %v1449
    %v1772 = vunpack.c.l.b16 %v1450
    %v1773 = vunpack.c.h.b16 %v1450
    %v1774 = vunpack.c.l.b16 %v1451
    %v1775 = vunpack.c.h.b16 %v1451
    %v1776 = vunpack.c.l.b16 %v1452
    %v1777 = vunpack.c.h.b16 %v1452
    %v1778 = vunpack.c.l.b16 %v1453
    %v1779 = vunpack.c.h.b16 %v1453
    %v1780 = vunpack.c.l.b16 %v1454
    %v1781 = vunpack.c.h.b16 %v1454
    %v1782 = vunpack.c.l.b16 %v1455
    %v1783 = vunpack.c.h.b16 %v1455
    %v1784 = vunpack.c.l.b16 %v1456
    %v1785 = vunpack.c.h.b16 %v1456
    %v1786 = vunpack.c.l.b16 %v1457
    %v1787 = vunpack.c.h.b16 %v1457
    %v1788 = vunpack.c.l.b16 %v1458
    %v1789 = vunpack.c.h.b16 %v1458
    %v1790 = vunpack.c.l.b16 %v1459
    %v1791 = vunpack.c.h.b16 %v1459
    %v1792 = vunpack.c.l.b16 %v1460
    %v1793 = vunpack.c.h.b16 %v1460
    %v1794 = vunpack.c.l.b16 %v1461
    %v1795 = vunpack.c.h.b16 %v1461
    %v1796 = vunpack.c.l.b16 %v1462
    %v1797 = vunpack.c.h.b16 %v1462
    %v1798 = vunpack.c.l.b16 %v1463
    %v1799 = vunpack.c.h.b16 %v1463
    %v1800 = vunpack.c.l.b16 %v1464
    %v1801 = vunpack.c.h.b16 %v1464
    %v1802 = vunpack.c.l.b16 %v1465
    %v1803 = vunpack.c.h.b16 %v1465
    %v1804 = vunpack.c.l.b16 %v1466
    %v1805 = vunpack.c.h.b16 %v1466
    %v1806 = vunpack.c.l.b16 %v1467
    %v1807 = vunpack.c.h.b16 %v1467
    %v1808 = vunpack.c.l.b16 %v1468
    %v1809 = vunpack.c.h.b16 %v1468
    %v1810 = vunpack.c.l.b16 %v1469
    %v1811 = vunpack.c.h.b16 %v1469
    %v1812 = vunpack.c.l.b16 %v1470
    %v1813 = vunpack.c.h.b16 %v1470
    %v1814 = vunpack.c.l.b16 %v1471
    %v1815 = vunpack.c.h.b16 %v1471
    %v1816 = vunpack.c.l.b16 %v1472
    %v1817 = vunpack.c.h.b16 %v1472
    %v1818 = vunpack.c.l.b16 %v1473
    %v1819 = vunpack.c.h.b16 %v1473
    %v1820 = vunpack.c.l.b16 %v1474
    %v1821 = vunpack.c.h.b16 %v1474
    %v1822 = vunpack.c.l.b16 %v1475
    %v1823 = vunpack.c.h.b16 %v1475
    %v1824 = vunpack.c.l.b16 %v1476
    %v1825 = vunpack.c.h.b16 %v1476
    %v1826 = vunpack.c.l.b16 %v1477
    %v1827 = vunpack.c.h.b16 %v1477
    %v1828 = vunpack.c.l.b16 %v1478
    %v1829 = vunpack.c.h.b16 %v1478
    %v1830 = vunpack.c.l.b16 %v1479
    %v1831 = vunpack.c.h.b16 %v1479
    %v1832 = vunpack.c.l.b16 %v1480
    %v1833 = vunpack.c.h.b16 %v1480
    %v1834 = vunpack.c.l.b16 %v1481
    %v1835 = vunpack.c.h.b16 %v1481
    %v1836 = vunpack.c.l.b16 %v1482
    %v1837 = vunpack.c.h.b16 %v1482
    %v1838 = vunpack.c.l.b16 %v1483
    %v1839 = vunpack.c.h.b16 %v1483
    %v1840 = vunpack.c.l.b16 %v1484
    %v1841 = vunpack.c.h.b16 %v1484
    %v1842 = vunpack.c.l.b16 %v1485
    %v1843 = vunpack.c.h.b16 %v1485
    %v1844 = vunpack.c.l.b16 %v1486
    %v1845 = vunpack.c.h.b16 %v1486
    %v1846 = vunpack.c.l.b16 %v1487
    %v1847 = vunpack.c.h.b16 %v1487
    %v1848 = vunpack.c.l.b16 %v1488
    %v1849 = vunpack.c.h.b16 %v1488
    %v1850 = vunpack.c.l.b16 %v1489
    %v1851 = vunpack.c.h.b16 %v1489
    %v1852 = vunpack.c.l.b16 %v1490
    %v1853 = vunpack.c.h.b16 %v1490
    %v1854 = vunpack.c.l.b16 %v1491
    %v1855 = vunpack.c.h.b16 %v1491
    %v1856 = vunpack.c.l.b16 %v1492
    %v1857 = vunpack.c.h.b16 %v1492
    %v1858 = vunpack.c.l.b16 %v1493
    %v1859 = vunpack.c.h.b16 %v1493
    %v1860 = vunpack.c.l.b16 %v1494
    %v1861 = vunpack.c.h.b16 %v1494
    %v1862 = vunpack.c.l.b16 %v1495
    %v1863 = vunpack.c.h.b16 %v1495
    %v1864 = vunpack.c.l.b16 %v1496
    %v1865 = vunpack.c.h.b16 %v1496
    %v1866 = vunpack.c.l.b16 %v1497
    %v1867 = vunpack.c.h.b16 %v1497
    %v1868 = vunpack.c.l.b16 %v1498
    %v1869 = vunpack.c.h.b16 %v1498
    %v1870 = vunpack.c.l.b16 %v1499
    %v1871 = vunpack.c.h.b16 %v1499
    %v1872 = vunpack.c.l.b16 %v1500
    %v1873 = vunpack.c.h.b16 %v1500
    %v1874 = vunpack.c.l.b16 %v1501
    %v1875 = vunpack.c.h.b16 %v1501
    %v1876 = vunpack.c.l.b16 %v1502
    %v1877 = vunpack.c.h.b16 %v1502
    %v1878 = vunpack.c.l.b16 %v1503
    %v1879 = vunpack.c.h.b16 %v1503
    %v1880 = vunpack.c.l.b16 %v1504
    %v1881 = vunpack.c.h.b16 %v1504
    %v1882 = vunpack.c.l.b16 %v1505
    %v1883 = vunpack.c.h.b16 %v1505
    %v1884 = vunpack.c.l.b16 %v1506
    %v1885 = vunpack.c.h.b16 %v1506
    %v1886 = vunpack.c.l.b16 %v1507
    %v1887 = vunpack.c.h.b16 %v1507
    %v1888 = vunpack.c.l.b16 %v1508
    %v1889 = vunpack.c.h.b16 %v1508
    %v1890 = vunpack.c.l.b16 %v1509
    %v1891 = vunpack.c.h.b16 %v1509
    %v1892 = vunpack.c.l.b16 %v1510
    %v1893 = vunpack.c.h.b16 %v1510
    %v1894 = vunpack.c.l.b16 %v1511
    %v1895 = vunpack.c.h.b16 %v1511
    %v1896 = vunpack.c.l.b16 %v1512
    %v1897 = vunpack.c.h.b16 %v1512
    %v1898 = vunpack.c.l.b16 %v1513
    %v1899 = vunpack.c.h.b16 %v1513
    %v1900 = vunpack.c.l.b16 %v1514
    %v1901 = vunpack.c.h.b16 %v1514
    %v1902 = vunpack.c.l.b16 %v1515
    %v1903 = vunpack.c.h.b16 %v1515
    %v1904 = vunpack.c.l.b16 %v1516
    %v1905 = vunpack.c.h.b16 %v1516
    %v1906 = vunpack.c.l.b16 %v1517
    %v1907 = vunpack.c.h.b16 %v1517
    %v1908 = vunpack.c.l.b16 %v1518
    %v1909 = vunpack.c.h.b16 %v1518
    %v1910 = vunpack.c.l.b16 %v1519
    %v1911 = vunpack.c.h.b16 %v1519
    %v1912 = vunpack.c.l.b16 %v1520
    %v1913 = vunpack.c.h.b16 %v1520
    %v1914 = vunpack.c.l.b16 %v1521
    %v1915 = vunpack.c.h.b16 %v1521
    %v1916 = vunpack.c.l.b16 %v1522
    %v1917 = vunpack.c.h.b16 %v1522
    %v1918 = vunpack.c.l.b16 %v1523
    %v1919 = vunpack.c.h.b16 %v1523
    %v1920 = vunpack.c.l.b16 %v1524
    %v1921 = vunpack.c.h.b16 %v1524
    %v1922 = vunpack.c.l.b16 %v1525
    %v1923 = vunpack.c.h.b16 %v1525
    %v1924 = vunpack.c.l.b16 %v1526
    %v1925 = vunpack.c.h.b16 %v1526
    %v1926 = vunpack.c.l.b16 %v1527
    %v1927 = vunpack.c.h.b16 %v1527
    %v1928 = vunpack.c.l.b16 %v1528
    %v1929 = vunpack.c.h.b16 %v1528
    %v1930 = vunpack.c.l.b16 %v1529
    %v1931 = vunpack.c.h.b16 %v1529
    %v1932 = vunpack.c.l.b16 %v1530
    %v1933 = vunpack.c.h.b16 %v1530
    %v1934 = vunpack.c.l.b16 %v1531
    %v1935 = vunpack.c.h.b16 %v1531
    %v1936 = vunpack.c.l.b16 %v1532
    %v1937 = vunpack.c.h.b16 %v1532
    %v1938 = vunpack.c.l.b16 %v1533
    %v1939 = vunpack.c.h.b16 %v1533
    %v1940 = vunpack.c.l.b16 %v1534
    %v1941 = vunpack.c.h.b16 %v1534
    %v1942 = vpack.c.b16 %v1690, %v1686
    %v1943 = vpack.c.b16 %v1691, %v1687
    %v1944 = vpack.c.b16 %v1692, %v1688
    %v1945 = vpack.c.b16 %v1693, %v1689
    %v1946 = vpack.c.b16 %v1698, %v1694
    %v1947 = vpack.c.b16 %v1699, %v1695
    %v1948 = vpack.c.b16 %v1700, %v1696
    %v1949 = vpack.c.b16 %v1701, %v1697
    %v1950 = vpack.c.b16 %v1706, %v1702
    %v1951 = vpack.c.b16 %v1707, %v1703
    %v1952 = vpack.c.b16 %v1708, %v1704
    %v1953 = vpack.c.b16 %v1709, %v1705
    %v1954 = vpack.c.b16 %v1714, %v1710
    %v1955 = vpack.c.b16 %v1715, %v1711
    %v1956 = vpack.c.b16 %v1716, %v1712
    %v1957 = vpack.c.b16 %v1717, %v1713
    %v1958 = vpack.c.b16 %v1722, %v1718
    %v1959 = vpack.c.b16 %v1723, %v1719
    %v1960 = vpack.c.b16 %v1724, %v1720
    %v1961 = vpack.c.b16 %v1725, %v1721
    %v1962 = vpack.c.b16 %v1730, %v1726
    %v1963 = vpack.c.b16 %v1731, %v1727
    %v1964 = vpack.c.b16 %v1732, %v1728
    %v1965 = vpack.c.b16 %v1733, %v1729
    %v1966 = vpack.c.b16 %v1738, %v1734
    %v1967 = vpack.c.b16 %v1739, %v1735
    %v1968 = vpack.c.b16 %v1740, %v1736
    %v1969 = vpack.c.b16 %v1741, %v1737
    %v1970 = vpack.c.b16 %v1746, %v1742
    %v1971 = vpack.c.b16 %v1747, %v1743
    %v1972 = vpack.c.b16 %v1748, %v1744
    %v1973 = vpack.c.b16 %v1749, %v1745
    %v1974 = vpack.c.b16 %v1754, %v1750
    %v1975 = vpack.c.b16 %v1755, %v1751
    %v1976 = vpack.c.b16 %v1756, %v1752
    %v1977 = vpack.c.b16 %v1757, %v1753
    %v1978 = vpack.c.b16 %v1762, %v1758
    %v1979 = vpack.c.b16 %v1763, %v1759
    %v1980 = vpack.c.b16 %v1764, %v1760
    %v1981 = vpack.c.b16 %v1765, %v1761
    %v1982 = vpack.c.b16 %v1770, %v1766
    %v1983 = vpack.c.b16 %v1771, %v1767
    %v1984 = vpack.c.b16 %v1772, %v1768
    %v1985 = vpack.c.b16 %v1773, %v1769
    %v1986 = vpack.c.b16 %v1778, %v1774
    %v1987 = vpack.c.b16 %v1779, %v1775
    %v1988 = vpack.c.b16 %v1780, %v1776
    %v1989 = vpack.c.b16 %v1781, %v1777
    %v1990 = vpack.c.b16 %v1786, %v1782
    %v1991 = vpack.c.b16 %v1787, %v1783
    %v1992 = vpack.c.b16 %v1788, %v1784
    %v1993 = vpack.c.b16 %v1789, %v1785
    %v1994 = vpack.c.b16 %v1794, %v1790
    %v1995 = vpack.c.b16 %v1795, %v1791
    %v1996 = vpack.c.b16 %v1796, %v1792
    %v1997 = vpack.c.b16 %v1797, %v1793
    %v1998 = vpack.c.b16 %v1802, %v1798
    %v1999 = vpack.c.b16 %v1803, %v1799
    %v2000 = vpack.c.b16 %v1804, %v1800
    %v2001 = vpack.c.b16 %v1805, %v1801
    %v2002 = vpack.c.b16 %v1810, %v1806
    %v2003 = vpack.c.b16 %v1811, %v1807
    %v2004 = vpack.c.b16 %v1812, %v1808
    %v2005 = vpack.c.b16 %v1813, %v1809
    %v2006 = vpack.c.b16 %v1818, %v1814
    %v2007 = vpack.c.b16 %v1819, %v1815
    %v2008 = vpack.c.b16 %v1820, %v1816
    %v2009 = vpack.c.b16 %v1821, %v1817
    %v2010 = vpack.c.b16 %v1826, %v1822
    %v2011 = vpack.c.b16 %v1827, %v1823
    %v2012 = vpack.c.b16 %v1828, %v1824
    %v2013 = vpack.c.b16 %v1829, %v1825
    %v2014 = vpack.c.b16 %v1834, %v1830
    %v2015 = vpack.c.b16 %v1835, %v1831
    %v2016 = vpack.c.b16 %v1836, %v1832
    %v2017 = vpack.c.b16 %v1837, %v1833
    %v2018 = vpack.c.b16 %v1842, %v1838
    %v2019 = vpack.c.b16 %v1843, %v1839
    %v2020 = vpack.c.b16 %v1844, %v1840
    %v2021 = vpack.c.b16 %v1845, %v1841
    %v2022 = vpack.c.b16 %v1850, %v1846
    %v2023 = vpack.c.b16 %v1851, %v1847
    %v2024 = vpack.c.b16 %v1852, %v1848
    %v2025 = vpack.c.b16 %v1853, %v1849
    %v2026 = vpack.c.b16 %v1858, %v1854
    %v2027 = vpack.c.b16 %v1859, %v1855
    %v2028 = vpack.c.b16 %v1860, %v1856
    %v2029 = vpack.c.b16 %v1861, %v1857
    %v2030 = vpack.c.b16 %v1866, %v1862
    %v2031 = vpack.c.b16 %v1867, %v1863
    %v2032 = vpack.c.b16 %v1868, %v1864
    %v2033 = vpack.c.b16 %v1869, %v1865
    %v2034 = vpack.c.b16 %v1874, %v1870
    %v2035 = vpack.c.b16 %v1875, %v1871
    %v2036 = vpack.c.b16 %v1876, %v1872
    %v2037 = vpack.c.b16 %v1877, %v1873
    %v2038 = vpack.c.b16 %v1882, %v1878
    %v2039 = vpack.c.b16 %v1883, %v1879
    %v2040 = vpack.c.b16 %v1884, %v1880
    %v2041 = vpack.c.b16 %v1885, %v1881
    %v2042 = vpack.c.b16 %v1890, %v1886
    %v2043 = vpack.c.b16 %v1891, %v1887
    %v2044 = vpack.c.b16 %v1892, %v1888
    %v2045 = vpack.c.b16 %v1893, %v1889
    %v2046 = vpack.c.b16 %v1898, %v1894
    %v2047 = vpack.c.b16 %v1899, %v1895
    %v2048 = vpack.c.b16 %v1900, %v1896
    %v2049 = vpack.c.b16 %v1901, %v1897
    %v2050 = vpack.c.b16 %v1906, %v1902
    %v2051 = vpack.c.b16 %v1907, %v1903
    %v2052 = vpack.c.b16 %v1908, %v1904
    %v2053 = vpack.c.b16 %v1909, %v1905
    %v2054 = vpack.c.b16 %v1914, %v1910
    %v2055 = vpack.c.b16 %v1915, %v1911
    %v2056 = vpack.c.b16 %v1916, %v1912
    %v2057 = vpack.c.b16 %v1917, %v1913
    %v2058 = vpack.c.b16 %v1922, %v1918
    %v2059 = vpack.c.b16 %v1923, %v1919
    %v2060 = vpack.c.b16 %v1924, %v1920
    %v2061 = vpack.c.b16 %v1925, %v1921
    %v2062 = vpack.c.b16 %v1930, %v1926
    %v2063 = vpack.c.b16 %v1931, %v1927
    %v2064 = vpack.c.b16 %v1932, %v1928
    %v2065 = vpack.c.b16 %v1933, %v1929
    %v2066 = vpack.c.b16 %v1938, %v1934
    %v2067 = vpack.c.b16 %v1939, %v1935
    %v2068 = vpack.c.b16 %v1940, %v1936
    %v2069 = vpack.c.b16 %v1941, %v1937
    %2198 = vmatprep.subr.bf16.mxu0 %v1943
    %2199 = vmatpush1.bf16.msra.mxu0 %v1942
    %2200 = vmatprep.subr.bf16.mxu0 %v1947
    %2201 = vmatpush1.bf16.msra.mxu0 %v1946
    %2202 = vmatprep.subr.bf16.mxu0 %v1951
    %2203 = vmatpush1.bf16.msra.mxu0 %v1950
    %2204 = vmatprep.subr.bf16.mxu0 %v1955
    %2205 = vmatpush1.bf16.msra.mxu0 %v1954
    %2206 = vmatprep.subr.bf16.mxu0 %v1959
    %2207 = vmatpush1.bf16.msra.mxu0 %v1958
    %2208 = vmatprep.subr.bf16.mxu0 %v1963
    %2209 = vmatpush1.bf16.msra.mxu0 %v1962
    %2210 = vmatprep.subr.bf16.mxu0 %v1967
    %2211 = vmatpush1.bf16.msra.mxu0 %v1966
    %2212 = vmatprep.subr.bf16.mxu0 %v1971
    %2213 = vmatpush1.bf16.msra.mxu0 %v1970
    %2214 = vmatprep.subr.bf16.mxu0 %v1975
    %2215 = vmatpush1.bf16.msra.mxu0 %v1974
    %2216 = vmatprep.subr.bf16.mxu0 %v1979
    %2217 = vmatpush1.bf16.msra.mxu0 %v1978
    %2218 = vmatprep.subr.bf16.mxu0 %v1983
    %2219 = vmatpush1.bf16.msra.mxu0 %v1982
    %2220 = vmatprep.subr.bf16.mxu0 %v1987
    %2221 = vmatpush1.bf16.msra.mxu0 %v1986
    %2222 = vmatprep.subr.bf16.mxu0 %v1991
    %2223 = vmatpush1.bf16.msra.mxu0 %v1990
    %2224 = vmatprep.subr.bf16.mxu0 %v1995
    %2225 = vmatpush1.bf16.msra.mxu0 %v1994
    %2226 = vmatprep.subr.bf16.mxu0 %v1999
    %2227 = vmatpush1.bf16.msra.mxu0 %v1998
    %2228 = vmatprep.subr.bf16.mxu0 %v2003
    %2229 = vmatpush1.bf16.msra.mxu0 %v2002
    %2230 = vmatprep.mubr.bf16.mxu0 %v1404
    %2231 = vmatmul.mubr.bf16.gmra.mrb[0].mxu0 %v1403
    %v2232 = vpop.f32.mrb[0].mxu0
    %v2233 = vadd.f32 %v1541, %v2232
    %v2234 = vpop.f32.mrb[0].mxu0
    %v2235 = vadd.f32 %v1545, %v2234
    %v2236 = vpop.f32.mrb[0].mxu0
    %v2237 = vadd.f32 %v1541, %v2236
    %v2238 = vpop.f32.mrb[0].mxu0
    %v2239 = vadd.f32 %v1545, %v2238
    %2240 = vdwg.mxu0
    %2241 = vmatprep.subr.bf16.mxu0 %v2007
    %2242 = vmatpush1.bf16.msra.mxu0 %v2006
    %2243 = vmatprep.subr.bf16.mxu0 %v2011
    %2244 = vmatpush1.bf16.msra.mxu0 %v2010
    %2245 = vmatprep.subr.bf16.mxu0 %v2015
    %2246 = vmatpush1.bf16.msra.mxu0 %v2014
    %2247 = vmatprep.subr.bf16.mxu0 %v2019
    %2248 = vmatpush1.bf16.msra.mxu0 %v2018
    %2249 = vmatprep.subr.bf16.mxu0 %v2023
    %2250 = vmatpush1.bf16.msra.mxu0 %v2022
    %2251 = vmatprep.subr.bf16.mxu0 %v2027
    %2252 = vmatpush1.bf16.msra.mxu0 %v2026
    %2253 = vmatprep.subr.bf16.mxu0 %v2031
    %2254 = vmatpush1.bf16.msra.mxu0 %v2030
    %2255 = vmatprep.subr.bf16.mxu0 %v2035
    %2256 = vmatpush1.bf16.msra.mxu0 %v2034
    %2257 = vmatprep.subr.bf16.mxu0 %v2039
    %2258 = vmatpush1.bf16.msra.mxu0 %v2038
    %2259 = vmatprep.subr.bf16.mxu0 %v2043
    %2260 = vmatpush1.bf16.msra.mxu0 %v2042
    %2261 = vmatprep.subr.bf16.mxu0 %v2047
    %2262 = vmatpush1.bf16.msra.mxu0 %v2046
    %2263 = vmatprep.subr.bf16.mxu0 %v2051
    %2264 = vmatpush1.bf16.msra.mxu0 %v2050
    %2265 = vmatprep.subr.bf16.mxu0 %v2055
    %2266 = vmatpush1.bf16.msra.mxu0 %v2054
    %2267 = vmatprep.subr.bf16.mxu0 %v2059
    %2268 = vmatpush1.bf16.msra.mxu0 %v2058
    %2269 = vmatprep.subr.bf16.mxu0 %v2063
    %2270 = vmatpush1.bf16.msra.mxu0 %v2062
    %2271 = vmatprep.subr.bf16.mxu0 %v2067
    %2272 = vmatpush1.bf16.msra.mxu0 %v2066
    %2273 = vmatprep.mubr.bf16.mxu0 %v1406
    %2274 = vmatmul.mubr.bf16.gmra.mrb[0].mxu0 %v1405
    %v2275 = vpop.f32.mrb[0].mxu0
    %v2276 = vadd.f32 %v2233, %v2275
    %v2277 = vpop.f32.mrb[0].mxu0
    %v2278 = vadd.f32 %v2235, %v2277
    %v2279 = vpop.f32.mrb[0].mxu0
    %v2280 = vadd.f32 %v2237, %v2279
    %v2281 = vpop.f32.mrb[0].mxu0
    %v2282 = vadd.f32 %v2239, %v2281
    %2283 = vdwg.mxu0
    %2284 = vmatprep.subr.bf16.mxu0 %v1945
    %2285 = vmatpush1.bf16.msra.mxu0 %v1944
    %2286 = vmatprep.subr.bf16.mxu0 %v1949
    %2287 = vmatpush1.bf16.msra.mxu0 %v1948
    %2288 = vmatprep.subr.bf16.mxu0 %v1953
    %2289 = vmatpush1.bf16.msra.mxu0 %v1952
    %2290 = vmatprep.subr.bf16.mxu0 %v1957
    %2291 = vmatpush1.bf16.msra.mxu0 %v1956
    %2292 = vmatprep.subr.bf16.mxu0 %v1961
    %2293 = vmatpush1.bf16.msra.mxu0 %v1960
    %2294 = vmatprep.subr.bf16.mxu0 %v1965
    %2295 = vmatpush1.bf16.msra.mxu0 %v1964
    %2296 = vmatprep.subr.bf16.mxu0 %v1969
    %2297 = vmatpush1.bf16.msra.mxu0 %v1968
    %2298 = vmatprep.subr.bf16.mxu0 %v1973
    %2299 = vmatpush1.bf16.msra.mxu0 %v1972
    %2300 = vmatprep.subr.bf16.mxu0 %v1977
    %2301 = vmatpush1.bf16.msra.mxu0 %v1976
    %2302 = vmatprep.subr.bf16.mxu0 %v1981
    %2303 = vmatpush1.bf16.msra.mxu0 %v1980
    %2304 = vmatprep.subr.bf16.mxu0 %v1985
    %2305 = vmatpush1.bf16.msra.mxu0 %v1984
    %2306 = vmatprep.subr.bf16.mxu0 %v1989
    %2307 = vmatpush1.bf16.msra.mxu0 %v1988
    %2308 = vmatprep.subr.bf16.mxu0 %v1993
    %2309 = vmatpush1.bf16.msra.mxu0 %v1992
    %2310 = vmatprep.subr.bf16.mxu0 %v1997
    %2311 = vmatpush1.bf16.msra.mxu0 %v1996
    %2312 = vmatprep.subr.bf16.mxu0 %v2001
    %2313 = vmatpush1.bf16.msra.mxu0 %v2000
    %2314 = vmatprep.subr.bf16.mxu0 %v2005
    %2315 = vmatpush1.bf16.msra.mxu0 %v2004
    %2316 = vmatprep.mubr.bf16.mxu0 %v1404
    %2317 = vmatmul.mubr.bf16.gmra.mrb[0].mxu0 %v1403
    %v2318 = vpop.f32.mrb[0].mxu0
    %v2319 = vadd.f32 %v1549, %v2318
    %v2320 = vpop.f32.mrb[0].mxu0
    %v2321 = vadd.f32 %v1553, %v2320
    %v2322 = vpop.f32.mrb[0].mxu0
    %v2323 = vadd.f32 %v1549, %v2322
    %v2324 = vpop.f32.mrb[0].mxu0
    %v2325 = vadd.f32 %v1553, %v2324
    %2326 = vdwg.mxu0
    %2327 = vmatprep.subr.bf16.mxu0 %v2009
    %2328 = vmatpush1.bf16.msra.mxu0 %v2008
    %2329 = vmatprep.subr.bf16.mxu0 %v2013
    %2330 = vmatpush1.bf16.msra.mxu0 %v2012
    %2331 = vmatprep.subr.bf16.mxu0 %v2017
    %2332 = vmatpush1.bf16.msra.mxu0 %v2016
    %2333 = vmatprep.subr.bf16.mxu0 %v2021
    %2334 = vmatpush1.bf16.msra.mxu0 %v2020
    %2335 = vmatprep.subr.bf16.mxu0 %v2025
    %2336 = vmatpush1.bf16.msra.mxu0 %v2024
    %2337 = vmatprep.subr.bf16.mxu0 %v2029
    %2338 = vmatpush1.bf16.msra.mxu0 %v2028
    %2339 = vmatprep.subr.bf16.mxu0 %v2033
    %2340 = vmatpush1.bf16.msra.mxu0 %v2032
    %2341 = vmatprep.subr.bf16.mxu0 %v2037
    %2342 = vmatpush1.bf16.msra.mxu0 %v2036
    %2343 = vmatprep.subr.bf16.mxu0 %v2041
    %2344 = vmatpush1.bf16.msra.mxu0 %v2040
    %2345 = vmatprep.subr.bf16.mxu0 %v2045
    %2346 = vmatpush1.bf16.msra.mxu0 %v2044
    %2347 = vmatprep.subr.bf16.mxu0 %v2049
    %2348 = vmatpush1.bf16.msra.mxu0 %v2048
    %2349 = vmatprep.subr.bf16.mxu0 %v2053
    %2350 = vmatpush1.bf16.msra.mxu0 %v2052
    %2351 = vmatprep.subr.bf16.mxu0 %v2057
    %2352 = vmatpush1.bf16.msra.mxu0 %v2056
    %2353 = vmatprep.subr.bf16.mxu0 %v2061
    %2354 = vmatpush1.bf16.msra.mxu0 %v2060
    %2355 = vmatprep.subr.bf16.mxu0 %v2065
    %2356 = vmatpush1.bf16.msra.mxu0 %v2064
    %2357 = vmatprep.subr.bf16.mxu0 %v2069
    %2358 = vmatpush1.bf16.msra.mxu0 %v2068
    %2359 = vmatprep.mubr.bf16.mxu0 %v1406
    %2360 = vmatmul.mubr.bf16.gmra.mrb[0].mxu0 %v1405
    %v2361 = vpop.f32.mrb[0].mxu0
    %v2362 = vadd.f32 %v2319, %v2361
    %v2363 = vpop.f32.mrb[0].mxu0
    %v2364 = vadd.f32 %v2321, %v2363
    %v2365 = vpop.f32.mrb[0].mxu0
    %v2366 = vadd.f32 %v2323, %v2365
    %v2367 = vpop.f32.mrb[0].mxu0
    %v2368 = vadd.f32 %v2325, %v2367
    %2369 = vdwg.mxu0
    %v2370 = vmax.f32 %v2276, 0.0
    %v2371 = vmax.f32 %v2278, 0.0
    %v2372 = vmax.f32 %v2362, 0.0
    %v2373 = vmax.f32 %v2364, 0.0
    %v2374 = vmax.f32 %v2280, 0.0
    %v2375 = vmax.f32 %v2282, 0.0
    %v2376 = vmax.f32 %v2366, 0.0
    %v2377 = vmax.f32 %v2368, 0.0
    %v2378 = vpack.c.bf16 %v2374, %v2370
    %v2379 = vpack.c.bf16 %v2375, %v2371
    %v2380 = vpack.c.bf16 %v2376, %v2372
    %v2381 = vpack.c.bf16 %v2377, %v2373
    %v2382 = vld [vmem:[#allocation7] sm:$0xff]
    %v2383 = vld [vmem:[#allocation7 + $0x8] sm:$0xff]
    %v2384 = vld [vmem:[#allocation7 + $0x10] sm:$0xff]
    %v2385 = vld [vmem:[#allocation7 + $0x18] sm:$0xff]
    %v2386 = vld [vmem:[#allocation7 + $0x20] sm:$0xff]
    %v2387 = vld [vmem:[#allocation7 + $0x28] sm:$0xff]
    %v2388 = vld [vmem:[#allocation7 + $0x30] sm:$0xff]
    %v2389 = vld [vmem:[#allocation7 + $0x38] sm:$0xff]
    %v2390 = vld [vmem:[#allocation7 + $0x40] sm:$0xff]
    %v2391 = vld [vmem:[#allocation7 + $0x48] sm:$0xff]
    %v2392 = vld [vmem:[#allocation7 + $0x50] sm:$0xff]
    %v2393 = vld [vmem:[#allocation7 + $0x58] sm:$0xff]
    %v2394 = vld [vmem:[#allocation7 + $0x60] sm:$0xff]
    %v2395 = vld [vmem:[#allocation7 + $0x68] sm:$0xff]
    %v2396 = vld [vmem:[#allocation7 + $0x70] sm:$0xff]
    %v2397 = vld [vmem:[#allocation7 + $0x78] sm:$0xff]
    %v2398 = vld [vmem:[#allocation7 + $0x80] sm:$0xff]
    %v2399 = vld [vmem:[#allocation7 + $0x88] sm:$0xff]
    %v2400 = vld [vmem:[#allocation7 + $0x90] sm:$0xff]
    %v2401 = vld [vmem:[#allocation7 + $0x98] sm:$0xff]
    %v2402 = vld [vmem:[#allocation7 + $0xa0] sm:$0xff]
    %v2403 = vld [vmem:[#allocation7 + $0xa8] sm:$0xff]
    %v2404 = vld [vmem:[#allocation7 + $0xb0] sm:$0xff]
    %v2405 = vld [vmem:[#allocation7 + $0xb8] sm:$0xff]
    %v2406 = vld [vmem:[#allocation7 + $0xc0] sm:$0xff]
    %v2407 = vld [vmem:[#allocation7 + $0xc8] sm:$0xff]
    %v2408 = vld [vmem:[#allocation7 + $0xd0] sm:$0xff]
    %v2409 = vld [vmem:[#allocation7 + $0xd8] sm:$0xff]
    %v2410 = vld [vmem:[#allocation7 + $0xe0] sm:$0xff]
    %v2411 = vld [vmem:[#allocation7 + $0xe8] sm:$0xff]
    %v2412 = vld [vmem:[#allocation7 + $0xf0] sm:$0xff]
    %v2413 = vld [vmem:[#allocation7 + $0xf8] sm:$0xff]
    %v2414 = vld [vmem:[#allocation7 + $0x100] sm:$0xff]
    %v2415 = vld [vmem:[#allocation7 + $0x108] sm:$0xff]
    %v2416 = vld [vmem:[#allocation7 + $0x110] sm:$0xff]
    %v2417 = vld [vmem:[#allocation7 + $0x118] sm:$0xff]
    %v2418 = vld [vmem:[#allocation7 + $0x120] sm:$0xff]
    %v2419 = vld [vmem:[#allocation7 + $0x128] sm:$0xff]
    %v2420 = vld [vmem:[#allocation7 + $0x130] sm:$0xff]
    %v2421 = vld [vmem:[#allocation7 + $0x138] sm:$0xff]
    %v2422 = vld [vmem:[#allocation7 + $0x140] sm:$0xff]
    %v2423 = vld [vmem:[#allocation7 + $0x148] sm:$0xff]
    %v2424 = vld [vmem:[#allocation7 + $0x150] sm:$0xff]
    %v2425 = vld [vmem:[#allocation7 + $0x158] sm:$0xff]
    %v2426 = vld [vmem:[#allocation7 + $0x160] sm:$0xff]
    %v2427 = vld [vmem:[#allocation7 + $0x168] sm:$0xff]
    %v2428 = vld [vmem:[#allocation7 + $0x170] sm:$0xff]
    %v2429 = vld [vmem:[#allocation7 + $0x178] sm:$0xff]
    %v2430 = vld [vmem:[#allocation7 + $0x180] sm:$0xff]
    %v2431 = vld [vmem:[#allocation7 + $0x188] sm:$0xff]
    %v2432 = vld [vmem:[#allocation7 + $0x190] sm:$0xff]
    %v2433 = vld [vmem:[#allocation7 + $0x198] sm:$0xff]
    %v2434 = vld [vmem:[#allocation7 + $0x1a0] sm:$0xff]
    %v2435 = vld [vmem:[#allocation7 + $0x1a8] sm:$0xff]
    %v2436 = vld [vmem:[#allocation7 + $0x1b0] sm:$0xff]
    %v2437 = vld [vmem:[#allocation7 + $0x1b8] sm:$0xff]
    %v2438 = vld [vmem:[#allocation7 + $0x1c0] sm:$0xff]
    %v2439 = vld [vmem:[#allocation7 + $0x1c8] sm:$0xff]
    %v2440 = vld [vmem:[#allocation7 + $0x1d0] sm:$0xff]
    %v2441 = vld [vmem:[#allocation7 + $0x1d8] sm:$0xff]
    %v2442 = vld [vmem:[#allocation7 + $0x1e0] sm:$0xff]
    %v2443 = vld [vmem:[#allocation7 + $0x1e8] sm:$0xff]
    %v2444 = vld [vmem:[#allocation7 + $0x1f0] sm:$0xff]
    %v2445 = vld [vmem:[#allocation7 + $0x1f8] sm:$0xff]
    %v2446 = vld [vmem:[#allocation7 + $0x200] sm:$0xff]
    %v2447 = vld [vmem:[#allocation7 + $0x208] sm:$0xff]
    %v2448 = vld [vmem:[#allocation7 + $0x210] sm:$0xff]
    %v2449 = vld [vmem:[#allocation7 + $0x218] sm:$0xff]
    %v2450 = vld [vmem:[#allocation7 + $0x220] sm:$0xff]
    %v2451 = vld [vmem:[#allocation7 + $0x228] sm:$0xff]
    %v2452 = vld [vmem:[#allocation7 + $0x230] sm:$0xff]
    %v2453 = vld [vmem:[#allocation7 + $0x238] sm:$0xff]
    %v2454 = vld [vmem:[#allocation7 + $0x240] sm:$0xff]
    %v2455 = vld [vmem:[#allocation7 + $0x248] sm:$0xff]
    %v2456 = vld [vmem:[#allocation7 + $0x250] sm:$0xff]
    %v2457 = vld [vmem:[#allocation7 + $0x258] sm:$0xff]
    %v2458 = vld [vmem:[#allocation7 + $0x260] sm:$0xff]
    %v2459 = vld [vmem:[#allocation7 + $0x268] sm:$0xff]
    %v2460 = vld [vmem:[#allocation7 + $0x270] sm:$0xff]
    %v2461 = vld [vmem:[#allocation7 + $0x278] sm:$0xff]
    %v2462 = vld [vmem:[#allocation7 + $0x280] sm:$0xff]
    %v2463 = vld [vmem:[#allocation7 + $0x288] sm:$0xff]
    %v2464 = vld [vmem:[#allocation7 + $0x290] sm:$0xff]
    %v2465 = vld [vmem:[#allocation7 + $0x298] sm:$0xff]
    %v2466 = vld [vmem:[#allocation7 + $0x2a0] sm:$0xff]
    %v2467 = vld [vmem:[#allocation7 + $0x2a8] sm:$0xff]
    %v2468 = vld [vmem:[#allocation7 + $0x2b0] sm:$0xff]
    %v2469 = vld [vmem:[#allocation7 + $0x2b8] sm:$0xff]
    %v2470 = vld [vmem:[#allocation7 + $0x2c0] sm:$0xff]
    %v2471 = vld [vmem:[#allocation7 + $0x2c8] sm:$0xff]
    %v2472 = vld [vmem:[#allocation7 + $0x2d0] sm:$0xff]
    %v2473 = vld [vmem:[#allocation7 + $0x2d8] sm:$0xff]
    %v2474 = vld [vmem:[#allocation7 + $0x2e0] sm:$0xff]
    %v2475 = vld [vmem:[#allocation7 + $0x2e8] sm:$0xff]
    %v2476 = vld [vmem:[#allocation7 + $0x2f0] sm:$0xff]
    %v2477 = vld [vmem:[#allocation7 + $0x2f8] sm:$0xff]
    %v2478 = vld [vmem:[#allocation7 + $0x300] sm:$0xff]
    %v2479 = vld [vmem:[#allocation7 + $0x308] sm:$0xff]
    %v2480 = vld [vmem:[#allocation7 + $0x310] sm:$0xff]
    %v2481 = vld [vmem:[#allocation7 + $0x318] sm:$0xff]
    %v2482 = vld [vmem:[#allocation7 + $0x320] sm:$0xff]
    %v2483 = vld [vmem:[#allocation7 + $0x328] sm:$0xff]
    %v2484 = vld [vmem:[#allocation7 + $0x330] sm:$0xff]
    %v2485 = vld [vmem:[#allocation7 + $0x338] sm:$0xff]
    %v2486 = vld [vmem:[#allocation7 + $0x340] sm:$0xff]
    %v2487 = vld [vmem:[#allocation7 + $0x348] sm:$0xff]
    %v2488 = vld [vmem:[#allocation7 + $0x350] sm:$0xff]
    %v2489 = vld [vmem:[#allocation7 + $0x358] sm:$0xff]
    %v2490 = vld [vmem:[#allocation7 + $0x360] sm:$0xff]
    %v2491 = vld [vmem:[#allocation7 + $0x368] sm:$0xff]
    %v2492 = vld [vmem:[#allocation7 + $0x370] sm:$0xff]
    %v2493 = vld [vmem:[#allocation7 + $0x378] sm:$0xff]
    %v2494 = vld [vmem:[#allocation7 + $0x380] sm:$0xff]
    %v2495 = vld [vmem:[#allocation7 + $0x388] sm:$0xff]
    %v2496 = vld [vmem:[#allocation7 + $0x390] sm:$0xff]
    %v2497 = vld [vmem:[#allocation7 + $0x398] sm:$0xff]
    %v2498 = vld [vmem:[#allocation7 + $0x3a0] sm:$0xff]
    %v2499 = vld [vmem:[#allocation7 + $0x3a8] sm:$0xff]
    %v2500 = vld [vmem:[#allocation7 + $0x3b0] sm:$0xff]
    %v2501 = vld [vmem:[#allocation7 + $0x3b8] sm:$0xff]
    %v2502 = vld [vmem:[#allocation7 + $0x3c0] sm:$0xff]
    %v2503 = vld [vmem:[#allocation7 + $0x3c8] sm:$0xff]
    %v2504 = vld [vmem:[#allocation7 + $0x3d0] sm:$0xff]
    %v2505 = vld [vmem:[#allocation7 + $0x3d8] sm:$0xff]
    %v2506 = vld [vmem:[#allocation7 + $0x3e0] sm:$0xff]
    %v2507 = vld [vmem:[#allocation7 + $0x3e8] sm:$0xff]
    %v2508 = vld [vmem:[#allocation7 + $0x3f0] sm:$0xff]
    %v2509 = vld [vmem:[#allocation7 + $0x3f8] sm:$0xff]
    %s2510 = scalar_lea.vmem %s7, 3
    %v2511 = vld [vmem:[%s2510] ss:$8 sm:$0xf]
    %v2513 = vlaneseq
    %v2514 = vshrl.u32 %v2513, 7
    %v2515 = vsub.s32 0, %v2514
    %v2516 = vrot.slane %v2511, %v2515
    %v2517 = vlaneseq
    %v2518 = vshrl.u32 %v2517, 7
    %v2519 = vsub.s32 1, %v2518
    %v2520 = vrot.slane %v2511, %v2519
    %v2521 = vlaneseq
    %v2522 = vshrl.u32 %v2521, 7
    %v2523 = vsub.s32 2, %v2522
    %v2524 = vrot.slane %v2511, %v2523
    %v2525 = vlaneseq
    %v2526 = vshrl.u32 %v2525, 7
    %v2527 = vsub.s32 3, %v2526
    %v2528 = vrot.slane %v2511, %v2527
    %v2661 = vunpack.c.l.b16 %v2382
    %v2662 = vunpack.c.h.b16 %v2382
    %v2663 = vunpack.c.l.b16 %v2383
    %v2664 = vunpack.c.h.b16 %v2383
    %v2665 = vunpack.c.l.b16 %v2384
    %v2666 = vunpack.c.h.b16 %v2384
    %v2667 = vunpack.c.l.b16 %v2385
    %v2668 = vunpack.c.h.b16 %v2385
    %v2669 = vunpack.c.l.b16 %v2386
    %v2670 = vunpack.c.h.b16 %v2386
    %v2671 = vunpack.c.l.b16 %v2387
    %v2672 = vunpack.c.h.b16 %v2387
    %v2673 = vunpack.c.l.b16 %v2388
    %v2674 = vunpack.c.h.b16 %v2388
    %v2675 = vunpack.c.l.b16 %v2389
    %v2676 = vunpack.c.h.b16 %v2389
    %v2677 = vunpack.c.l.b16 %v2390
    %v2678 = vunpack.c.h.b16 %v2390
    %v2679 = vunpack.c.l.b16 %v2391
    %v2680 = vunpack.c.h.b16 %v2391
    %v2681 = vunpack.c.l.b16 %v2392
    %v2682 = vunpack.c.h.b16 %v2392
    %v2683 = vunpack.c.l.b16 %v2393
    %v2684 = vunpack.c.h.b16 %v2393
    %v2685 = vunpack.c.l.b16 %v2394
    %v2686 = vunpack.c.h.b16 %v2394
    %v2687 = vunpack.c.l.b16 %v2395
    %v2688 = vunpack.c.h.b16 %v2395
    %v2689 = vunpack.c.l.b16 %v2396
    %v2690 = vunpack.c.h.b16 %v2396
    %v2691 = vunpack.c.l.b16 %v2397
    %v2692 = vunpack.c.h.b16 %v2397
    %v2693 = vunpack.c.l.b16 %v2398
    %v2694 = vunpack.c.h.b16 %v2398
    %v2695 = vunpack.c.l.b16 %v2399
    %v2696 = vunpack.c.h.b16 %v2399
    %v2697 = vunpack.c.l.b16 %v2400
    %v2698 = vunpack.c.h.b16 %v2400
    %v2699 = vunpack.c.l.b16 %v2401
    %v2700 = vunpack.c.h.b16 %v2401
    %v2701 = vunpack.c.l.b16 %v2402
    %v2702 = vunpack.c.h.b16 %v2402
    %v2703 = vunpack.c.l.b16 %v2403
    %v2704 = vunpack.c.h.b16 %v2403
    %v2705 = vunpack.c.l.b16 %v2404
    %v2706 = vunpack.c.h.b16 %v2404
    %v2707 = vunpack.c.l.b16 %v2405
    %v2708 = vunpack.c.h.b16 %v2405
    %v2709 = vunpack.c.l.b16 %v2406
    %v2710 = vunpack.c.h.b16 %v2406
    %v2711 = vunpack.c.l.b16 %v2407
    %v2712 = vunpack.c.h.b16 %v2407
    %v2713 = vunpack.c.l.b16 %v2408
    %v2714 = vunpack.c.h.b16 %v2408
    %v2715 = vunpack.c.l.b16 %v2409
    %v2716 = vunpack.c.h.b16 %v2409
    %v2717 = vunpack.c.l.b16 %v2410
    %v2718 = vunpack.c.h.b16 %v2410
    %v2719 = vunpack.c.l.b16 %v2411
    %v2720 = vunpack.c.h.b16 %v2411
    %v2721 = vunpack.c.l.b16 %v2412
    %v2722 = vunpack.c.h.b16 %v2412
    %v2723 = vunpack.c.l.b16 %v2413
    %v2724 = vunpack.c.h.b16 %v2413
    %v2725 = vunpack.c.l.b16 %v2414
    %v2726 = vunpack.c.h.b16 %v2414
    %v2727 = vunpack.c.l.b16 %v2415
    %v2728 = vunpack.c.h.b16 %v2415
    %v2729 = vunpack.c.l.b16 %v2416
    %v2730 = vunpack.c.h.b16 %v2416
    %v2731 = vunpack.c.l.b16 %v2417
    %v2732 = vunpack.c.h.b16 %v2417
    %v2733 = vunpack.c.l.b16 %v2418
    %v2734 = vunpack.c.h.b16 %v2418
    %v2735 = vunpack.c.l.b16 %v2419
    %v2736 = vunpack.c.h.b16 %v2419
    %v2737 = vunpack.c.l.b16 %v2420
    %v2738 = vunpack.c.h.b16 %v2420
    %v2739 = vunpack.c.l.b16 %v2421
    %v2740 = vunpack.c.h.b16 %v2421
    %v2741 = vunpack.c.l.b16 %v2422
    %v2742 = vunpack.c.h.b16 %v2422
    %v2743 = vunpack.c.l.b16 %v2423
    %v2744 = vunpack.c.h.b16 %v2423
    %v2745 = vunpack.c.l.b16 %v2424
    %v2746 = vunpack.c.h.b16 %v2424
    %v2747 = vunpack.c.l.b16 %v2425
    %v2748 = vunpack.c.h.b16 %v2425
    %v2749 = vunpack.c.l.b16 %v2426
    %v2750 = vunpack.c.h.b16 %v2426
    %v2751 = vunpack.c.l.b16 %v2427
    %v2752 = vunpack.c.h.b16 %v2427
    %v2753 = vunpack.c.l.b16 %v2428
    %v2754 = vunpack.c.h.b16 %v2428
    %v2755 = vunpack.c.l.b16 %v2429
    %v2756 = vunpack.c.h.b16 %v2429
    %v2757 = vunpack.c.l.b16 %v2430
    %v2758 = vunpack.c.h.b16 %v2430
    %v2759 = vunpack.c.l.b16 %v2431
    %v2760 = vunpack.c.h.b16 %v2431
    %v2761 = vunpack.c.l.b16 %v2432
    %v2762 = vunpack.c.h.b16 %v2432
    %v2763 = vunpack.c.l.b16 %v2433
    %v2764 = vunpack.c.h.b16 %v2433
    %v2765 = vunpack.c.l.b16 %v2434
    %v2766 = vunpack.c.h.b16 %v2434
    %v2767 = vunpack.c.l.b16 %v2435
    %v2768 = vunpack.c.h.b16 %v2435
    %v2769 = vunpack.c.l.b16 %v2436
    %v2770 = vunpack.c.h.b16 %v2436
    %v2771 = vunpack.c.l.b16 %v2437
    %v2772 = vunpack.c.h.b16 %v2437
    %v2773 = vunpack.c.l.b16 %v2438
    %v2774 = vunpack.c.h.b16 %v2438
    %v2775 = vunpack.c.l.b16 %v2439
    %v2776 = vunpack.c.h.b16 %v2439
    %v2777 = vunpack.c.l.b16 %v2440
    %v2778 = vunpack.c.h.b16 %v2440
    %v2779 = vunpack.c.l.b16 %v2441
    %v2780 = vunpack.c.h.b16 %v2441
    %v2781 = vunpack.c.l.b16 %v2442
    %v2782 = vunpack.c.h.b16 %v2442
    %v2783 = vunpack.c.l.b16 %v2443
    %v2784 = vunpack.c.h.b16 %v2443
    %v2785 = vunpack.c.l.b16 %v2444
    %v2786 = vunpack.c.h.b16 %v2444
    %v2787 = vunpack.c.l.b16 %v2445
    %v2788 = vunpack.c.h.b16 %v2445
    %v2789 = vunpack.c.l.b16 %v2446
    %v2790 = vunpack.c.h.b16 %v2446
    %v2791 = vunpack.c.l.b16 %v2447
    %v2792 = vunpack.c.h.b16 %v2447
    %v2793 = vunpack.c.l.b16 %v2448
    %v2794 = vunpack.c.h.b16 %v2448
    %v2795 = vunpack.c.l.b16 %v2449
    %v2796 = vunpack.c.h.b16 %v2449
    %v2797 = vunpack.c.l.b16 %v2450
    %v2798 = vunpack.c.h.b16 %v2450
    %v2799 = vunpack.c.l.b16 %v2451
    %v2800 = vunpack.c.h.b16 %v2451
    %v2801 = vunpack.c.l.b16 %v2452
    %v2802 = vunpack.c.h.b16 %v2452
    %v2803 = vunpack.c.l.b16 %v2453
    %v2804 = vunpack.c.h.b16 %v2453
    %v2805 = vunpack.c.l.b16 %v2454
    %v2806 = vunpack.c.h.b16 %v2454
    %v2807 = vunpack.c.l.b16 %v2455
    %v2808 = vunpack.c.h.b16 %v2455
    %v2809 = vunpack.c.l.b16 %v2456
    %v2810 = vunpack.c.h.b16 %v2456
    %v2811 = vunpack.c.l.b16 %v2457
    %v2812 = vunpack.c.h.b16 %v2457
    %v2813 = vunpack.c.l.b16 %v2458
    %v2814 = vunpack.c.h.b16 %v2458
    %v2815 = vunpack.c.l.b16 %v2459
    %v2816 = vunpack.c.h.b16 %v2459
    %v2817 = vunpack.c.l.b16 %v2460
    %v2818 = vunpack.c.h.b16 %v2460
    %v2819 = vunpack.c.l.b16 %v2461
    %v2820 = vunpack.c.h.b16 %v2461
    %v2821 = vunpack.c.l.b16 %v2462
    %v2822 = vunpack.c.h.b16 %v2462
    %v2823 = vunpack.c.l.b16 %v2463
    %v2824 = vunpack.c.h.b16 %v2463
    %v2825 = vunpack.c.l.b16 %v2464
    %v2826 = vunpack.c.h.b16 %v2464
    %v2827 = vunpack.c.l.b16 %v2465
    %v2828 = vunpack.c.h.b16 %v2465
    %v2829 = vunpack.c.l.b16 %v2466
    %v2830 = vunpack.c.h.b16 %v2466
    %v2831 = vunpack.c.l.b16 %v2467
    %v2832 = vunpack.c.h.b16 %v2467
    %v2833 = vunpack.c.l.b16 %v2468
    %v2834 = vunpack.c.h.b16 %v2468
    %v2835 = vunpack.c.l.b16 %v2469
    %v2836 = vunpack.c.h.b16 %v2469
    %v2837 = vunpack.c.l.b16 %v2470
    %v2838 = vunpack.c.h.b16 %v2470
    %v2839 = vunpack.c.l.b16 %v2471
    %v2840 = vunpack.c.h.b16 %v2471
    %v2841 = vunpack.c.l.b16 %v2472
    %v2842 = vunpack.c.h.b16 %v2472
    %v2843 = vunpack.c.l.b16 %v2473
    %v2844 = vunpack.c.h.b16 %v2473
    %v2845 = vunpack.c.l.b16 %v2474
    %v2846 = vunpack.c.h.b16 %v2474
    %v2847 = vunpack.c.l.b16 %v2475
    %v2848 = vunpack.c.h.b16 %v2475
    %v2849 = vunpack.c.l.b16 %v2476
    %v2850 = vunpack.c.h.b16 %v2476
    %v2851 = vunpack.c.l.b16 %v2477
    %v2852 = vunpack.c.h.b16 %v2477
    %v2853 = vunpack.c.l.b16 %v2478
    %v2854 = vunpack.c.h.b16 %v2478
    %v2855 = vunpack.c.l.b16 %v2479
    %v2856 = vunpack.c.h.b16 %v2479
    %v2857 = vunpack.c.l.b16 %v2480
    %v2858 = vunpack.c.h.b16 %v2480
    %v2859 = vunpack.c.l.b16 %v2481
    %v2860 = vunpack.c.h.b16 %v2481
    %v2861 = vunpack.c.l.b16 %v2482
    %v2862 = vunpack.c.h.b16 %v2482
    %v2863 = vunpack.c.l.b16 %v2483
    %v2864 = vunpack.c.h.b16 %v2483
    %v2865 = vunpack.c.l.b16 %v2484
    %v2866 = vunpack.c.h.b16 %v2484
    %v2867 = vunpack.c.l.b16 %v2485
    %v2868 = vunpack.c.h.b16 %v2485
    %v2869 = vunpack.c.l.b16 %v2486
    %v2870 = vunpack.c.h.b16 %v2486
    %v2871 = vunpack.c.l.b16 %v2487
    %v2872 = vunpack.c.h.b16 %v2487
    %v2873 = vunpack.c.l.b16 %v2488
    %v2874 = vunpack.c.h.b16 %v2488
    %v2875 = vunpack.c.l.b16 %v2489
    %v2876 = vunpack.c.h.b16 %v2489
    %v2877 = vunpack.c.l.b16 %v2490
    %v2878 = vunpack.c.h.b16 %v2490
    %v2879 = vunpack.c.l.b16 %v2491
    %v2880 = vunpack.c.h.b16 %v2491
    %v2881 = vunpack.c.l.b16 %v2492
    %v2882 = vunpack.c.h.b16 %v2492
    %v2883 = vunpack.c.l.b16 %v2493
    %v2884 = vunpack.c.h.b16 %v2493
    %v2885 = vunpack.c.l.b16 %v2494
    %v2886 = vunpack.c.h.b16 %v2494
    %v2887 = vunpack.c.l.b16 %v2495
    %v2888 = vunpack.c.h.b16 %v2495
    %v2889 = vunpack.c.l.b16 %v2496
    %v2890 = vunpack.c.h.b16 %v2496
    %v2891 = vunpack.c.l.b16 %v2497
    %v2892 = vunpack.c.h.b16 %v2497
    %v2893 = vunpack.c.l.b16 %v2498
    %v2894 = vunpack.c.h.b16 %v2498
    %v2895 = vunpack.c.l.b16 %v2499
    %v2896 = vunpack.c.h.b16 %v2499
    %v2897 = vunpack.c.l.b16 %v2500
    %v2898 = vunpack.c.h.b16 %v2500
    %v2899 = vunpack.c.l.b16 %v2501
    %v2900 = vunpack.c.h.b16 %v2501
    %v2901 = vunpack.c.l.b16 %v2502
    %v2902 = vunpack.c.h.b16 %v2502
    %v2903 = vunpack.c.l.b16 %v2503
    %v2904 = vunpack.c.h.b16 %v2503
    %v2905 = vunpack.c.l.b16 %v2504
    %v2906 = vunpack.c.h.b16 %v2504
    %v2907 = vunpack.c.l.b16 %v2505
    %v2908 = vunpack.c.h.b16 %v2505
    %v2909 = vunpack.c.l.b16 %v2506
    %v2910 = vunpack.c.h.b16 %v2506
    %v2911 = vunpack.c.l.b16 %v2507
    %v2912 = vunpack.c.h.b16 %v2507
    %v2913 = vunpack.c.l.b16 %v2508
    %v2914 = vunpack.c.h.b16 %v2508
    %v2915 = vunpack.c.l.b16 %v2509
    %v2916 = vunpack.c.h.b16 %v2509
    %v2917 = vpack.c.b16 %v2665, %v2661
    %v2918 = vpack.c.b16 %v2666, %v2662
    %v2919 = vpack.c.b16 %v2667, %v2663
    %v2920 = vpack.c.b16 %v2668, %v2664
    %v2921 = vpack.c.b16 %v2673, %v2669
    %v2922 = vpack.c.b16 %v2674, %v2670
    %v2923 = vpack.c.b16 %v2675, %v2671
    %v2924 = vpack.c.b16 %v2676, %v2672
    %v2925 = vpack.c.b16 %v2681, %v2677
    %v2926 = vpack.c.b16 %v2682, %v2678
    %v2927 = vpack.c.b16 %v2683, %v2679
    %v2928 = vpack.c.b16 %v2684, %v2680
    %v2929 = vpack.c.b16 %v2689, %v2685
    %v2930 = vpack.c.b16 %v2690, %v2686
    %v2931 = vpack.c.b16 %v2691, %v2687
    %v2932 = vpack.c.b16 %v2692, %v2688
    %v2933 = vpack.c.b16 %v2697, %v2693
    %v2934 = vpack.c.b16 %v2698, %v2694
    %v2935 = vpack.c.b16 %v2699, %v2695
    %v2936 = vpack.c.b16 %v2700, %v2696
    %v2937 = vpack.c.b16 %v2705, %v2701
    %v2938 = vpack.c.b16 %v2706, %v2702
    %v2939 = vpack.c.b16 %v2707, %v2703
    %v2940 = vpack.c.b16 %v2708, %v2704
    %v2941 = vpack.c.b16 %v2713, %v2709
    %v2942 = vpack.c.b16 %v2714, %v2710
    %v2943 = vpack.c.b16 %v2715, %v2711
    %v2944 = vpack.c.b16 %v2716, %v2712
    %v2945 = vpack.c.b16 %v2721, %v2717
    %v2946 = vpack.c.b16 %v2722, %v2718
    %v2947 = vpack.c.b16 %v2723, %v2719
    %v2948 = vpack.c.b16 %v2724, %v2720
    %v2949 = vpack.c.b16 %v2729, %v2725
    %v2950 = vpack.c.b16 %v2730, %v2726
    %v2951 = vpack.c.b16 %v2731, %v2727
    %v2952 = vpack.c.b16 %v2732, %v2728
    %v2953 = vpack.c.b16 %v2737, %v2733
    %v2954 = vpack.c.b16 %v2738, %v2734
    %v2955 = vpack.c.b16 %v2739, %v2735
    %v2956 = vpack.c.b16 %v2740, %v2736
    %v2957 = vpack.c.b16 %v2745, %v2741
    %v2958 = vpack.c.b16 %v2746, %v2742
    %v2959 = vpack.c.b16 %v2747, %v2743
    %v2960 = vpack.c.b16 %v2748, %v2744
    %v2961 = vpack.c.b16 %v2753, %v2749
    %v2962 = vpack.c.b16 %v2754, %v2750
    %v2963 = vpack.c.b16 %v2755, %v2751
    %v2964 = vpack.c.b16 %v2756, %v2752
    %v2965 = vpack.c.b16 %v2761, %v2757
    %v2966 = vpack.c.b16 %v2762, %v2758
    %v2967 = vpack.c.b16 %v2763, %v2759
    %v2968 = vpack.c.b16 %v2764, %v2760
    %v2969 = vpack.c.b16 %v2769, %v2765
    %v2970 = vpack.c.b16 %v2770, %v2766
    %v2971 = vpack.c.b16 %v2771, %v2767
    %v2972 = vpack.c.b16 %v2772, %v2768
    %v2973 = vpack.c.b16 %v2777, %v2773
    %v2974 = vpack.c.b16 %v2778, %v2774
    %v2975 = vpack.c.b16 %v2779, %v2775
    %v2976 = vpack.c.b16 %v2780, %v2776
    %v2977 = vpack.c.b16 %v2785, %v2781
    %v2978 = vpack.c.b16 %v2786, %v2782
    %v2979 = vpack.c.b16 %v2787, %v2783
    %v2980 = vpack.c.b16 %v2788, %v2784
    %v2981 = vpack.c.b16 %v2793, %v2789
    %v2982 = vpack.c.b16 %v2794, %v2790
    %v2983 = vpack.c.b16 %v2795, %v2791
    %v2984 = vpack.c.b16 %v2796, %v2792
    %v2985 = vpack.c.b16 %v2801, %v2797
    %v2986 = vpack.c.b16 %v2802, %v2798
    %v2987 = vpack.c.b16 %v2803, %v2799
    %v2988 = vpack.c.b16 %v2804, %v2800
    %v2989 = vpack.c.b16 %v2809, %v2805
    %v2990 = vpack.c.b16 %v2810, %v2806
    %v2991 = vpack.c.b16 %v2811, %v2807
    %v2992 = vpack.c.b16 %v2812, %v2808
    %v2993 = vpack.c.b16 %v2817, %v2813
    %v2994 = vpack.c.b16 %v2818, %v2814
    %v2995 = vpack.c.b16 %v2819, %v2815
    %v2996 = vpack.c.b16 %v2820, %v2816
    %v2997 = vpack.c.b16 %v2825, %v2821
    %v2998 = vpack.c.b16 %v2826, %v2822
    %v2999 = vpack.c.b16 %v2827, %v2823
    %v3000 = vpack.c.b16 %v2828, %v2824
    %v3001 = vpack.c.b16 %v2833, %v2829
    %v3002 = vpack.c.b16 %v2834, %v2830
    %v3003 = vpack.c.b16 %v2835, %v2831
    %v3004 = vpack.c.b16 %v2836, %v2832
    %v3005 = vpack.c.b16 %v2841, %v2837
    %v3006 = vpack.c.b16 %v2842, %v2838
    %v3007 = vpack.c.b16 %v2843, %v2839
    %v3008 = vpack.c.b16 %v2844, %v2840
    %v3009 = vpack.c.b16 %v2849, %v2845
    %v3010 = vpack.c.b16 %v2850, %v2846
    %v3011 = vpack.c.b16 %v2851, %v2847
    %v3012 = vpack.c.b16 %v2852, %v2848
    %v3013 = vpack.c.b16 %v2857, %v2853
    %v3014 = vpack.c.b16 %v2858, %v2854
    %v3015 = vpack.c.b16 %v2859, %v2855
    %v3016 = vpack.c.b16 %v2860, %v2856
    %v3017 = vpack.c.b16 %v2865, %v2861
    %v3018 = vpack.c.b16 %v2866, %v2862
    %v3019 = vpack.c.b16 %v2867, %v2863
    %v3020 = vpack.c.b16 %v2868, %v2864
    %v3021 = vpack.c.b16 %v2873, %v2869
    %v3022 = vpack.c.b16 %v2874, %v2870
    %v3023 = vpack.c.b16 %v2875, %v2871
    %v3024 = vpack.c.b16 %v2876, %v2872
    %v3025 = vpack.c.b16 %v2881, %v2877
    %v3026 = vpack.c.b16 %v2882, %v2878
    %v3027 = vpack.c.b16 %v2883, %v2879
    %v3028 = vpack.c.b16 %v2884, %v2880
    %v3029 = vpack.c.b16 %v2889, %v2885
    %v3030 = vpack.c.b16 %v2890, %v2886
    %v3031 = vpack.c.b16 %v2891, %v2887
    %v3032 = vpack.c.b16 %v2892, %v2888
    %v3033 = vpack.c.b16 %v2897, %v2893
    %v3034 = vpack.c.b16 %v2898, %v2894
    %v3035 = vpack.c.b16 %v2899, %v2895
    %v3036 = vpack.c.b16 %v2900, %v2896
    %v3037 = vpack.c.b16 %v2905, %v2901
    %v3038 = vpack.c.b16 %v2906, %v2902
    %v3039 = vpack.c.b16 %v2907, %v2903
    %v3040 = vpack.c.b16 %v2908, %v2904
    %v3041 = vpack.c.b16 %v2913, %v2909
    %v3042 = vpack.c.b16 %v2914, %v2910
    %v3043 = vpack.c.b16 %v2915, %v2911
    %v3044 = vpack.c.b16 %v2916, %v2912
    %3173 = vmatprep.subr.bf16.mxu0 %v2918
    %3174 = vmatpush1.bf16.msra.mxu0 %v2917
    %3175 = vmatprep.subr.bf16.mxu0 %v2922
    %3176 = vmatpush1.bf16.msra.mxu0 %v2921
    %3177 = vmatprep.subr.bf16.mxu0 %v2926
    %3178 = vmatpush1.bf16.msra.mxu0 %v2925
    %3179 = vmatprep.subr.bf16.mxu0 %v2930
    %3180 = vmatpush1.bf16.msra.mxu0 %v2929
    %3181 = vmatprep.subr.bf16.mxu0 %v2934
    %3182 = vmatpush1.bf16.msra.mxu0 %v2933
    %3183 = vmatprep.subr.bf16.mxu0 %v2938
    %3184 = vmatpush1.bf16.msra.mxu0 %v2937
    %3185 = vmatprep.subr.bf16.mxu0 %v2942
    %3186 = vmatpush1.bf16.msra.mxu0 %v2941
    %3187 = vmatprep.subr.bf16.mxu0 %v2946
    %3188 = vmatpush1.bf16.msra.mxu0 %v2945
    %3189 = vmatprep.subr.bf16.mxu0 %v2950
    %3190 = vmatpush1.bf16.msra.mxu0 %v2949
    %3191 = vmatprep.subr.bf16.mxu0 %v2954
    %3192 = vmatpush1.bf16.msra.mxu0 %v2953
    %3193 = vmatprep.subr.bf16.mxu0 %v2958
    %3194 = vmatpush1.bf16.msra.mxu0 %v2957
    %3195 = vmatprep.subr.bf16.mxu0 %v2962
    %3196 = vmatpush1.bf16.msra.mxu0 %v2961
    %3197 = vmatprep.subr.bf16.mxu0 %v2966
    %3198 = vmatpush1.bf16.msra.mxu0 %v2965
    %3199 = vmatprep.subr.bf16.mxu0 %v2970
    %3200 = vmatpush1.bf16.msra.mxu0 %v2969
    %3201 = vmatprep.subr.bf16.mxu0 %v2974
    %3202 = vmatpush1.bf16.msra.mxu0 %v2973
    %3203 = vmatprep.subr.bf16.mxu0 %v2978
    %3204 = vmatpush1.bf16.msra.mxu0 %v2977
    %3205 = vmatprep.mubr.bf16.mxu0 %v2379
    %3206 = vmatmul.mubr.bf16.gmra.mrb[0].mxu0 %v2378
    %v3207 = vpop.f32.mrb[0].mxu0
    %v3208 = vadd.f32 %v2516, %v3207
    %v3209 = vpop.f32.mrb[0].mxu0
    %v3210 = vadd.f32 %v2520, %v3209
    %v3211 = vpop.f32.mrb[0].mxu0
    %v3212 = vadd.f32 %v2516, %v3211
    %v3213 = vpop.f32.mrb[0].mxu0
    %v3214 = vadd.f32 %v2520, %v3213
    %3215 = vdwg.mxu0
    %3216 = vmatprep.subr.bf16.mxu0 %v2982
    %3217 = vmatpush1.bf16.msra.mxu0 %v2981
    %3218 = vmatprep.subr.bf16.mxu0 %v2986
    %3219 = vmatpush1.bf16.msra.mxu0 %v2985
    %3220 = vmatprep.subr.bf16.mxu0 %v2990
    %3221 = vmatpush1.bf16.msra.mxu0 %v2989
    %3222 = vmatprep.subr.bf16.mxu0 %v2994
    %3223 = vmatpush1.bf16.msra.mxu0 %v2993
    %3224 = vmatprep.subr.bf16.mxu0 %v2998
    %3225 = vmatpush1.bf16.msra.mxu0 %v2997
    %3226 = vmatprep.subr.bf16.mxu0 %v3002
    %3227 = vmatpush1.bf16.msra.mxu0 %v3001
    %3228 = vmatprep.subr.bf16.mxu0 %v3006
    %3229 = vmatpush1.bf16.msra.mxu0 %v3005
    %3230 = vmatprep.subr.bf16.mxu0 %v3010
    %3231 = vmatpush1.bf16.msra.mxu0 %v3009
    %3232 = vmatprep.subr.bf16.mxu0 %v3014
    %3233 = vmatpush1.bf16.msra.mxu0 %v3013
    %3234 = vmatprep.subr.bf16.mxu0 %v3018
    %3235 = vmatpush1.bf16.msra.mxu0 %v3017
    %3236 = vmatprep.subr.bf16.mxu0 %v3022
    %3237 = vmatpush1.bf16.msra.mxu0 %v3021
    %3238 = vmatprep.subr.bf16.mxu0 %v3026
    %3239 = vmatpush1.bf16.msra.mxu0 %v3025
    %3240 = vmatprep.subr.bf16.mxu0 %v3030
    %3241 = vmatpush1.bf16.msra.mxu0 %v3029
    %3242 = vmatprep.subr.bf16.mxu0 %v3034
    %3243 = vmatpush1.bf16.msra.mxu0 %v3033
    %3244 = vmatprep.subr.bf16.mxu0 %v3038
    %3245 = vmatpush1.bf16.msra.mxu0 %v3037
    %3246 = vmatprep.subr.bf16.mxu0 %v3042
    %3247 = vmatpush1.bf16.msra.mxu0 %v3041
    %3248 = vmatprep.mubr.bf16.mxu0 %v2381
    %3249 = vmatmul.mubr.bf16.gmra.mrb[0].mxu0 %v2380
    %v3250 = vpop.f32.mrb[0].mxu0
    %v3251 = vadd.f32 %v3208, %v3250
    %v3252 = vpop.f32.mrb[0].mxu0
    %v3253 = vadd.f32 %v3210, %v3252
    %v3254 = vpop.f32.mrb[0].mxu0
    %v3255 = vadd.f32 %v3212, %v3254
    %v3256 = vpop.f32.mrb[0].mxu0
    %v3257 = vadd.f32 %v3214, %v3256
    %3258 = vdwg.mxu0
    %3259 = vmatprep.subr.bf16.mxu0 %v2920
    %3260 = vmatpush1.bf16.msra.mxu0 %v2919
    %3261 = vmatprep.subr.bf16.mxu0 %v2924
    %3262 = vmatpush1.bf16.msra.mxu0 %v2923
    %3263 = vmatprep.subr.bf16.mxu0 %v2928
    %3264 = vmatpush1.bf16.msra.mxu0 %v2927
    %3265 = vmatprep.subr.bf16.mxu0 %v2932
    %3266 = vmatpush1.bf16.msra.mxu0 %v2931
    %3267 = vmatprep.subr.bf16.mxu0 %v2936
    %3268 = vmatpush1.bf16.msra.mxu0 %v2935
    %3269 = vmatprep.subr.bf16.mxu0 %v2940
    %3270 = vmatpush1.bf16.msra.mxu0 %v2939
    %3271 = vmatprep.subr.bf16.mxu0 %v2944
    %3272 = vmatpush1.bf16.msra.mxu0 %v2943
    %3273 = vmatprep.subr.bf16.mxu0 %v2948
    %3274 = vmatpush1.bf16.msra.mxu0 %v2947
    %3275 = vmatprep.subr.bf16.mxu0 %v2952
    %3276 = vmatpush1.bf16.msra.mxu0 %v2951
    %3277 = vmatprep.subr.bf16.mxu0 %v2956
    %3278 = vmatpush1.bf16.msra.mxu0 %v2955
    %3279 = vmatprep.subr.bf16.mxu0 %v2960
    %3280 = vmatpush1.bf16.msra.mxu0 %v2959
    %3281 = vmatprep.subr.bf16.mxu0 %v2964
    %3282 = vmatpush1.bf16.msra.mxu0 %v2963
    %3283 = vmatprep.subr.bf16.mxu0 %v2968
    %3284 = vmatpush1.bf16.msra.mxu0 %v2967
    %3285 = vmatprep.subr.bf16.mxu0 %v2972
    %3286 = vmatpush1.bf16.msra.mxu0 %v2971
    %3287 = vmatprep.subr.bf16.mxu0 %v2976
    %3288 = vmatpush1.bf16.msra.mxu0 %v2975
    %3289 = vmatprep.subr.bf16.mxu0 %v2980
    %3290 = vmatpush1.bf16.msra.mxu0 %v2979
    %3291 = vmatprep.mubr.bf16.mxu0 %v2379
    %3292 = vmatmul.mubr.bf16.gmra.mrb[0].mxu0 %v2378
    %v3293 = vpop.f32.mrb[0].mxu0
    %v3294 = vadd.f32 %v2524, %v3293
    %v3295 = vpop.f32.mrb[0].mxu0
    %v3296 = vadd.f32 %v2528, %v3295
    %v3297 = vpop.f32.mrb[0].mxu0
    %v3298 = vadd.f32 %v2524, %v3297
    %v3299 = vpop.f32.mrb[0].mxu0
    %v3300 = vadd.f32 %v2528, %v3299
    %3301 = vdwg.mxu0
    %3302 = vmatprep.subr.bf16.mxu0 %v2984
    %3303 = vmatpush1.bf16.msra.mxu0 %v2983
    %3304 = vmatprep.subr.bf16.mxu0 %v2988
    %3305 = vmatpush1.bf16.msra.mxu0 %v2987
    %3306 = vmatprep.subr.bf16.mxu0 %v2992
    %3307 = vmatpush1.bf16.msra.mxu0 %v2991
    %3308 = vmatprep.subr.bf16.mxu0 %v2996
    %3309 = vmatpush1.bf16.msra.mxu0 %v2995
    %3310 = vmatprep.subr.bf16.mxu0 %v3000
    %3311 = vmatpush1.bf16.msra.mxu0 %v2999
    %3312 = vmatprep.subr.bf16.mxu0 %v3004
    %3313 = vmatpush1.bf16.msra.mxu0 %v3003
    %3314 = vmatprep.subr.bf16.mxu0 %v3008
    %3315 = vmatpush1.bf16.msra.mxu0 %v3007
    %3316 = vmatprep.subr.bf16.mxu0 %v3012
    %3317 = vmatpush1.bf16.msra.mxu0 %v3011
    %3318 = vmatprep.subr.bf16.mxu0 %v3016
    %3319 = vmatpush1.bf16.msra.mxu0 %v3015
    %3320 = vmatprep.subr.bf16.mxu0 %v3020
    %3321 = vmatpush1.bf16.msra.mxu0 %v3019
    %3322 = vmatprep.subr.bf16.mxu0 %v3024
    %3323 = vmatpush1.bf16.msra.mxu0 %v3023
    %3324 = vmatprep.subr.bf16.mxu0 %v3028
    %3325 = vmatpush1.bf16.msra.mxu0 %v3027
    %3326 = vmatprep.subr.bf16.mxu0 %v3032
    %3327 = vmatpush1.bf16.msra.mxu0 %v3031
    %3328 = vmatprep.subr.bf16.mxu0 %v3036
    %3329 = vmatpush1.bf16.msra.mxu0 %v3035
    %3330 = vmatprep.subr.bf16.mxu0 %v3040
    %3331 = vmatpush1.bf16.msra.mxu0 %v3039
    %3332 = vmatprep.subr.bf16.mxu0 %v3044
    %3333 = vmatpush1.bf16.msra.mxu0 %v3043
    %3334 = vmatprep.mubr.bf16.mxu0 %v2381
    %3335 = vmatmul.mubr.bf16.gmra.mrb[0].mxu0 %v2380
    %v3336 = vpop.f32.mrb[0].mxu0
    %v3337 = vadd.f32 %v3294, %v3336
    %v3338 = vpop.f32.mrb[0].mxu0
    %v3339 = vadd.f32 %v3296, %v3338
    %v3340 = vpop.f32.mrb[0].mxu0
    %v3341 = vadd.f32 %v3298, %v3340
    %v3342 = vpop.f32.mrb[0].mxu0
    %v3343 = vadd.f32 %v3300, %v3342
    %3344 = vdwg.mxu0
    %v3345 = vmax.f32 %v3251, 0.0
    %v3346 = vmax.f32 %v3253, 0.0
    %v3347 = vmax.f32 %v3337, 0.0
    %v3348 = vmax.f32 %v3339, 0.0
    %v3349 = vmax.f32 %v3255, 0.0
    %v3350 = vmax.f32 %v3257, 0.0
    %v3351 = vmax.f32 %v3341, 0.0
    %v3352 = vmax.f32 %v3343, 0.0
    %v3353 = vpack.c.bf16 %v3349, %v3345
    %v3354 = vpack.c.bf16 %v3350, %v3346
    %v3355 = vpack.c.bf16 %v3351, %v3347
    %v3356 = vpack.c.bf16 %v3352, %v3348
    %v3357 = vld [vmem:[#allocation9] sm:$0xff]
    %v3358 = vld [vmem:[#allocation9 + $0x8] sm:$0xff]
    %v3359 = vld [vmem:[#allocation9 + $0x10] sm:$0xff]
    %v3360 = vld [vmem:[#allocation9 + $0x18] sm:$0xff]
    %v3361 = vld [vmem:[#allocation9 + $0x20] sm:$0xff]
    %v3362 = vld [vmem:[#allocation9 + $0x28] sm:$0xff]
    %v3363 = vld [vmem:[#allocation9 + $0x30] sm:$0xff]
    %v3364 = vld [vmem:[#allocation9 + $0x38] sm:$0xff]
    %v3365 = vld [vmem:[#allocation9 + $0x40] sm:$0xff]
    %v3366 = vld [vmem:[#allocation9 + $0x48] sm:$0xff]
    %v3367 = vld [vmem:[#allocation9 + $0x50] sm:$0xff]
    %v3368 = vld [vmem:[#allocation9 + $0x58] sm:$0xff]
    %v3369 = vld [vmem:[#allocation9 + $0x60] sm:$0xff]
    %v3370 = vld [vmem:[#allocation9 + $0x68] sm:$0xff]
    %v3371 = vld [vmem:[#allocation9 + $0x70] sm:$0xff]
    %v3372 = vld [vmem:[#allocation9 + $0x78] sm:$0xff]
    %v3373 = vld [vmem:[#allocation9 + $0x80] sm:$0xff]
    %v3374 = vld [vmem:[#allocation9 + $0x88] sm:$0xff]
    %v3375 = vld [vmem:[#allocation9 + $0x90] sm:$0xff]
    %v3376 = vld [vmem:[#allocation9 + $0x98] sm:$0xff]
    %v3377 = vld [vmem:[#allocation9 + $0xa0] sm:$0xff]
    %v3378 = vld [vmem:[#allocation9 + $0xa8] sm:$0xff]
    %v3379 = vld [vmem:[#allocation9 + $0xb0] sm:$0xff]
    %v3380 = vld [vmem:[#allocation9 + $0xb8] sm:$0xff]
    %v3381 = vld [vmem:[#allocation9 + $0xc0] sm:$0xff]
    %v3382 = vld [vmem:[#allocation9 + $0xc8] sm:$0xff]
    %v3383 = vld [vmem:[#allocation9 + $0xd0] sm:$0xff]
    %v3384 = vld [vmem:[#allocation9 + $0xd8] sm:$0xff]
    %v3385 = vld [vmem:[#allocation9 + $0xe0] sm:$0xff]
    %v3386 = vld [vmem:[#allocation9 + $0xe8] sm:$0xff]
    %v3387 = vld [vmem:[#allocation9 + $0xf0] sm:$0xff]
    %v3388 = vld [vmem:[#allocation9 + $0xf8] sm:$0xff]
    %v3389 = vld [vmem:[#allocation9 + $0x100] sm:$0xff]
    %v3390 = vld [vmem:[#allocation9 + $0x108] sm:$0xff]
    %v3391 = vld [vmem:[#allocation9 + $0x110] sm:$0xff]
    %v3392 = vld [vmem:[#allocation9 + $0x118] sm:$0xff]
    %v3393 = vld [vmem:[#allocation9 + $0x120] sm:$0xff]
    %v3394 = vld [vmem:[#allocation9 + $0x128] sm:$0xff]
    %v3395 = vld [vmem:[#allocation9 + $0x130] sm:$0xff]
    %v3396 = vld [vmem:[#allocation9 + $0x138] sm:$0xff]
    %v3397 = vld [vmem:[#allocation9 + $0x140] sm:$0xff]
    %v3398 = vld [vmem:[#allocation9 + $0x148] sm:$0xff]
    %v3399 = vld [vmem:[#allocation9 + $0x150] sm:$0xff]
    %v3400 = vld [vmem:[#allocation9 + $0x158] sm:$0xff]
    %v3401 = vld [vmem:[#allocation9 + $0x160] sm:$0xff]
    %v3402 = vld [vmem:[#allocation9 + $0x168] sm:$0xff]
    %v3403 = vld [vmem:[#allocation9 + $0x170] sm:$0xff]
    %v3404 = vld [vmem:[#allocation9 + $0x178] sm:$0xff]
    %v3405 = vld [vmem:[#allocation9 + $0x180] sm:$0xff]
    %v3406 = vld [vmem:[#allocation9 + $0x188] sm:$0xff]
    %v3407 = vld [vmem:[#allocation9 + $0x190] sm:$0xff]
    %v3408 = vld [vmem:[#allocation9 + $0x198] sm:$0xff]
    %v3409 = vld [vmem:[#allocation9 + $0x1a0] sm:$0xff]
    %v3410 = vld [vmem:[#allocation9 + $0x1a8] sm:$0xff]
    %v3411 = vld [vmem:[#allocation9 + $0x1b0] sm:$0xff]
    %v3412 = vld [vmem:[#allocation9 + $0x1b8] sm:$0xff]
    %v3413 = vld [vmem:[#allocation9 + $0x1c0] sm:$0xff]
    %v3414 = vld [vmem:[#allocation9 + $0x1c8] sm:$0xff]
    %v3415 = vld [vmem:[#allocation9 + $0x1d0] sm:$0xff]
    %v3416 = vld [vmem:[#allocation9 + $0x1d8] sm:$0xff]
    %v3417 = vld [vmem:[#allocation9 + $0x1e0] sm:$0xff]
    %v3418 = vld [vmem:[#allocation9 + $0x1e8] sm:$0xff]
    %v3419 = vld [vmem:[#allocation9 + $0x1f0] sm:$0xff]
    %v3420 = vld [vmem:[#allocation9 + $0x1f8] sm:$0xff]
    %v3421 = vld [vmem:[#allocation9 + $0x200] sm:$0xff]
    %v3422 = vld [vmem:[#allocation9 + $0x208] sm:$0xff]
    %v3423 = vld [vmem:[#allocation9 + $0x210] sm:$0xff]
    %v3424 = vld [vmem:[#allocation9 + $0x218] sm:$0xff]
    %v3425 = vld [vmem:[#allocation9 + $0x220] sm:$0xff]
    %v3426 = vld [vmem:[#allocation9 + $0x228] sm:$0xff]
    %v3427 = vld [vmem:[#allocation9 + $0x230] sm:$0xff]
    %v3428 = vld [vmem:[#allocation9 + $0x238] sm:$0xff]
    %v3429 = vld [vmem:[#allocation9 + $0x240] sm:$0xff]
    %v3430 = vld [vmem:[#allocation9 + $0x248] sm:$0xff]
    %v3431 = vld [vmem:[#allocation9 + $0x250] sm:$0xff]
    %v3432 = vld [vmem:[#allocation9 + $0x258] sm:$0xff]
    %v3433 = vld [vmem:[#allocation9 + $0x260] sm:$0xff]
    %v3434 = vld [vmem:[#allocation9 + $0x268] sm:$0xff]
    %v3435 = vld [vmem:[#allocation9 + $0x270] sm:$0xff]
    %v3436 = vld [vmem:[#allocation9 + $0x278] sm:$0xff]
    %v3437 = vld [vmem:[#allocation9 + $0x280] sm:$0xff]
    %v3438 = vld [vmem:[#allocation9 + $0x288] sm:$0xff]
    %v3439 = vld [vmem:[#allocation9 + $0x290] sm:$0xff]
    %v3440 = vld [vmem:[#allocation9 + $0x298] sm:$0xff]
    %v3441 = vld [vmem:[#allocation9 + $0x2a0] sm:$0xff]
    %v3442 = vld [vmem:[#allocation9 + $0x2a8] sm:$0xff]
    %v3443 = vld [vmem:[#allocation9 + $0x2b0] sm:$0xff]
    %v3444 = vld [vmem:[#allocation9 + $0x2b8] sm:$0xff]
    %v3445 = vld [vmem:[#allocation9 + $0x2c0] sm:$0xff]
    %v3446 = vld [vmem:[#allocation9 + $0x2c8] sm:$0xff]
    %v3447 = vld [vmem:[#allocation9 + $0x2d0] sm:$0xff]
    %v3448 = vld [vmem:[#allocation9 + $0x2d8] sm:$0xff]
    %v3449 = vld [vmem:[#allocation9 + $0x2e0] sm:$0xff]
    %v3450 = vld [vmem:[#allocation9 + $0x2e8] sm:$0xff]
    %v3451 = vld [vmem:[#allocation9 + $0x2f0] sm:$0xff]
    %v3452 = vld [vmem:[#allocation9 + $0x2f8] sm:$0xff]
    %v3453 = vld [vmem:[#allocation9 + $0x300] sm:$0xff]
    %v3454 = vld [vmem:[#allocation9 + $0x308] sm:$0xff]
    %v3455 = vld [vmem:[#allocation9 + $0x310] sm:$0xff]
    %v3456 = vld [vmem:[#allocation9 + $0x318] sm:$0xff]
    %v3457 = vld [vmem:[#allocation9 + $0x320] sm:$0xff]
    %v3458 = vld [vmem:[#allocation9 + $0x328] sm:$0xff]
    %v3459 = vld [vmem:[#allocation9 + $0x330] sm:$0xff]
    %v3460 = vld [vmem:[#allocation9 + $0x338] sm:$0xff]
    %v3461 = vld [vmem:[#allocation9 + $0x340] sm:$0xff]
    %v3462 = vld [vmem:[#allocation9 + $0x348] sm:$0xff]
    %v3463 = vld [vmem:[#allocation9 + $0x350] sm:$0xff]
    %v3464 = vld [vmem:[#allocation9 + $0x358] sm:$0xff]
    %v3465 = vld [vmem:[#allocation9 + $0x360] sm:$0xff]
    %v3466 = vld [vmem:[#allocation9 + $0x368] sm:$0xff]
    %v3467 = vld [vmem:[#allocation9 + $0x370] sm:$0xff]
    %v3468 = vld [vmem:[#allocation9 + $0x378] sm:$0xff]
    %v3469 = vld [vmem:[#allocation9 + $0x380] sm:$0xff]
    %v3470 = vld [vmem:[#allocation9 + $0x388] sm:$0xff]
    %v3471 = vld [vmem:[#allocation9 + $0x390] sm:$0xff]
    %v3472 = vld [vmem:[#allocation9 + $0x398] sm:$0xff]
    %v3473 = vld [vmem:[#allocation9 + $0x3a0] sm:$0xff]
    %v3474 = vld [vmem:[#allocation9 + $0x3a8] sm:$0xff]
    %v3475 = vld [vmem:[#allocation9 + $0x3b0] sm:$0xff]
    %v3476 = vld [vmem:[#allocation9 + $0x3b8] sm:$0xff]
    %v3477 = vld [vmem:[#allocation9 + $0x3c0] sm:$0xff]
    %v3478 = vld [vmem:[#allocation9 + $0x3c8] sm:$0xff]
    %v3479 = vld [vmem:[#allocation9 + $0x3d0] sm:$0xff]
    %v3480 = vld [vmem:[#allocation9 + $0x3d8] sm:$0xff]
    %v3481 = vld [vmem:[#allocation9 + $0x3e0] sm:$0xff]
    %v3482 = vld [vmem:[#allocation9 + $0x3e8] sm:$0xff]
    %v3483 = vld [vmem:[#allocation9 + $0x3f0] sm:$0xff]
    %v3484 = vld [vmem:[#allocation9 + $0x3f8] sm:$0xff]
    %s3485 = scalar_lea.vmem %s7, 4
    %v3486 = vld [vmem:[%s3485] ss:$8 sm:$0xf]
    %v3488 = vlaneseq
    %v3489 = vshrl.u32 %v3488, 7
    %v3490 = vsub.s32 0, %v3489
    %v3491 = vrot.slane %v3486, %v3490
    %v3492 = vlaneseq
    %v3493 = vshrl.u32 %v3492, 7
    %v3494 = vsub.s32 1, %v3493
    %v3495 = vrot.slane %v3486, %v3494
    %v3496 = vlaneseq
    %v3497 = vshrl.u32 %v3496, 7
    %v3498 = vsub.s32 2, %v3497
    %v3499 = vrot.slane %v3486, %v3498
    %v3500 = vlaneseq
    %v3501 = vshrl.u32 %v3500, 7
    %v3502 = vsub.s32 3, %v3501
    %v3503 = vrot.slane %v3486, %v3502
    %v3636 = vunpack.c.l.b16 %v3357
    %v3637 = vunpack.c.h.b16 %v3357
    %v3638 = vunpack.c.l.b16 %v3358
    %v3639 = vunpack.c.h.b16 %v3358
    %v3640 = vunpack.c.l.b16 %v3359
    %v3641 = vunpack.c.h.b16 %v3359
    %v3642 = vunpack.c.l.b16 %v3360
    %v3643 = vunpack.c.h.b16 %v3360
    %v3644 = vunpack.c.l.b16 %v3361
    %v3645 = vunpack.c.h.b16 %v3361
    %v3646 = vunpack.c.l.b16 %v3362
    %v3647 = vunpack.c.h.b16 %v3362
    %v3648 = vunpack.c.l.b16 %v3363
    %v3649 = vunpack.c.h.b16 %v3363
    %v3650 = vunpack.c.l.b16 %v3364
    %v3651 = vunpack.c.h.b16 %v3364
    %v3652 = vunpack.c.l.b16 %v3365
    %v3653 = vunpack.c.h.b16 %v3365
    %v3654 = vunpack.c.l.b16 %v3366
    %v3655 = vunpack.c.h.b16 %v3366
    %v3656 = vunpack.c.l.b16 %v3367
    %v3657 = vunpack.c.h.b16 %v3367
    %v3658 = vunpack.c.l.b16 %v3368
    %v3659 = vunpack.c.h.b16 %v3368
    %v3660 = vunpack.c.l.b16 %v3369
    %v3661 = vunpack.c.h.b16 %v3369
    %v3662 = vunpack.c.l.b16 %v3370
    %v3663 = vunpack.c.h.b16 %v3370
    %v3664 = vunpack.c.l.b16 %v3371
    %v3665 = vunpack.c.h.b16 %v3371
    %v3666 = vunpack.c.l.b16 %v3372
    %v3667 = vunpack.c.h.b16 %v3372
    %v3668 = vunpack.c.l.b16 %v3373
    %v3669 = vunpack.c.h.b16 %v3373
    %v3670 = vunpack.c.l.b16 %v3374
    %v3671 = vunpack.c.h.b16 %v3374
    %v3672 = vunpack.c.l.b16 %v3375
    %v3673 = vunpack.c.h.b16 %v3375
    %v3674 = vunpack.c.l.b16 %v3376
    %v3675 = vunpack.c.h.b16 %v3376
    %v3676 = vunpack.c.l.b16 %v3377
    %v3677 = vunpack.c.h.b16 %v3377
    %v3678 = vunpack.c.l.b16 %v3378
    %v3679 = vunpack.c.h.b16 %v3378
    %v3680 = vunpack.c.l.b16 %v3379
    %v3681 = vunpack.c.h.b16 %v3379
    %v3682 = vunpack.c.l.b16 %v3380
    %v3683 = vunpack.c.h.b16 %v3380
    %v3684 = vunpack.c.l.b16 %v3381
    %v3685 = vunpack.c.h.b16 %v3381
    %v3686 = vunpack.c.l.b16 %v3382
    %v3687 = vunpack.c.h.b16 %v3382
    %v3688 = vunpack.c.l.b16 %v3383
    %v3689 = vunpack.c.h.b16 %v3383
    %v3690 = vunpack.c.l.b16 %v3384
    %v3691 = vunpack.c.h.b16 %v3384
    %v3692 = vunpack.c.l.b16 %v3385
    %v3693 = vunpack.c.h.b16 %v3385
    %v3694 = vunpack.c.l.b16 %v3386
    %v3695 = vunpack.c.h.b16 %v3386
    %v3696 = vunpack.c.l.b16 %v3387
    %v3697 = vunpack.c.h.b16 %v3387
    %v3698 = vunpack.c.l.b16 %v3388
    %v3699 = vunpack.c.h.b16 %v3388
    %v3700 = vunpack.c.l.b16 %v3389
    %v3701 = vunpack.c.h.b16 %v3389
    %v3702 = vunpack.c.l.b16 %v3390
    %v3703 = vunpack.c.h.b16 %v3390
    %v3704 = vunpack.c.l.b16 %v3391
    %v3705 = vunpack.c.h.b16 %v3391
    %v3706 = vunpack.c.l.b16 %v3392
    %v3707 = vunpack.c.h.b16 %v3392
    %v3708 = vunpack.c.l.b16 %v3393
    %v3709 = vunpack.c.h.b16 %v3393
    %v3710 = vunpack.c.l.b16 %v3394
    %v3711 = vunpack.c.h.b16 %v3394
    %v3712 = vunpack.c.l.b16 %v3395
    %v3713 = vunpack.c.h.b16 %v3395
    %v3714 = vunpack.c.l.b16 %v3396
    %v3715 = vunpack.c.h.b16 %v3396
    %v3716 = vunpack.c.l.b16 %v3397
    %v3717 = vunpack.c.h.b16 %v3397
    %v3718 = vunpack.c.l.b16 %v3398
    %v3719 = vunpack.c.h.b16 %v3398
    %v3720 = vunpack.c.l.b16 %v3399
    %v3721 = vunpack.c.h.b16 %v3399
    %v3722 = vunpack.c.l.b16 %v3400
    %v3723 = vunpack.c.h.b16 %v3400
    %v3724 = vunpack.c.l.b16 %v3401
    %v3725 = vunpack.c.h.b16 %v3401
    %v3726 = vunpack.c.l.b16 %v3402
    %v3727 = vunpack.c.h.b16 %v3402
    %v3728 = vunpack.c.l.b16 %v3403
    %v3729 = vunpack.c.h.b16 %v3403
    %v3730 = vunpack.c.l.b16 %v3404
    %v3731 = vunpack.c.h.b16 %v3404
    %v3732 = vunpack.c.l.b16 %v3405
    %v3733 = vunpack.c.h.b16 %v3405
    %v3734 = vunpack.c.l.b16 %v3406
    %v3735 = vunpack.c.h.b16 %v3406
    %v3736 = vunpack.c.l.b16 %v3407
    %v3737 = vunpack.c.h.b16 %v3407
    %v3738 = vunpack.c.l.b16 %v3408
    %v3739 = vunpack.c.h.b16 %v3408
    %v3740 = vunpack.c.l.b16 %v3409
    %v3741 = vunpack.c.h.b16 %v3409
    %v3742 = vunpack.c.l.b16 %v3410
    %v3743 = vunpack.c.h.b16 %v3410
    %v3744 = vunpack.c.l.b16 %v3411
    %v3745 = vunpack.c.h.b16 %v3411
    %v3746 = vunpack.c.l.b16 %v3412
    %v3747 = vunpack.c.h.b16 %v3412
    %v3748 = vunpack.c.l.b16 %v3413
    %v3749 = vunpack.c.h.b16 %v3413
    %v3750 = vunpack.c.l.b16 %v3414
    %v3751 = vunpack.c.h.b16 %v3414
    %v3752 = vunpack.c.l.b16 %v3415
    %v3753 = vunpack.c.h.b16 %v3415
    %v3754 = vunpack.c.l.b16 %v3416
    %v3755 = vunpack.c.h.b16 %v3416
    %v3756 = vunpack.c.l.b16 %v3417
    %v3757 = vunpack.c.h.b16 %v3417
    %v3758 = vunpack.c.l.b16 %v3418
    %v3759 = vunpack.c.h.b16 %v3418
    %v3760 = vunpack.c.l.b16 %v3419
    %v3761 = vunpack.c.h.b16 %v3419
    %v3762 = vunpack.c.l.b16 %v3420
    %v3763 = vunpack.c.h.b16 %v3420
    %v3764 = vunpack.c.l.b16 %v3421
    %v3765 = vunpack.c.h.b16 %v3421
    %v3766 = vunpack.c.l.b16 %v3422
    %v3767 = vunpack.c.h.b16 %v3422
    %v3768 = vunpack.c.l.b16 %v3423
    %v3769 = vunpack.c.h.b16 %v3423
    %v3770 = vunpack.c.l.b16 %v3424
    %v3771 = vunpack.c.h.b16 %v3424
    %v3772 = vunpack.c.l.b16 %v3425
    %v3773 = vunpack.c.h.b16 %v3425
    %v3774 = vunpack.c.l.b16 %v3426
    %v3775 = vunpack.c.h.b16 %v3426
    %v3776 = vunpack.c.l.b16 %v3427
    %v3777 = vunpack.c.h.b16 %v3427
    %v3778 = vunpack.c.l.b16 %v3428
    %v3779 = vunpack.c.h.b16 %v3428
    %v3780 = vunpack.c.l.b16 %v3429
    %v3781 = vunpack.c.h.b16 %v3429
    %v3782 = vunpack.c.l.b16 %v3430
    %v3783 = vunpack.c.h.b16 %v3430
    %v3784 = vunpack.c.l.b16 %v3431
    %v3785 = vunpack.c.h.b16 %v3431
    %v3786 = vunpack.c.l.b16 %v3432
    %v3787 = vunpack.c.h.b16 %v3432
    %v3788 = vunpack.c.l.b16 %v3433
    %v3789 = vunpack.c.h.b16 %v3433
    %v3790 = vunpack.c.l.b16 %v3434
    %v3791 = vunpack.c.h.b16 %v3434
    %v3792 = vunpack.c.l.b16 %v3435
    %v3793 = vunpack.c.h.b16 %v3435
    %v3794 = vunpack.c.l.b16 %v3436
    %v3795 = vunpack.c.h.b16 %v3436
    %v3796 = vunpack.c.l.b16 %v3437
    %v3797 = vunpack.c.h.b16 %v3437
    %v3798 = vunpack.c.l.b16 %v3438
    %v3799 = vunpack.c.h.b16 %v3438
    %v3800 = vunpack.c.l.b16 %v3439
    %v3801 = vunpack.c.h.b16 %v3439
    %v3802 = vunpack.c.l.b16 %v3440
    %v3803 = vunpack.c.h.b16 %v3440
    %v3804 = vunpack.c.l.b16 %v3441
    %v3805 = vunpack.c.h.b16 %v3441
    %v3806 = vunpack.c.l.b16 %v3442
    %v3807 = vunpack.c.h.b16 %v3442
    %v3808 = vunpack.c.l.b16 %v3443
    %v3809 = vunpack.c.h.b16 %v3443
    %v3810 = vunpack.c.l.b16 %v3444
    %v3811 = vunpack.c.h.b16 %v3444
    %v3812 = vunpack.c.l.b16 %v3445
    %v3813 = vunpack.c.h.b16 %v3445
    %v3814 = vunpack.c.l.b16 %v3446
    %v3815 = vunpack.c.h.b16 %v3446
    %v3816 = vunpack.c.l.b16 %v3447
    %v3817 = vunpack.c.h.b16 %v3447
    %v3818 = vunpack.c.l.b16 %v3448
    %v3819 = vunpack.c.h.b16 %v3448
    %v3820 = vunpack.c.l.b16 %v3449
    %v3821 = vunpack.c.h.b16 %v3449
    %v3822 = vunpack.c.l.b16 %v3450
    %v3823 = vunpack.c.h.b16 %v3450
    %v3824 = vunpack.c.l.b16 %v3451
    %v3825 = vunpack.c.h.b16 %v3451
    %v3826 = vunpack.c.l.b16 %v3452
    %v3827 = vunpack.c.h.b16 %v3452
    %v3828 = vunpack.c.l.b16 %v3453
    %v3829 = vunpack.c.h.b16 %v3453
    %v3830 = vunpack.c.l.b16 %v3454
    %v3831 = vunpack.c.h.b16 %v3454
    %v3832 = vunpack.c.l.b16 %v3455
    %v3833 = vunpack.c.h.b16 %v3455
    %v3834 = vunpack.c.l.b16 %v3456
    %v3835 = vunpack.c.h.b16 %v3456
    %v3836 = vunpack.c.l.b16 %v3457
    %v3837 = vunpack.c.h.b16 %v3457
    %v3838 = vunpack.c.l.b16 %v3458
    %v3839 = vunpack.c.h.b16 %v3458
    %v3840 = vunpack.c.l.b16 %v3459
    %v3841 = vunpack.c.h.b16 %v3459
    %v3842 = vunpack.c.l.b16 %v3460
    %v3843 = vunpack.c.h.b16 %v3460
    %v3844 = vunpack.c.l.b16 %v3461
    %v3845 = vunpack.c.h.b16 %v3461
    %v3846 = vunpack.c.l.b16 %v3462
    %v3847 = vunpack.c.h.b16 %v3462
    %v3848 = vunpack.c.l.b16 %v3463
    %v3849 = vunpack.c.h.b16 %v3463
    %v3850 = vunpack.c.l.b16 %v3464
    %v3851 = vunpack.c.h.b16 %v3464
    %v3852 = vunpack.c.l.b16 %v3465
    %v3853 = vunpack.c.h.b16 %v3465
    %v3854 = vunpack.c.l.b16 %v3466
    %v3855 = vunpack.c.h.b16 %v3466
    %v3856 = vunpack.c.l.b16 %v3467
    %v3857 = vunpack.c.h.b16 %v3467
    %v3858 = vunpack.c.l.b16 %v3468
    %v3859 = vunpack.c.h.b16 %v3468
    %v3860 = vunpack.c.l.b16 %v3469
    %v3861 = vunpack.c.h.b16 %v3469
    %v3862 = vunpack.c.l.b16 %v3470
    %v3863 = vunpack.c.h.b16 %v3470
    %v3864 = vunpack.c.l.b16 %v3471
    %v3865 = vunpack.c.h.b16 %v3471
    %v3866 = vunpack.c.l.b16 %v3472
    %v3867 = vunpack.c.h.b16 %v3472
    %v3868 = vunpack.c.l.b16 %v3473
    %v3869 = vunpack.c.h.b16 %v3473
    %v3870 = vunpack.c.l.b16 %v3474
    %v3871 = vunpack.c.h.b16 %v3474
    %v3872 = vunpack.c.l.b16 %v3475
    %v3873 = vunpack.c.h.b16 %v3475
    %v3874 = vunpack.c.l.b16 %v3476
    %v3875 = vunpack.c.h.b16 %v3476
    %v3876 = vunpack.c.l.b16 %v3477
    %v3877 = vunpack.c.h.b16 %v3477
    %v3878 = vunpack.c.l.b16 %v3478
    %v3879 = vunpack.c.h.b16 %v3478
    %v3880 = vunpack.c.l.b16 %v3479
    %v3881 = vunpack.c.h.b16 %v3479
    %v3882 = vunpack.c.l.b16 %v3480
    %v3883 = vunpack.c.h.b16 %v3480
    %v3884 = vunpack.c.l.b16 %v3481
    %v3885 = vunpack.c.h.b16 %v3481
    %v3886 = vunpack.c.l.b16 %v3482
    %v3887 = vunpack.c.h.b16 %v3482
    %v3888 = vunpack.c.l.b16 %v3483
    %v3889 = vunpack.c.h.b16 %v3483
    %v3890 = vunpack.c.l.b16 %v3484
    %v3891 = vunpack.c.h.b16 %v3484
    %v3892 = vpack.c.b16 %v3640, %v3636
    %v3893 = vpack.c.b16 %v3641, %v3637
    %v3894 = vpack.c.b16 %v3642, %v3638
    %v3895 = vpack.c.b16 %v3643, %v3639
    %v3896 = vpack.c.b16 %v3648, %v3644
    %v3897 = vpack.c.b16 %v3649, %v3645
    %v3898 = vpack.c.b16 %v3650, %v3646
    %v3899 = vpack.c.b16 %v3651, %v3647
    %v3900 = vpack.c.b16 %v3656, %v3652
    %v3901 = vpack.c.b16 %v3657, %v3653
    %v3902 = vpack.c.b16 %v3658, %v3654
    %v3903 = vpack.c.b16 %v3659, %v3655
    %v3904 = vpack.c.b16 %v3664, %v3660
    %v3905 = vpack.c.b16 %v3665, %v3661
    %v3906 = vpack.c.b16 %v3666, %v3662
    %v3907 = vpack.c.b16 %v3667, %v3663
    %v3908 = vpack.c.b16 %v3672, %v3668
    %v3909 = vpack.c.b16 %v3673, %v3669
    %v3910 = vpack.c.b16 %v3674, %v3670
    %v3911 = vpack.c.b16 %v3675, %v3671
    %v3912 = vpack.c.b16 %v3680, %v3676
    %v3913 = vpack.c.b16 %v3681, %v3677
    %v3914 = vpack.c.b16 %v3682, %v3678
    %v3915 = vpack.c.b16 %v3683, %v3679
    %v3916 = vpack.c.b16 %v3688, %v3684
    %v3917 = vpack.c.b16 %v3689, %v3685
    %v3918 = vpack.c.b16 %v3690, %v3686
    %v3919 = vpack.c.b16 %v3691, %v3687
    %v3920 = vpack.c.b16 %v3696, %v3692
    %v3921 = vpack.c.b16 %v3697, %v3693
    %v3922 = vpack.c.b16 %v3698, %v3694
    %v3923 = vpack.c.b16 %v3699, %v3695
    %v3924 = vpack.c.b16 %v3704, %v3700
    %v3925 = vpack.c.b16 %v3705, %v3701
    %v3926 = vpack.c.b16 %v3706, %v3702
    %v3927 = vpack.c.b16 %v3707, %v3703
    %v3928 = vpack.c.b16 %v3712, %v3708
    %v3929 = vpack.c.b16 %v3713, %v3709
    %v3930 = vpack.c.b16 %v3714, %v3710
    %v3931 = vpack.c.b16 %v3715, %v3711
    %v3932 = vpack.c.b16 %v3720, %v3716
    %v3933 = vpack.c.b16 %v3721, %v3717
    %v3934 = vpack.c.b16 %v3722, %v3718
    %v3935 = vpack.c.b16 %v3723, %v3719
    %v3936 = vpack.c.b16 %v3728, %v3724
    %v3937 = vpack.c.b16 %v3729, %v3725
    %v3938 = vpack.c.b16 %v3730, %v3726
    %v3939 = vpack.c.b16 %v3731, %v3727
    %v3940 = vpack.c.b16 %v3736, %v3732
    %v3941 = vpack.c.b16 %v3737, %v3733
    %v3942 = vpack.c.b16 %v3738, %v3734
    %v3943 = vpack.c.b16 %v3739, %v3735
    %v3944 = vpack.c.b16 %v3744, %v3740
    %v3945 = vpack.c.b16 %v3745, %v3741
    %v3946 = vpack.c.b16 %v3746, %v3742
    %v3947 = vpack.c.b16 %v3747, %v3743
    %v3948 = vpack.c.b16 %v3752, %v3748
    %v3949 = vpack.c.b16 %v3753, %v3749
    %v3950 = vpack.c.b16 %v3754, %v3750
    %v3951 = vpack.c.b16 %v3755, %v3751
    %v3952 = vpack.c.b16 %v3760, %v3756
    %v3953 = vpack.c.b16 %v3761, %v3757
    %v3954 = vpack.c.b16 %v3762, %v3758
    %v3955 = vpack.c.b16 %v3763, %v3759
    %v3956 = vpack.c.b16 %v3768, %v3764
    %v3957 = vpack.c.b16 %v3769, %v3765
    %v3958 = vpack.c.b16 %v3770, %v3766
    %v3959 = vpack.c.b16 %v3771, %v3767
    %v3960 = vpack.c.b16 %v3776, %v3772
    %v3961 = vpack.c.b16 %v3777, %v3773
    %v3962 = vpack.c.b16 %v3778, %v3774
    %v3963 = vpack.c.b16 %v3779, %v3775
    %v3964 = vpack.c.b16 %v3784, %v3780
    %v3965 = vpack.c.b16 %v3785, %v3781
    %v3966 = vpack.c.b16 %v3786, %v3782
    %v3967 = vpack.c.b16 %v3787, %v3783
    %v3968 = vpack.c.b16 %v3792, %v3788
    %v3969 = vpack.c.b16 %v3793, %v3789
    %v3970 = vpack.c.b16 %v3794, %v3790
    %v3971 = vpack.c.b16 %v3795, %v3791
    %v3972 = vpack.c.b16 %v3800, %v3796
    %v3973 = vpack.c.b16 %v3801, %v3797
    %v3974 = vpack.c.b16 %v3802, %v3798
    %v3975 = vpack.c.b16 %v3803, %v3799
    %v3976 = vpack.c.b16 %v3808, %v3804
    %v3977 = vpack.c.b16 %v3809, %v3805
    %v3978 = vpack.c.b16 %v3810, %v3806
    %v3979 = vpack.c.b16 %v3811, %v3807
    %v3980 = vpack.c.b16 %v3816, %v3812
    %v3981 = vpack.c.b16 %v3817, %v3813
    %v3982 = vpack.c.b16 %v3818, %v3814
    %v3983 = vpack.c.b16 %v3819, %v3815
    %v3984 = vpack.c.b16 %v3824, %v3820
    %v3985 = vpack.c.b16 %v3825, %v3821
    %v3986 = vpack.c.b16 %v3826, %v3822
    %v3987 = vpack.c.b16 %v3827, %v3823
    %v3988 = vpack.c.b16 %v3832, %v3828
    %v3989 = vpack.c.b16 %v3833, %v3829
    %v3990 = vpack.c.b16 %v3834, %v3830
    %v3991 = vpack.c.b16 %v3835, %v3831
    %v3992 = vpack.c.b16 %v3840, %v3836
    %v3993 = vpack.c.b16 %v3841, %v3837
    %v3994 = vpack.c.b16 %v3842, %v3838
    %v3995 = vpack.c.b16 %v3843, %v3839
    %v3996 = vpack.c.b16 %v3848, %v3844
    %v3997 = vpack.c.b16 %v3849, %v3845
    %v3998 = vpack.c.b16 %v3850, %v3846
    %v3999 = vpack.c.b16 %v3851, %v3847
    %v4000 = vpack.c.b16 %v3856, %v3852
    %v4001 = vpack.c.b16 %v3857, %v3853
    %v4002 = vpack.c.b16 %v3858, %v3854
    %v4003 = vpack.c.b16 %v3859, %v3855
    %v4004 = vpack.c.b16 %v3864, %v3860
    %v4005 = vpack.c.b16 %v3865, %v3861
    %v4006 = vpack.c.b16 %v3866, %v3862
    %v4007 = vpack.c.b16 %v3867, %v3863
    %v4008 = vpack.c.b16 %v3872, %v3868
    %v4009 = vpack.c.b16 %v3873, %v3869
    %v4010 = vpack.c.b16 %v3874, %v3870
    %v4011 = vpack.c.b16 %v3875, %v3871
    %v4012 = vpack.c.b16 %v3880, %v3876
    %v4013 = vpack.c.b16 %v3881, %v3877
    %v4014 = vpack.c.b16 %v3882, %v3878
    %v4015 = vpack.c.b16 %v3883, %v3879
    %v4016 = vpack.c.b16 %v3888, %v3884
    %v4017 = vpack.c.b16 %v3889, %v3885
    %v4018 = vpack.c.b16 %v3890, %v3886
    %v4019 = vpack.c.b16 %v3891, %v3887
    %4148 = vmatprep.subr.bf16.mxu0 %v3893
    %4149 = vmatpush1.bf16.msra.mxu0 %v3892
    %4150 = vmatprep.subr.bf16.mxu0 %v3897
    %4151 = vmatpush1.bf16.msra.mxu0 %v3896
    %4152 = vmatprep.subr.bf16.mxu0 %v3901
    %4153 = vmatpush1.bf16.msra.mxu0 %v3900
    %4154 = vmatprep.subr.bf16.mxu0 %v3905
    %4155 = vmatpush1.bf16.msra.mxu0 %v3904
    %4156 = vmatprep.subr.bf16.mxu0 %v3909
    %4157 = vmatpush1.bf16.msra.mxu0 %v3908
    %4158 = vmatprep.subr.bf16.mxu0 %v3913
    %4159 = vmatpush1.bf16.msra.mxu0 %v3912
    %4160 = vmatprep.subr.bf16.mxu0 %v3917
    %4161 = vmatpush1.bf16.msra.mxu0 %v3916
    %4162 = vmatprep.subr.bf16.mxu0 %v3921
    %4163 = vmatpush1.bf16.msra.mxu0 %v3920
    %4164 = vmatprep.subr.bf16.mxu0 %v3925
    %4165 = vmatpush1.bf16.msra.mxu0 %v3924
    %4166 = vmatprep.subr.bf16.mxu0 %v3929
    %4167 = vmatpush1.bf16.msra.mxu0 %v3928
    %4168 = vmatprep.subr.bf16.mxu0 %v3933
    %4169 = vmatpush1.bf16.msra.mxu0 %v3932
    %4170 = vmatprep.subr.bf16.mxu0 %v3937
    %4171 = vmatpush1.bf16.msra.mxu0 %v3936
    %4172 = vmatprep.subr.bf16.mxu0 %v3941
    %4173 = vmatpush1.bf16.msra.mxu0 %v3940
    %4174 = vmatprep.subr.bf16.mxu0 %v3945
    %4175 = vmatpush1.bf16.msra.mxu0 %v3944
    %4176 = vmatprep.subr.bf16.mxu0 %v3949
    %4177 = vmatpush1.bf16.msra.mxu0 %v3948
    %4178 = vmatprep.subr.bf16.mxu0 %v3953
    %4179 = vmatpush1.bf16.msra.mxu0 %v3952
    %4180 = vmatprep.mubr.bf16.mxu0 %v3354
    %4181 = vmatmul.mubr.bf16.gmra.mrb[0].mxu0 %v3353
    %v4182 = vpop.f32.mrb[0].mxu0
    %v4183 = vadd.f32 %v3491, %v4182
    %v4184 = vpop.f32.mrb[0].mxu0
    %v4185 = vadd.f32 %v3495, %v4184
    %v4186 = vpop.f32.mrb[0].mxu0
    %v4187 = vadd.f32 %v3491, %v4186
    %v4188 = vpop.f32.mrb[0].mxu0
    %v4189 = vadd.f32 %v3495, %v4188
    %4190 = vdwg.mxu0
    %4191 = vmatprep.subr.bf16.mxu0 %v3957
    %4192 = vmatpush1.bf16.msra.mxu0 %v3956
    %4193 = vmatprep.subr.bf16.mxu0 %v3961
    %4194 = vmatpush1.bf16.msra.mxu0 %v3960
    %4195 = vmatprep.subr.bf16.mxu0 %v3965
    %4196 = vmatpush1.bf16.msra.mxu0 %v3964
    %4197 = vmatprep.subr.bf16.mxu0 %v3969
    %4198 = vmatpush1.bf16.msra.mxu0 %v3968
    %4199 = vmatprep.subr.bf16.mxu0 %v3973
    %4200 = vmatpush1.bf16.msra.mxu0 %v3972
    %4201 = vmatprep.subr.bf16.mxu0 %v3977
    %4202 = vmatpush1.bf16.msra.mxu0 %v3976
    %4203 = vmatprep.subr.bf16.mxu0 %v3981
    %4204 = vmatpush1.bf16.msra.mxu0 %v3980
    %4205 = vmatprep.subr.bf16.mxu0 %v3985
    %4206 = vmatpush1.bf16.msra.mxu0 %v3984
    %4207 = vmatprep.subr.bf16.mxu0 %v3989
    %4208 = vmatpush1.bf16.msra.mxu0 %v3988
    %4209 = vmatprep.subr.bf16.mxu0 %v3993
    %4210 = vmatpush1.bf16.msra.mxu0 %v3992
    %4211 = vmatprep.subr.bf16.mxu0 %v3997
    %4212 = vmatpush1.bf16.msra.mxu0 %v3996
    %4213 = vmatprep.subr.bf16.mxu0 %v4001
    %4214 = vmatpush1.bf16.msra.mxu0 %v4000
    %4215 = vmatprep.subr.bf16.mxu0 %v4005
    %4216 = vmatpush1.bf16.msra.mxu0 %v4004
    %4217 = vmatprep.subr.bf16.mxu0 %v4009
    %4218 = vmatpush1.bf16.msra.mxu0 %v4008
    %4219 = vmatprep.subr.bf16.mxu0 %v4013
    %4220 = vmatpush1.bf16.msra.mxu0 %v4012
    %4221 = vmatprep.subr.bf16.mxu0 %v4017
    %4222 = vmatpush1.bf16.msra.mxu0 %v4016
    %4223 = vmatprep.mubr.bf16.mxu0 %v3356
    %4224 = vmatmul.mubr.bf16.gmra.mrb[0].mxu0 %v3355
    %v4225 = vpop.f32.mrb[0].mxu0
    %v4226 = vadd.f32 %v4183, %v4225
    %v4227 = vpop.f32.mrb[0].mxu0
    %v4228 = vadd.f32 %v4185, %v4227
    %v4229 = vpop.f32.mrb[0].mxu0
    %v4230 = vadd.f32 %v4187, %v4229
    %v4231 = vpop.f32.mrb[0].mxu0
    %v4232 = vadd.f32 %v4189, %v4231
    %4233 = vdwg.mxu0
    %4234 = vmatprep.subr.bf16.mxu0 %v3895
    %4235 = vmatpush1.bf16.msra.mxu0 %v3894
    %4236 = vmatprep.subr.bf16.mxu0 %v3899
    %4237 = vmatpush1.bf16.msra.mxu0 %v3898
    %4238 = vmatprep.subr.bf16.mxu0 %v3903
    %4239 = vmatpush1.bf16.msra.mxu0 %v3902
    %4240 = vmatprep.subr.bf16.mxu0 %v3907
    %4241 = vmatpush1.bf16.msra.mxu0 %v3906
    %4242 = vmatprep.subr.bf16.mxu0 %v3911
    %4243 = vmatpush1.bf16.msra.mxu0 %v3910
    %4244 = vmatprep.subr.bf16.mxu0 %v3915
    %4245 = vmatpush1.bf16.msra.mxu0 %v3914
    %4246 = vmatprep.subr.bf16.mxu0 %v3919
    %4247 = vmatpush1.bf16.msra.mxu0 %v3918
    %4248 = vmatprep.subr.bf16.mxu0 %v3923
    %4249 = vmatpush1.bf16.msra.mxu0 %v3922
    %4250 = vmatprep.subr.bf16.mxu0 %v3927
    %4251 = vmatpush1.bf16.msra.mxu0 %v3926
    %4252 = vmatprep.subr.bf16.mxu0 %v3931
    %4253 = vmatpush1.bf16.msra.mxu0 %v3930
    %4254 = vmatprep.subr.bf16.mxu0 %v3935
    %4255 = vmatpush1.bf16.msra.mxu0 %v3934
    %4256 = vmatprep.subr.bf16.mxu0 %v3939
    %4257 = vmatpush1.bf16.msra.mxu0 %v3938
    %4258 = vmatprep.subr.bf16.mxu0 %v3943
    %4259 = vmatpush1.bf16.msra.mxu0 %v3942
    %4260 = vmatprep.subr.bf16.mxu0 %v3947
    %4261 = vmatpush1.bf16.msra.mxu0 %v3946
    %4262 = vmatprep.subr.bf16.mxu0 %v3951
    %4263 = vmatpush1.bf16.msra.mxu0 %v3950
    %4264 = vmatprep.subr.bf16.mxu0 %v3955
    %4265 = vmatpush1.bf16.msra.mxu0 %v3954
    %4266 = vmatprep.mubr.bf16.mxu0 %v3354
    %4267 = vmatmul.mubr.bf16.gmra.mrb[0].mxu0 %v3353
    %v4268 = vpop.f32.mrb[0].mxu0
    %v4269 = vadd.f32 %v3499, %v4268
    %v4270 = vpop.f32.mrb[0].mxu0
    %v4271 = vadd.f32 %v3503, %v4270
    %v4272 = vpop.f32.mrb[0].mxu0
    %v4273 = vadd.f32 %v3499, %v4272
    %v4274 = vpop.f32.mrb[0].mxu0
    %v4275 = vadd.f32 %v3503, %v4274
    %4276 = vdwg.mxu0
    %4277 = vmatprep.subr.bf16.mxu0 %v3959
    %4278 = vmatpush1.bf16.msra.mxu0 %v3958
    %4279 = vmatprep.subr.bf16.mxu0 %v3963
    %4280 = vmatpush1.bf16.msra.mxu0 %v3962
    %4281 = vmatprep.subr.bf16.mxu0 %v3967
    %4282 = vmatpush1.bf16.msra.mxu0 %v3966
    %4283 = vmatprep.subr.bf16.mxu0 %v3971
    %4284 = vmatpush1.bf16.msra.mxu0 %v3970
    %4285 = vmatprep.subr.bf16.mxu0 %v3975
    %4286 = vmatpush1.bf16.msra.mxu0 %v3974
    %4287 = vmatprep.subr.bf16.mxu0 %v3979
    %4288 = vmatpush1.bf16.msra.mxu0 %v3978
    %4289 = vmatprep.subr.bf16.mxu0 %v3983
    %4290 = vmatpush1.bf16.msra.mxu0 %v3982
    %4291 = vmatprep.subr.bf16.mxu0 %v3987
    %4292 = vmatpush1.bf16.msra.mxu0 %v3986
    %4293 = vmatprep.subr.bf16.mxu0 %v3991
    %4294 = vmatpush1.bf16.msra.mxu0 %v3990
    %4295 = vmatprep.subr.bf16.mxu0 %v3995
    %4296 = vmatpush1.bf16.msra.mxu0 %v3994
    %4297 = vmatprep.subr.bf16.mxu0 %v3999
    %4298 = vmatpush1.bf16.msra.mxu0 %v3998
    %4299 = vmatprep.subr.bf16.mxu0 %v4003
    %4300 = vmatpush1.bf16.msra.mxu0 %v4002
    %4301 = vmatprep.subr.bf16.mxu0 %v4007
    %4302 = vmatpush1.bf16.msra.mxu0 %v4006
    %4303 = vmatprep.subr.bf16.mxu0 %v4011
    %4304 = vmatpush1.bf16.msra.mxu0 %v4010
    %4305 = vmatprep.subr.bf16.mxu0 %v4015
    %4306 = vmatpush1.bf16.msra.mxu0 %v4014
    %4307 = vmatprep.subr.bf16.mxu0 %v4019
    %4308 = vmatpush1.bf16.msra.mxu0 %v4018
    %4309 = vmatprep.mubr.bf16.mxu0 %v3356
    %4310 = vmatmul.mubr.bf16.gmra.mrb[0].mxu0 %v3355
    %v4311 = vpop.f32.mrb[0].mxu0
    %v4312 = vadd.f32 %v4269, %v4311
    %v4313 = vpop.f32.mrb[0].mxu0
    %v4314 = vadd.f32 %v4271, %v4313
    %v4315 = vpop.f32.mrb[0].mxu0
    %v4316 = vadd.f32 %v4273, %v4315
    %v4317 = vpop.f32.mrb[0].mxu0
    %v4318 = vadd.f32 %v4275, %v4317
    %4319 = vdwg.mxu0
    %v4320 = vmax.f32 %v4226, 0.0
    %v4321 = vmax.f32 %v4228, 0.0
    %v4322 = vmax.f32 %v4312, 0.0
    %v4323 = vmax.f32 %v4314, 0.0
    %v4324 = vmax.f32 %v4230, 0.0
    %v4325 = vmax.f32 %v4232, 0.0
    %v4326 = vmax.f32 %v4316, 0.0
    %v4327 = vmax.f32 %v4318, 0.0
    %v4328 = vpack.c.bf16 %v4324, %v4320
    %v4329 = vpack.c.bf16 %v4325, %v4321
    %v4330 = vpack.c.bf16 %v4326, %v4322
    %v4331 = vpack.c.bf16 %v4327, %v4323
    %v4332 = vld [vmem:[#allocation10] sm:$0xf]
    %v4333 = vld [vmem:[#allocation10 + $0x4] sm:$0xf]
    %v4334 = vld [vmem:[#allocation10 + $0x8] sm:$0xf]
    %v4335 = vld [vmem:[#allocation10 + $0xc] sm:$0xf]
    %v4336 = vld [vmem:[#allocation10 + $0x10] sm:$0xf]
    %v4337 = vld [vmem:[#allocation10 + $0x14] sm:$0xf]
    %v4338 = vld [vmem:[#allocation10 + $0x18] sm:$0xf]
    %v4339 = vld [vmem:[#allocation10 + $0x1c] sm:$0xf]
    %v4340 = vld [vmem:[#allocation10 + $0x20] sm:$0xf]
    %v4341 = vld [vmem:[#allocation10 + $0x24] sm:$0xf]
    %v4342 = vld [vmem:[#allocation10 + $0x28] sm:$0xf]
    %v4343 = vld [vmem:[#allocation10 + $0x2c] sm:$0xf]
    %v4344 = vld [vmem:[#allocation10 + $0x30] sm:$0xf]
    %v4345 = vld [vmem:[#allocation10 + $0x34] sm:$0xf]
    %v4346 = vld [vmem:[#allocation10 + $0x38] sm:$0xf]
    %v4347 = vld [vmem:[#allocation10 + $0x3c] sm:$0xf]
    %v4348 = vld [vmem:[#allocation10 + $0x40] sm:$0xf]
    %v4349 = vld [vmem:[#allocation10 + $0x44] sm:$0xf]
    %v4350 = vld [vmem:[#allocation10 + $0x48] sm:$0xf]
    %v4351 = vld [vmem:[#allocation10 + $0x4c] sm:$0xf]
    %v4352 = vld [vmem:[#allocation10 + $0x50] sm:$0xf]
    %v4353 = vld [vmem:[#allocation10 + $0x54] sm:$0xf]
    %v4354 = vld [vmem:[#allocation10 + $0x58] sm:$0xf]
    %v4355 = vld [vmem:[#allocation10 + $0x5c] sm:$0xf]
    %v4356 = vld [vmem:[#allocation10 + $0x60] sm:$0xf]
    %v4357 = vld [vmem:[#allocation10 + $0x64] sm:$0xf]
    %v4358 = vld [vmem:[#allocation10 + $0x68] sm:$0xf]
    %v4359 = vld [vmem:[#allocation10 + $0x6c] sm:$0xf]
    %v4360 = vld [vmem:[#allocation10 + $0x70] sm:$0xf]
    %v4361 = vld [vmem:[#allocation10 + $0x74] sm:$0xf]
    %v4362 = vld [vmem:[#allocation10 + $0x78] sm:$0xf]
    %v4363 = vld [vmem:[#allocation10 + $0x7c] sm:$0xf]
    %v4364 = vld [vmem:[#allocation10 + $0x80] sm:$0xf]
    %v4365 = vld [vmem:[#allocation10 + $0x84] sm:$0xf]
    %v4366 = vld [vmem:[#allocation10 + $0x88] sm:$0xf]
    %v4367 = vld [vmem:[#allocation10 + $0x8c] sm:$0xf]
    %v4368 = vld [vmem:[#allocation10 + $0x90] sm:$0xf]
    %v4369 = vld [vmem:[#allocation10 + $0x94] sm:$0xf]
    %v4370 = vld [vmem:[#allocation10 + $0x98] sm:$0xf]
    %v4371 = vld [vmem:[#allocation10 + $0x9c] sm:$0xf]
    %v4372 = vld [vmem:[#allocation10 + $0xa0] sm:$0xf]
    %v4373 = vld [vmem:[#allocation10 + $0xa4] sm:$0xf]
    %v4374 = vld [vmem:[#allocation10 + $0xa8] sm:$0xf]
    %v4375 = vld [vmem:[#allocation10 + $0xac] sm:$0xf]
    %v4376 = vld [vmem:[#allocation10 + $0xb0] sm:$0xf]
    %v4377 = vld [vmem:[#allocation10 + $0xb4] sm:$0xf]
    %v4378 = vld [vmem:[#allocation10 + $0xb8] sm:$0xf]
    %v4379 = vld [vmem:[#allocation10 + $0xbc] sm:$0xf]
    %v4380 = vld [vmem:[#allocation10 + $0xc0] sm:$0xf]
    %v4381 = vld [vmem:[#allocation10 + $0xc4] sm:$0xf]
    %v4382 = vld [vmem:[#allocation10 + $0xc8] sm:$0xf]
    %v4383 = vld [vmem:[#allocation10 + $0xcc] sm:$0xf]
    %v4384 = vld [vmem:[#allocation10 + $0xd0] sm:$0xf]
    %v4385 = vld [vmem:[#allocation10 + $0xd4] sm:$0xf]
    %v4386 = vld [vmem:[#allocation10 + $0xd8] sm:$0xf]
    %v4387 = vld [vmem:[#allocation10 + $0xdc] sm:$0xf]
    %v4388 = vld [vmem:[#allocation10 + $0xe0] sm:$0xf]
    %v4389 = vld [vmem:[#allocation10 + $0xe4] sm:$0xf]
    %v4390 = vld [vmem:[#allocation10 + $0xe8] sm:$0xf]
    %v4391 = vld [vmem:[#allocation10 + $0xec] sm:$0xf]
    %v4392 = vld [vmem:[#allocation10 + $0xf0] sm:$0xf]
    %v4393 = vld [vmem:[#allocation10 + $0xf4] sm:$0xf]
    %v4394 = vld [vmem:[#allocation10 + $0xf8] sm:$0xf]
    %v4395 = vld [vmem:[#allocation10 + $0xfc] sm:$0xf]
    %v4396 = vld [vmem:[%s7 + $0x5] ss:$0 sm:$0xff]
    %v4461 = vunpack.c.l.b16 %v4332
    %v4462 = vunpack.c.l.b16 %v4333
    %v4463 = vunpack.c.l.b16 %v4334
    %v4464 = vunpack.c.l.b16 %v4335
    %v4465 = vunpack.c.l.b16 %v4336
    %v4466 = vunpack.c.l.b16 %v4337
    %v4467 = vunpack.c.l.b16 %v4338
    %v4468 = vunpack.c.l.b16 %v4339
    %v4469 = vunpack.c.l.b16 %v4340
    %v4470 = vunpack.c.l.b16 %v4341
    %v4471 = vunpack.c.l.b16 %v4342
    %v4472 = vunpack.c.l.b16 %v4343
    %v4473 = vunpack.c.l.b16 %v4344
    %v4474 = vunpack.c.l.b16 %v4345
    %v4475 = vunpack.c.l.b16 %v4346
    %v4476 = vunpack.c.l.b16 %v4347
    %v4477 = vunpack.c.l.b16 %v4348
    %v4478 = vunpack.c.l.b16 %v4349
    %v4479 = vunpack.c.l.b16 %v4350
    %v4480 = vunpack.c.l.b16 %v4351
    %v4481 = vunpack.c.l.b16 %v4352
    %v4482 = vunpack.c.l.b16 %v4353
    %v4483 = vunpack.c.l.b16 %v4354
    %v4484 = vunpack.c.l.b16 %v4355
    %v4485 = vunpack.c.l.b16 %v4356
    %v4486 = vunpack.c.l.b16 %v4357
    %v4487 = vunpack.c.l.b16 %v4358
    %v4488 = vunpack.c.l.b16 %v4359
    %v4489 = vunpack.c.l.b16 %v4360
    %v4490 = vunpack.c.l.b16 %v4361
    %v4491 = vunpack.c.l.b16 %v4362
    %v4492 = vunpack.c.l.b16 %v4363
    %v4493 = vunpack.c.l.b16 %v4364
    %v4494 = vunpack.c.l.b16 %v4365
    %v4495 = vunpack.c.l.b16 %v4366
    %v4496 = vunpack.c.l.b16 %v4367
    %v4497 = vunpack.c.l.b16 %v4368
    %v4498 = vunpack.c.l.b16 %v4369
    %v4499 = vunpack.c.l.b16 %v4370
    %v4500 = vunpack.c.l.b16 %v4371
    %v4501 = vunpack.c.l.b16 %v4372
    %v4502 = vunpack.c.l.b16 %v4373
    %v4503 = vunpack.c.l.b16 %v4374
    %v4504 = vunpack.c.l.b16 %v4375
    %v4505 = vunpack.c.l.b16 %v4376
    %v4506 = vunpack.c.l.b16 %v4377
    %v4507 = vunpack.c.l.b16 %v4378
    %v4508 = vunpack.c.l.b16 %v4379
    %v4509 = vunpack.c.l.b16 %v4380
    %v4510 = vunpack.c.l.b16 %v4381
    %v4511 = vunpack.c.l.b16 %v4382
    %v4512 = vunpack.c.l.b16 %v4383
    %v4513 = vunpack.c.l.b16 %v4384
    %v4514 = vunpack.c.l.b16 %v4385
    %v4515 = vunpack.c.l.b16 %v4386
    %v4516 = vunpack.c.l.b16 %v4387
    %v4517 = vunpack.c.l.b16 %v4388
    %v4518 = vunpack.c.l.b16 %v4389
    %v4519 = vunpack.c.l.b16 %v4390
    %v4520 = vunpack.c.l.b16 %v4391
    %v4521 = vunpack.c.l.b16 %v4392
    %v4522 = vunpack.c.l.b16 %v4393
    %v4523 = vunpack.c.l.b16 %v4394
    %v4524 = vunpack.c.l.b16 %v4395
    %v4525 = vpack.c.b16 %v4462, %v4461
    %v4526 = vpack.c.b16 %v4464, %v4463
    %v4527 = vpack.c.b16 %v4466, %v4465
    %v4528 = vpack.c.b16 %v4468, %v4467
    %v4529 = vpack.c.b16 %v4470, %v4469
    %v4530 = vpack.c.b16 %v4472, %v4471
    %v4531 = vpack.c.b16 %v4474, %v4473
    %v4532 = vpack.c.b16 %v4476, %v4475
    %v4533 = vpack.c.b16 %v4478, %v4477
    %v4534 = vpack.c.b16 %v4480, %v4479
    %v4535 = vpack.c.b16 %v4482, %v4481
    %v4536 = vpack.c.b16 %v4484, %v4483
    %v4537 = vpack.c.b16 %v4486, %v4485
    %v4538 = vpack.c.b16 %v4488, %v4487
    %v4539 = vpack.c.b16 %v4490, %v4489
    %v4540 = vpack.c.b16 %v4492, %v4491
    %v4541 = vpack.c.b16 %v4494, %v4493
    %v4542 = vpack.c.b16 %v4496, %v4495
    %v4543 = vpack.c.b16 %v4498, %v4497
    %v4544 = vpack.c.b16 %v4500, %v4499
    %v4545 = vpack.c.b16 %v4502, %v4501
    %v4546 = vpack.c.b16 %v4504, %v4503
    %v4547 = vpack.c.b16 %v4506, %v4505
    %v4548 = vpack.c.b16 %v4508, %v4507
    %v4549 = vpack.c.b16 %v4510, %v4509
    %v4550 = vpack.c.b16 %v4512, %v4511
    %v4551 = vpack.c.b16 %v4514, %v4513
    %v4552 = vpack.c.b16 %v4516, %v4515
    %v4553 = vpack.c.b16 %v4518, %v4517
    %v4554 = vpack.c.b16 %v4520, %v4519
    %v4555 = vpack.c.b16 %v4522, %v4521
    %v4556 = vpack.c.b16 %v4524, %v4523
    %4589 = vmatprep.subr.bf16.mxu0 0
    %4590 = vmatpush1.bf16.msra.mxu0 %v4525
    %4591 = vmatprep.subr.bf16.mxu0 0
    %4592 = vmatpush1.bf16.msra.mxu0 %v4526
    %4593 = vmatprep.subr.bf16.mxu0 0
    %4594 = vmatpush1.bf16.msra.mxu0 %v4527
    %4595 = vmatprep.subr.bf16.mxu0 0
    %4596 = vmatpush1.bf16.msra.mxu0 %v4528
    %4597 = vmatprep.subr.bf16.mxu0 0
    %4598 = vmatpush1.bf16.msra.mxu0 %v4529
    %4599 = vmatprep.subr.bf16.mxu0 0
    %4600 = vmatpush1.bf16.msra.mxu0 %v4530
    %4601 = vmatprep.subr.bf16.mxu0 0
    %4602 = vmatpush1.bf16.msra.mxu0 %v4531
    %4603 = vmatprep.subr.bf16.mxu0 0
    %4604 = vmatpush1.bf16.msra.mxu0 %v4532
    %4605 = vmatprep.subr.bf16.mxu0 0
    %4606 = vmatpush1.bf16.msra.mxu0 %v4533
    %4607 = vmatprep.subr.bf16.mxu0 0
    %4608 = vmatpush1.bf16.msra.mxu0 %v4534
    %4609 = vmatprep.subr.bf16.mxu0 0
    %4610 = vmatpush1.bf16.msra.mxu0 %v4535
    %4611 = vmatprep.subr.bf16.mxu0 0
    %4612 = vmatpush1.bf16.msra.mxu0 %v4536
    %4613 = vmatprep.subr.bf16.mxu0 0
    %4614 = vmatpush1.bf16.msra.mxu0 %v4537
    %4615 = vmatprep.subr.bf16.mxu0 0
    %4616 = vmatpush1.bf16.msra.mxu0 %v4538
    %4617 = vmatprep.subr.bf16.mxu0 0
    %4618 = vmatpush1.bf16.msra.mxu0 %v4539
    %4619 = vmatprep.subr.bf16.mxu0 0
    %4620 = vmatpush1.bf16.msra.mxu0 %v4540
    %4621 = vmatprep.mubr.bf16.mxu0 %v4329
    %4622 = vmatmul.mubr.bf16.gmra.mrb[0].mxu0 %v4328
    %v4623 = vpop.f32.mrb[0].mxu0
    %v4624 = vadd.f32 %v4396, %v4623
    %v4625 = vpop.f32.mrb[0].mxu0
    %v4626 = vpop.f32.mrb[0].mxu0
    %v4627 = vadd.f32 %v4396, %v4626
    %v4628 = vpop.f32.mrb[0].mxu0
    %4629 = vdwg.mxu0
    %4630 = vmatprep.subr.bf16.mxu0 0
    %4631 = vmatpush1.bf16.msra.mxu0 %v4541
    %4632 = vmatprep.subr.bf16.mxu0 0
    %4633 = vmatpush1.bf16.msra.mxu0 %v4542
    %4634 = vmatprep.subr.bf16.mxu0 0
    %4635 = vmatpush1.bf16.msra.mxu0 %v4543
    %4636 = vmatprep.subr.bf16.mxu0 0
    %4637 = vmatpush1.bf16.msra.mxu0 %v4544
    %4638 = vmatprep.subr.bf16.mxu0 0
    %4639 = vmatpush1.bf16.msra.mxu0 %v4545
    %4640 = vmatprep.subr.bf16.mxu0 0
    %4641 = vmatpush1.bf16.msra.mxu0 %v4546
    %4642 = vmatprep.subr.bf16.mxu0 0
    %4643 = vmatpush1.bf16.msra.mxu0 %v4547
    %4644 = vmatprep.subr.bf16.mxu0 0
    %4645 = vmatpush1.bf16.msra.mxu0 %v4548
    %4646 = vmatprep.subr.bf16.mxu0 0
    %4647 = vmatpush1.bf16.msra.mxu0 %v4549
    %4648 = vmatprep.subr.bf16.mxu0 0
    %4649 = vmatpush1.bf16.msra.mxu0 %v4550
    %4650 = vmatprep.subr.bf16.mxu0 0
    %4651 = vmatpush1.bf16.msra.mxu0 %v4551
    %4652 = vmatprep.subr.bf16.mxu0 0
    %4653 = vmatpush1.bf16.msra.mxu0 %v4552
    %4654 = vmatprep.subr.bf16.mxu0 0
    %4655 = vmatpush1.bf16.msra.mxu0 %v4553
    %4656 = vmatprep.subr.bf16.mxu0 0
    %4657 = vmatpush1.bf16.msra.mxu0 %v4554
    %4658 = vmatprep.subr.bf16.mxu0 0
    %4659 = vmatpush1.bf16.msra.mxu0 %v4555
    %4660 = vmatprep.subr.bf16.mxu0 0
    %4661 = vmatpush1.bf16.msra.mxu0 %v4556
    %4662 = vmatprep.mubr.bf16.mxu0 %v4331
    %4663 = vmatmul.mubr.bf16.gmra.mrb[0].mxu0 %v4330
    %v4664 = vpop.f32.mrb[0].mxu0
    %v4665 = vadd.f32 %v4624, %v4664
    %v4666 = vpop.f32.mrb[0].mxu0
    %v4667 = vpop.f32.mrb[0].mxu0
    %v4668 = vadd.f32 %v4627, %v4667
    %v4669 = vpop.f32.mrb[0].mxu0
    %4670 = vdwg.mxu0
    %v4671 = vpack.c.bf16 %v4668, %v4665
    %v4673 = vunpack.c.l.b16 %v4671
    %v4674 = vunpack.c.h.b16 %v4671
    %v4675 = vpack.c.b16 %v4673, %v4673
    %v4676 = vpack.c.b16 %v4674, %v4674
    %4679 = vst [vmem:[%s8] sm:$0xf] %v4675
    %4680 = vst [vmem:[%s8 + $0x4] sm:$0xf] %v4676
    // Predicated region
    $region58: #{attack_net_forward.1} parent=1 // pred_check
      _
    $region59: #{attack_net_forward.1} parent=1 // pred_check_branch
      %4682 = sbr.rel (0) target = $region61
    $region60: #{attack_net_forward.1} parent=1 // pred_region
      _
    $region61: #{attack_net_forward.1} parent=1 // pred_fallthru
      _
    // Predicated region
    $region62: #{attack_net_forward.1} parent=1 // pred_check
      _
    $region63: #{attack_net_forward.1} parent=1 // pred_check_branch
      %4684 = sbr.rel (0) target = $region65
    $region64: #{attack_net_forward.1} parent=1 // pred_region
      _
    $region65: #{attack_net_forward.1} parent=1 // pred_fallthru
      _
    %4685 = vsyncpa [#allocation3], 1
    %4686 = vsyncpa [#allocation5], 1
    %4687 = vsyncpa [#allocation8], 1
    %4688 = vsyncpa [#allocation11], 1

</llo_original>
